<compile_context>
chip_gen: v7x
topology: tpu7x:2x2x1
jax: 0.10.0
libtpu: 0.0.40
codegen_flags: <defaults>
</compile_context>

<pallas_src>
import numpy as np
import jax
import jax.numpy as jnp
from jax.experimental import pallas as pl
from jax.experimental.pallas import tpu as pltpu


def _round_up(x, m):
    return ((x + m - 1) // m) * m


# ------------------------------------------------------------------ fused CBAM kernel
def _make_cbam_kernel(H, W, K, C):
    HW = H * W
    P = K // 2
    KK = K * K
    pad_len = _round_up(P * W + P, 128)      # 128-aligned halo -> aligned concatenate
    inv_hw = 1.0 / float(HW)
    inv_c = 1.0 / float(C)

    def kernel(x_ref, w1t_ref, w2_ref, cmask_ref, ws_ref, o_ref):
        xv = x_ref[0]                                         # (C, HW) f32, lane-dense

        # ---- channel attention: global avg / max pool over HW (lane reduce) ----
        s_sum = jnp.sum(xv, axis=1, keepdims=True)            # (C, 1)
        s_max = jnp.max(xv, axis=1, keepdims=True)            # (C, 1)

        def shared_mlp(p):                                    # p: (C, 1)
            # h = relu(W1 @ p): contract over C via broadcast-mul + sublane reduce
            h = jnp.maximum(
                jnp.sum(w1t_ref[...] * p, axis=0, keepdims=True), 0.0)       # (1, Cr)
            # y = W2 @ h: contract over Cr via broadcast-mul + lane reduce
            return jnp.sum(w2_ref[...] * h, axis=1, keepdims=True)           # (C, 1)

        gate_c = jax.nn.sigmoid(shared_mlp(s_sum * inv_hw) + shared_mlp(s_max))  # (C,1)

        # ---- channel gating (broadcast along lanes) ----
        xg = xv * gate_c                                      # (C, HW)

        # ---- spatial stats over channels (sublane reduce, stays lane-dense) ----
        mean_c = jnp.sum(xg, axis=0, keepdims=True) * inv_c   # (1, HW)
        max_c = jnp.max(xg, axis=0, keepdims=True)            # (1, HW)

        # ---- KxK cross-correlation on the flattened stats rows ----
        zpad = jnp.zeros((1, pad_len), jnp.float32)
        pm = jnp.concatenate([zpad, mean_c, zpad], axis=1)    # (1, HW + 2*pad_len)
        px = jnp.concatenate([zpad, max_c, zpad], axis=1)

        cmask = cmask_ref[...]                                # (K, HW) column-validity
        acc = jnp.zeros((1, HW), jnp.float32)
        for dj in range(K):
            part = jnp.zeros((1, HW), jnp.float32)
            for di in range(K):
                start = pad_len + (di - P) * W + (dj - P)     # static lane offset
                part = part \
                    + pm[:, start:start + HW] * ws_ref[di * K + dj] \
                    + px[:, start:start + HW] * ws_ref[KK + di * K + dj]
            acc = acc + part * cmask[dj:dj + 1, :]
        gate_s = jax.nn.sigmoid(acc)                          # (1, HW)

        # ---- spatial gating + single HBM write ----
        o_ref[0] = (xg * gate_s).astype(o_ref.dtype)

    return kernel


# ------------------------------------------------------------------ wrapper / forward
def cbam_forward(params, x_nchw):
    """CBAM: x = CAM(x) * x ; return SAM(x) * x.  Input/output are NCHW like PyTorch."""
    w1 = params["w1"].astype(jnp.float32)        # (Cr, C)   fc[0] weight
    w2 = params["w2"].astype(jnp.float32)        # (C, Cr)   fc[2] weight
    w_sam = params["w_sam"].astype(jnp.float32)  # (2, K, K) spatial conv weight
    N, C, H, W = x_nchw.shape
    Cr = w1.shape[0]
    K = int(w_sam.shape[-1])                     # static (from shape, not a traced leaf)
    P = K // 2
    HW = H * W

    x2 = x_nchw.astype(jnp.float32).reshape(N, C, HW)   # free bitcast (no transpose)
    w1t = jnp.transpose(w1)                              # (C, Cr): w1t[c,k] = W1[k,c]
    ws_flat = w_sam.reshape(2 * K * K)                   # SMEM scalar taps

    # Per-dj column-validity masks (static, built with numpy at trace time).
    col = np.tile(np.arange(W), H)                       # (HW,)
    cmask = np.stack(
        [((col + dj - P >= 0) & (col + dj - P < W)).astype(np.float32)
         for dj in range(K)], axis=0)                    # (K, HW)
    cmask = jnp.asarray(cmask)

    kernel = _make_cbam_kernel(H, W, K, C)

    out2 = pl.pallas_call(
        kernel,
        out_shape=jax.ShapeDtypeStruct((N, C, HW), jnp.float32),
        grid=(N,),
        in_specs=[
            pl.BlockSpec((1, C, HW), lambda i: (i, 0, 0)),           # x (whole image)
            pl.BlockSpec((C, Cr), lambda i: (0, 0)),                 # W1^T
            pl.BlockSpec((C, Cr), lambda i: (0, 0)),                 # W2
            pl.BlockSpec((K, HW), lambda i: (0, 0)),                 # column masks
            pl.BlockSpec(memory_space=pltpu.MemorySpace.SMEM),       # 2*K*K scalar taps
        ],
        out_specs=pl.BlockSpec((1, C, HW), lambda i: (i, 0, 0)),
        compiler_params=pltpu.CompilerParams(
            dimension_semantics=("parallel",)),
    )(x2, w1t, w2, cmask, ws_flat)

    return out2.reshape(N, C, H, W).astype(x_nchw.dtype)


# ------------------------------------------------------------------ params & reference
def init_params(key, in_planes, ratio=16, kernel_size=7):
    """Deterministic weights matching the PyTorch module (all bias=False).
    NOTE: only arrays in the pytree (no python ints) so nothing gets traced by jit."""
    k1, k2, k3 = jax.random.split(key, 3)
    cr = max(in_planes // ratio, 1)
    w1 = jax.random.normal(k1, (cr, in_planes), jnp.float32) * (2.0 / in_planes) ** 0.5
    w2 = jax.random.normal(k2, (in_planes, cr), jnp.float32) * (2.0 / cr) ** 0.5
    w_sam = (jax.random.normal(k3, (2, kernel_size, kernel_size), jnp.float32)
             * (2.0 / (2 * kernel_size * kernel_size)) ** 0.5)
    return {"w1": w1, "w2": w2, "w_sam": w_sam}


def cbam_reference(params, x):
    """Pure-JAX reference of the PyTorch CBAM forward (f32, exact contractions)."""
    w1, w2, w_sam = params["w1"], params["w2"], params["w_sam"]
    N, C, H, W = x.shape
    K = int(w_sam.shape[-1])
    P = K // 2
    hi = jax.lax.Precision.HIGHEST
    avg = jnp.mean(x, axis=(2, 3))
    mx = jnp.max(x, axis=(2, 3))

    def fc(p):
        h = jnp.maximum(jnp.einsum("nc,kc->nk", p, w1, precision=hi), 0.0)
        return jnp.einsum("nk,ck->nc", h, w2, precision=hi)

    gate_c = jax.nn.sigmoid(fc(avg) + fc(mx))
    xg = x * gate_c[:, :, None, None]
    stats = jnp.stack([jnp.mean(xg, axis=1), jnp.max(xg, axis=1)], axis=1)  # (N,2,H,W)
    sp = jnp.pad(stats, ((0, 0), (0, 0), (P, P), (P, P)))
    acc = jnp.zeros((N, H, W), x.dtype)
    for c in range(2):
        for di in range(K):
            for dj in range(K):
                acc = acc + sp[:, c, di:di + H, dj:dj + W] * w_sam[c, di, dj]
    return xg * jax.nn.sigmoid(acc)[:, None, :, :]


# ------------------------------------------------------------------ main
if __name__ == "__main__":
    key = jax.random.PRNGKey(0)
    pkey, xkey = jax.random.split(key)

    # Small shapes consistent with the module (ratio=16 requires C >= 16).
    N, C, H, W = 2, 64, 16, 16
    params = init_params(pkey, in_planes=C, ratio=16, kernel_size=7)
    x = jax.random.normal(xkey, (N, C, H, W), jnp.float32)

    out = jax.jit(cbam_forward)(params, x)
    out = jax.block_until_ready(out)

    assert out.shape == (N, C, H, W), out.shape
    assert bool(jnp.all(jnp.isfinite(out)))

    ref = cbam_reference(params, x)
    max_err = float(jnp.max(jnp.abs(out - ref)))
    assert max_err < 2e-3, f"max abs err vs reference: {max_err}"

    print("KERNEL_OK")
</pallas_src>

<mosaic_0001>
module attributes {stable_mosaic.version = 11 : i64} {
  func.func @kernel(%arg0: i32, %arg1: memref<1x64x256xf32, #tpu.memory_space<vmem>>, %arg2: memref<64x4xf32, #tpu.memory_space<vmem>>, %arg3: memref<64x4xf32, #tpu.memory_space<vmem>>, %arg4: memref<7x256xf32, #tpu.memory_space<vmem>>, %arg5: memref<98xf32, #tpu.memory_space<smem>>, %arg6: memref<1x64x256xf32, #tpu.memory_space<vmem>>) attributes {dimension_semantics = [#tpu.dimension_semantics<parallel>], iteration_bounds = array<i64: 2>, scalar_prefetch = 0 : i64, scratch_operands = 0 : i64, tpu.core_type = #tpu.core_type<tc>, window_params = [{transform_indices = @transform_0, window_bounds = array<i64: 1, 64, 256>}, {pipeline_mode = #tpu.pipeline_mode<synchronous>, transform_indices = @transform_1, window_bounds = array<i64: 64, 4>}, {pipeline_mode = #tpu.pipeline_mode<synchronous>, transform_indices = @transform_2, window_bounds = array<i64: 64, 4>}, {pipeline_mode = #tpu.pipeline_mode<synchronous>, transform_indices = @transform_3, window_bounds = array<i64: 7, 256>}, {transform_indices = @transform_4, window_bounds = array<i64: 98>}, {transform_indices = @transform_5, window_bounds = array<i64: 1, 64, 256>}]} {
    %c0 = arith.constant 0 : index
    %c0_0 = arith.constant 0 : index
    %c0_1 = arith.constant 0 : index
    %0 = vector.load %arg1[%c0, %c0_0, %c0_1] : memref<1x64x256xf32, #tpu.memory_space<vmem>>, vector<1x64x256xf32>
    %1 = vector.shape_cast %0 : vector<1x64x256xf32> to vector<64x256xf32>
    %cst = arith.constant dense<0.000000e+00> : vector<64xf32>
    %2 = vector.multi_reduction <add>, %1, %cst [1] : vector<64x256xf32> to vector<64xf32>
    %3 = vector.shape_cast %2 : vector<64xf32> to vector<64x1xf32>
    %cst_2 = arith.constant dense<0xFF800000> : vector<64xf32>
    %4 = vector.multi_reduction <maximumf>, %1, %cst_2 [1] : vector<64x256xf32> to vector<64xf32>
    %5 = vector.shape_cast %4 : vector<64xf32> to vector<64x1xf32>
    %cst_3 = arith.constant 3.906250e-03 : f32
    %6 = vector.broadcast %cst_3 : f32 to vector<64x1xf32>
    %7 = arith.mulf %3, %6 : vector<64x1xf32>
    %c0_4 = arith.constant 0 : index
    %c0_5 = arith.constant 0 : index
    %8 = vector.load %arg2[%c0_4, %c0_5] : memref<64x4xf32, #tpu.memory_space<vmem>>, vector<64x4xf32>
    %9 = vector.broadcast %7 : vector<64x1xf32> to vector<64x4xf32>
    %10 = arith.mulf %8, %9 : vector<64x4xf32>
    %cst_6 = arith.constant dense<0.000000e+00> : vector<4xf32>
    %11 = vector.multi_reduction <add>, %10, %cst_6 [0] : vector<64x4xf32> to vector<4xf32>
    %12 = vector.shape_cast %11 : vector<4xf32> to vector<1x4xf32>
    %cst_7 = arith.constant 0.000000e+00 : f32
    %13 = vector.broadcast %cst_7 : f32 to vector<1x4xf32>
    %14 = arith.maximumf %12, %13 : vector<1x4xf32>
    %c0_8 = arith.constant 0 : index
    %c0_9 = arith.constant 0 : index
    %15 = vector.load %arg3[%c0_8, %c0_9] : memref<64x4xf32, #tpu.memory_space<vmem>>, vector<64x4xf32>
    %16 = vector.broadcast %14 : vector<1x4xf32> to vector<64x4xf32>
    %17 = arith.mulf %15, %16 : vector<64x4xf32>
    %cst_10 = arith.constant dense<0.000000e+00> : vector<64xf32>
    %18 = vector.multi_reduction <add>, %17, %cst_10 [1] : vector<64x4xf32> to vector<64xf32>
    %19 = vector.shape_cast %18 : vector<64xf32> to vector<64x1xf32>
    %c0_11 = arith.constant 0 : index
    %c0_12 = arith.constant 0 : index
    %20 = vector.load %arg2[%c0_11, %c0_12] : memref<64x4xf32, #tpu.memory_space<vmem>>, vector<64x4xf32>
    %21 = vector.broadcast %5 : vector<64x1xf32> to vector<64x4xf32>
    %22 = arith.mulf %20, %21 : vector<64x4xf32>
    %cst_13 = arith.constant dense<0.000000e+00> : vector<4xf32>
    %23 = vector.multi_reduction <add>, %22, %cst_13 [0] : vector<64x4xf32> to vector<4xf32>
    %24 = vector.shape_cast %23 : vector<4xf32> to vector<1x4xf32>
    %cst_14 = arith.constant 0.000000e+00 : f32
    %25 = vector.broadcast %cst_14 : f32 to vector<1x4xf32>
    %26 = arith.maximumf %24, %25 : vector<1x4xf32>
    %c0_15 = arith.constant 0 : index
    %c0_16 = arith.constant 0 : index
    %27 = vector.load %arg3[%c0_15, %c0_16] : memref<64x4xf32, #tpu.memory_space<vmem>>, vector<64x4xf32>
    %28 = vector.broadcast %26 : vector<1x4xf32> to vector<64x4xf32>
    %29 = arith.mulf %27, %28 : vector<64x4xf32>
    %cst_17 = arith.constant dense<0.000000e+00> : vector<64xf32>
    %30 = vector.multi_reduction <add>, %29, %cst_17 [1] : vector<64x4xf32> to vector<64xf32>
    %31 = vector.shape_cast %30 : vector<64xf32> to vector<64x1xf32>
    %32 = arith.addf %19, %31 : vector<64x1xf32>
    %33 = arith.negf %32 : vector<64x1xf32>
    %34 = math.exp %33 : vector<64x1xf32>
    %cst_18 = arith.constant 1.000000e+00 : f32
    %35 = vector.broadcast %cst_18 : f32 to vector<64x1xf32>
    %36 = arith.addf %35, %34 : vector<64x1xf32>
    %37 = arith.divf %35, %36 : vector<64x1xf32>
    %38 = vector.broadcast %37 : vector<64x1xf32> to vector<64x256xf32>
    %39 = arith.mulf %1, %38 : vector<64x256xf32>
    %cst_19 = arith.constant dense<0.000000e+00> : vector<256xf32>
    %40 = vector.multi_reduction <add>, %39, %cst_19 [0] : vector<64x256xf32> to vector<256xf32>
    %41 = vector.shape_cast %40 : vector<256xf32> to vector<1x256xf32>
    %cst_20 = arith.constant 1.562500e-02 : f32
    %42 = vector.broadcast %cst_20 : f32 to vector<1x256xf32>
    %43 = arith.mulf %41, %42 : vector<1x256xf32>
    %cst_21 = arith.constant dense<0xFF800000> : vector<256xf32>
    %44 = vector.multi_reduction <maximumf>, %39, %cst_21 [0] : vector<64x256xf32> to vector<256xf32>
    %45 = vector.shape_cast %44 : vector<256xf32> to vector<1x256xf32>
    %cst_22 = arith.constant 0.000000e+00 : f32
    %46 = vector.broadcast %cst_22 : f32 to vector<1x128xf32>
    %47 = tpu.concatenate %46, %43, %46 in 1 : vector<1x128xf32>, vector<1x256xf32>, vector<1x128xf32> -> vector<1x512xf32>
    %48 = tpu.concatenate %46, %45, %46 in 1 : vector<1x128xf32>, vector<1x256xf32>, vector<1x128xf32> -> vector<1x512xf32>
    %c0_23 = arith.constant 0 : index
    %c0_24 = arith.constant 0 : index
    %49 = vector.load %arg4[%c0_23, %c0_24] : memref<7x256xf32, #tpu.memory_space<vmem>>, vector<7x256xf32>
    %cst_25 = arith.constant 0.000000e+00 : f32
    %50 = vector.broadcast %cst_25 : f32 to vector<1x256xf32>
    %cst_26 = arith.constant 0.000000e+00 : f32
    %51 = vector.broadcast %cst_26 : f32 to vector<1x256xf32>
    %52 = vector.extract_strided_slice %47 {offsets = [0, 77], sizes = [1, 256], strides = [1, 1]} : vector<1x512xf32> to vector<1x256xf32>
    %c0_27 = arith.constant 0 : index
    %53 = memref.load %arg5[%c0_27] : memref<98xf32, #tpu.memory_space<smem>>
    %54 = vector.broadcast %53 : f32 to vector<1x256xf32>
    %55 = arith.mulf %52, %54 : vector<1x256xf32>
    %56 = arith.addf %51, %55 : vector<1x256xf32>
    %57 = vector.extract_strided_slice %48 {offsets = [0, 77], sizes = [1, 256], strides = [1, 1]} : vector<1x512xf32> to vector<1x256xf32>
    %c49 = arith.constant 49 : index
    %58 = memref.load %arg5[%c49] : memref<98xf32, #tpu.memory_space<smem>>
    %59 = vector.broadcast %58 : f32 to vector<1x256xf32>
    %60 = arith.mulf %57, %59 : vector<1x256xf32>
    %61 = arith.addf %56, %60 : vector<1x256xf32>
    %62 = vector.extract_strided_slice %47 {offsets = [0, 93], sizes = [1, 256], strides = [1, 1]} : vector<1x512xf32> to vector<1x256xf32>
    %c7 = arith.constant 7 : index
    %63 = memref.load %arg5[%c7] : memref<98xf32, #tpu.memory_space<smem>>
    %64 = vector.broadcast %63 : f32 to vector<1x256xf32>
    %65 = arith.mulf %62, %64 : vector<1x256xf32>
    %66 = arith.addf %61, %65 : vector<1x256xf32>
    %67 = vector.extract_strided_slice %48 {offsets = [0, 93], sizes = [1, 256], strides = [1, 1]} : vector<1x512xf32> to vector<1x256xf32>
    %c56 = arith.constant 56 : index
    %68 = memref.load %arg5[%c56] : memref<98xf32, #tpu.memory_space<smem>>
    %69 = vector.broadcast %68 : f32 to vector<1x256xf32>
    %70 = arith.mulf %67, %69 : vector<1x256xf32>
    %71 = arith.addf %66, %70 : vector<1x256xf32>
    %72 = vector.extract_strided_slice %47 {offsets = [0, 109], sizes = [1, 256], strides = [1, 1]} : vector<1x512xf32> to vector<1x256xf32>
    %c14 = arith.constant 14 : index
    %73 = memref.load %arg5[%c14] : memref<98xf32, #tpu.memory_space<smem>>
    %74 = vector.broadcast %73 : f32 to vector<1x256xf32>
    %75 = arith.mulf %72, %74 : vector<1x256xf32>
    %76 = arith.addf %71, %75 : vector<1x256xf32>
    %77 = vector.extract_strided_slice %48 {offsets = [0, 109], sizes = [1, 256], strides = [1, 1]} : vector<1x512xf32> to vector<1x256xf32>
    %c63 = arith.constant 63 : index
    %78 = memref.load %arg5[%c63] : memref<98xf32, #tpu.memory_space<smem>>
    %79 = vector.broadcast %78 : f32 to vector<1x256xf32>
    %80 = arith.mulf %77, %79 : vector<1x256xf32>
    %81 = arith.addf %76, %80 : vector<1x256xf32>
    %82 = vector.extract_strided_slice %47 {offsets = [0, 125], sizes = [1, 256], strides = [1, 1]} : vector<1x512xf32> to vector<1x256xf32>
    %c21 = arith.constant 21 : index
    %83 = memref.load %arg5[%c21] : memref<98xf32, #tpu.memory_space<smem>>
    %84 = vector.broadcast %83 : f32 to vector<1x256xf32>
    %85 = arith.mulf %82, %84 : vector<1x256xf32>
    %86 = arith.addf %81, %85 : vector<1x256xf32>
    %87 = vector.extract_strided_slice %48 {offsets = [0, 125], sizes = [1, 256], strides = [1, 1]} : vector<1x512xf32> to vector<1x256xf32>
    %c70 = arith.constant 70 : index
    %88 = memref.load %arg5[%c70] : memref<98xf32, #tpu.memory_space<smem>>
    %89 = vector.broadcast %88 : f32 to vector<1x256xf32>
    %90 = arith.mulf %87, %89 : vector<1x256xf32>
    %91 = arith.addf %86, %90 : vector<1x256xf32>
    %92 = vector.extract_strided_slice %47 {offsets = [0, 141], sizes = [1, 256], strides = [1, 1]} : vector<1x512xf32> to vector<1x256xf32>
    %c28 = arith.constant 28 : index
    %93 = memref.load %arg5[%c28] : memref<98xf32, #tpu.memory_space<smem>>
    %94 = vector.broadcast %93 : f32 to vector<1x256xf32>
    %95 = arith.mulf %92, %94 : vector<1x256xf32>
    %96 = arith.addf %91, %95 : vector<1x256xf32>
    %97 = vector.extract_strided_slice %48 {offsets = [0, 141], sizes = [1, 256], strides = [1, 1]} : vector<1x512xf32> to vector<1x256xf32>
    %c77 = arith.constant 77 : index
    %98 = memref.load %arg5[%c77] : memref<98xf32, #tpu.memory_space<smem>>
    %99 = vector.broadcast %98 : f32 to vector<1x256xf32>
    %100 = arith.mulf %97, %99 : vector<1x256xf32>
    %101 = arith.addf %96, %100 : vector<1x256xf32>
    %102 = vector.extract_strided_slice %47 {offsets = [0, 157], sizes = [1, 256], strides = [1, 1]} : vector<1x512xf32> to vector<1x256xf32>
    %c35 = arith.constant 35 : index
    %103 = memref.load %arg5[%c35] : memref<98xf32, #tpu.memory_space<smem>>
    %104 = vector.broadcast %103 : f32 to vector<1x256xf32>
    %105 = arith.mulf %102, %104 : vector<1x256xf32>
    %106 = arith.addf %101, %105 : vector<1x256xf32>
    %107 = vector.extract_strided_slice %48 {offsets = [0, 157], sizes = [1, 256], strides = [1, 1]} : vector<1x512xf32> to vector<1x256xf32>
    %c84 = arith.constant 84 : index
    %108 = memref.load %arg5[%c84] : memref<98xf32, #tpu.memory_space<smem>>
    %109 = vector.broadcast %108 : f32 to vector<1x256xf32>
    %110 = arith.mulf %107, %109 : vector<1x256xf32>
    %111 = arith.addf %106, %110 : vector<1x256xf32>
    %112 = vector.extract_strided_slice %47 {offsets = [0, 173], sizes = [1, 256], strides = [1, 1]} : vector<1x512xf32> to vector<1x256xf32>
    %c42 = arith.constant 42 : index
    %113 = memref.load %arg5[%c42] : memref<98xf32, #tpu.memory_space<smem>>
    %114 = vector.broadcast %113 : f32 to vector<1x256xf32>
    %115 = arith.mulf %112, %114 : vector<1x256xf32>
    %116 = arith.addf %111, %115 : vector<1x256xf32>
    %117 = vector.extract_strided_slice %48 {offsets = [0, 173], sizes = [1, 256], strides = [1, 1]} : vector<1x512xf32> to vector<1x256xf32>
    %c91 = arith.constant 91 : index
    %118 = memref.load %arg5[%c91] : memref<98xf32, #tpu.memory_space<smem>>
    %119 = vector.broadcast %118 : f32 to vector<1x256xf32>
    %120 = arith.mulf %117, %119 : vector<1x256xf32>
    %121 = arith.addf %116, %120 : vector<1x256xf32>
    %122 = vector.extract_strided_slice %49 {offsets = [0, 0], sizes = [1, 256], strides = [1, 1]} : vector<7x256xf32> to vector<1x256xf32>
    %123 = arith.mulf %121, %122 : vector<1x256xf32>
    %124 = arith.addf %50, %123 : vector<1x256xf32>
    %cst_28 = arith.constant 0.000000e+00 : f32
    %125 = vector.broadcast %cst_28 : f32 to vector<1x256xf32>
    %126 = vector.extract_strided_slice %47 {offsets = [0, 78], sizes = [1, 256], strides = [1, 1]} : vector<1x512xf32> to vector<1x256xf32>
    %c1 = arith.constant 1 : index
    %127 = memref.load %arg5[%c1] : memref<98xf32, #tpu.memory_space<smem>>
    %128 = vector.broadcast %127 : f32 to vector<1x256xf32>
    %129 = arith.mulf %126, %128 : vector<1x256xf32>
    %130 = arith.addf %125, %129 : vector<1x256xf32>
    %131 = vector.extract_strided_slice %48 {offsets = [0, 78], sizes = [1, 256], strides = [1, 1]} : vector<1x512xf32> to vector<1x256xf32>
    %c50 = arith.constant 50 : index
    %132 = memref.load %arg5[%c50] : memref<98xf32, #tpu.memory_space<smem>>
    %133 = vector.broadcast %132 : f32 to vector<1x256xf32>
    %134 = arith.mulf %131, %133 : vector<1x256xf32>
    %135 = arith.addf %130, %134 : vector<1x256xf32>
    %136 = vector.extract_strided_slice %47 {offsets = [0, 94], sizes = [1, 256], strides = [1, 1]} : vector<1x512xf32> to vector<1x256xf32>
    %c8 = arith.constant 8 : index
    %137 = memref.load %arg5[%c8] : memref<98xf32, #tpu.memory_space<smem>>
    %138 = vector.broadcast %137 : f32 to vector<1x256xf32>
    %139 = arith.mulf %136, %138 : vector<1x256xf32>
    %140 = arith.addf %135, %139 : vector<1x256xf32>
    %141 = vector.extract_strided_slice %48 {offsets = [0, 94], sizes = [1, 256], strides = [1, 1]} : vector<1x512xf32> to vector<1x256xf32>
    %c57 = arith.constant 57 : index
    %142 = memref.load %arg5[%c57] : memref<98xf32, #tpu.memory_space<smem>>
    %143 = vector.broadcast %142 : f32 to vector<1x256xf32>
    %144 = arith.mulf %141, %143 : vector<1x256xf32>
    %145 = arith.addf %140, %144 : vector<1x256xf32>
    %146 = vector.extract_strided_slice %47 {offsets = [0, 110], sizes = [1, 256], strides = [1, 1]} : vector<1x512xf32> to vector<1x256xf32>
    %c15 = arith.constant 15 : index
    %147 = memref.load %arg5[%c15] : memref<98xf32, #tpu.memory_space<smem>>
    %148 = vector.broadcast %147 : f32 to vector<1x256xf32>
    %149 = arith.mulf %146, %148 : vector<1x256xf32>
    %150 = arith.addf %145, %149 : vector<1x256xf32>
    %151 = vector.extract_strided_slice %48 {offsets = [0, 110], sizes = [1, 256], strides = [1, 1]} : vector<1x512xf32> to vector<1x256xf32>
    %c64 = arith.constant 64 : index
    %152 = memref.load %arg5[%c64] : memref<98xf32, #tpu.memory_space<smem>>
    %153 = vector.broadcast %152 : f32 to vector<1x256xf32>
    %154 = arith.mulf %151, %153 : vector<1x256xf32>
    %155 = arith.addf %150, %154 : vector<1x256xf32>
    %156 = vector.extract_strided_slice %47 {offsets = [0, 126], sizes = [1, 256], strides = [1, 1]} : vector<1x512xf32> to vector<1x256xf32>
    %c22 = arith.constant 22 : index
    %157 = memref.load %arg5[%c22] : memref<98xf32, #tpu.memory_space<smem>>
    %158 = vector.broadcast %157 : f32 to vector<1x256xf32>
    %159 = arith.mulf %156, %158 : vector<1x256xf32>
    %160 = arith.addf %155, %159 : vector<1x256xf32>
    %161 = vector.extract_strided_slice %48 {offsets = [0, 126], sizes = [1, 256], strides = [1, 1]} : vector<1x512xf32> to vector<1x256xf32>
    %c71 = arith.constant 71 : index
    %162 = memref.load %arg5[%c71] : memref<98xf32, #tpu.memory_space<smem>>
    %163 = vector.broadcast %162 : f32 to vector<1x256xf32>
    %164 = arith.mulf %161, %163 : vector<1x256xf32>
    %165 = arith.addf %160, %164 : vector<1x256xf32>
    %166 = vector.extract_strided_slice %47 {offsets = [0, 142], sizes = [1, 256], strides = [1, 1]} : vector<1x512xf32> to vector<1x256xf32>
    %c29 = arith.constant 29 : index
    %167 = memref.load %arg5[%c29] : memref<98xf32, #tpu.memory_space<smem>>
    %168 = vector.broadcast %167 : f32 to vector<1x256xf32>
    %169 = arith.mulf %166, %168 : vector<1x256xf32>
    %170 = arith.addf %165, %169 : vector<1x256xf32>
    %171 = vector.extract_strided_slice %48 {offsets = [0, 142], sizes = [1, 256], strides = [1, 1]} : vector<1x512xf32> to vector<1x256xf32>
    %c78 = arith.constant 78 : index
    %172 = memref.load %arg5[%c78] : memref<98xf32, #tpu.memory_space<smem>>
    %173 = vector.broadcast %172 : f32 to vector<1x256xf32>
    %174 = arith.mulf %171, %173 : vector<1x256xf32>
    %175 = arith.addf %170, %174 : vector<1x256xf32>
    %176 = vector.extract_strided_slice %47 {offsets = [0, 158], sizes = [1, 256], strides = [1, 1]} : vector<1x512xf32> to vector<1x256xf32>
    %c36 = arith.constant 36 : index
    %177 = memref.load %arg5[%c36] : memref<98xf32, #tpu.memory_space<smem>>
    %178 = vector.broadcast %177 : f32 to vector<1x256xf32>
    %179 = arith.mulf %176, %178 : vector<1x256xf32>
    %180 = arith.addf %175, %179 : vector<1x256xf32>
    %181 = vector.extract_strided_slice %48 {offsets = [0, 158], sizes = [1, 256], strides = [1, 1]} : vector<1x512xf32> to vector<1x256xf32>
    %c85 = arith.constant 85 : index
    %182 = memref.load %arg5[%c85] : memref<98xf32, #tpu.memory_space<smem>>
    %183 = vector.broadcast %182 : f32 to vector<1x256xf32>
    %184 = arith.mulf %181, %183 : vector<1x256xf32>
    %185 = arith.addf %180, %184 : vector<1x256xf32>
    %186 = vector.extract_strided_slice %47 {offsets = [0, 174], sizes = [1, 256], strides = [1, 1]} : vector<1x512xf32> to vector<1x256xf32>
    %c43 = arith.constant 43 : index
    %187 = memref.load %arg5[%c43] : memref<98xf32, #tpu.memory_space<smem>>
    %188 = vector.broadcast %187 : f32 to vector<1x256xf32>
    %189 = arith.mulf %186, %188 : vector<1x256xf32>
    %190 = arith.addf %185, %189 : vector<1x256xf32>
    %191 = vector.extract_strided_slice %48 {offsets = [0, 174], sizes = [1, 256], strides = [1, 1]} : vector<1x512xf32> to vector<1x256xf32>
    %c92 = arith.constant 92 : index
    %192 = memref.load %arg5[%c92] : memref<98xf32, #tpu.memory_space<smem>>
    %193 = vector.broadcast %192 : f32 to vector<1x256xf32>
    %194 = arith.mulf %191, %193 : vector<1x256xf32>
    %195 = arith.addf %190, %194 : vector<1x256xf32>
    %196 = vector.extract_strided_slice %49 {offsets = [1, 0], sizes = [1, 256], strides = [1, 1]} : vector<7x256xf32> to vector<1x256xf32>
    %197 = arith.mulf %195, %196 : vector<1x256xf32>
    %198 = arith.addf %124, %197 : vector<1x256xf32>
    %cst_29 = arith.constant 0.000000e+00 : f32
    %199 = vector.broadcast %cst_29 : f32 to vector<1x256xf32>
    %200 = vector.extract_strided_slice %47 {offsets = [0, 79], sizes = [1, 256], strides = [1, 1]} : vector<1x512xf32> to vector<1x256xf32>
    %c2 = arith.constant 2 : index
    %201 = memref.load %arg5[%c2] : memref<98xf32, #tpu.memory_space<smem>>
    %202 = vector.broadcast %201 : f32 to vector<1x256xf32>
    %203 = arith.mulf %200, %202 : vector<1x256xf32>
    %204 = arith.addf %199, %203 : vector<1x256xf32>
    %205 = vector.extract_strided_slice %48 {offsets = [0, 79], sizes = [1, 256], strides = [1, 1]} : vector<1x512xf32> to vector<1x256xf32>
    %c51 = arith.constant 51 : index
    %206 = memref.load %arg5[%c51] : memref<98xf32, #tpu.memory_space<smem>>
    %207 = vector.broadcast %206 : f32 to vector<1x256xf32>
    %208 = arith.mulf %205, %207 : vector<1x256xf32>
    %209 = arith.addf %204, %208 : vector<1x256xf32>
    %210 = vector.extract_strided_slice %47 {offsets = [0, 95], sizes = [1, 256], strides = [1, 1]} : vector<1x512xf32> to vector<1x256xf32>
    %c9 = arith.constant 9 : index
    %211 = memref.load %arg5[%c9] : memref<98xf32, #tpu.memory_space<smem>>
    %212 = vector.broadcast %211 : f32 to vector<1x256xf32>
    %213 = arith.mulf %210, %212 : vector<1x256xf32>
    %214 = arith.addf %209, %213 : vector<1x256xf32>
    %215 = vector.extract_strided_slice %48 {offsets = [0, 95], sizes = [1, 256], strides = [1, 1]} : vector<1x512xf32> to vector<1x256xf32>
    %c58 = arith.constant 58 : index
    %216 = memref.load %arg5[%c58] : memref<98xf32, #tpu.memory_space<smem>>
    %217 = vector.broadcast %216 : f32 to vector<1x256xf32>
    %218 = arith.mulf %215, %217 : vector<1x256xf32>
    %219 = arith.addf %214, %218 : vector<1x256xf32>
    %220 = vector.extract_strided_slice %47 {offsets = [0, 111], sizes = [1, 256], strides = [1, 1]} : vector<1x512xf32> to vector<1x256xf32>
    %c16 = arith.constant 16 : index
    %221 = memref.load %arg5[%c16] : memref<98xf32, #tpu.memory_space<smem>>
    %222 = vector.broadcast %221 : f32 to vector<1x256xf32>
    %223 = arith.mulf %220, %222 : vector<1x256xf32>
    %224 = arith.addf %219, %223 : vector<1x256xf32>
    %225 = vector.extract_strided_slice %48 {offsets = [0, 111], sizes = [1, 256], strides = [1, 1]} : vector<1x512xf32> to vector<1x256xf32>
    %c65 = arith.constant 65 : index
    %226 = memref.load %arg5[%c65] : memref<98xf32, #tpu.memory_space<smem>>
    %227 = vector.broadcast %226 : f32 to vector<1x256xf32>
    %228 = arith.mulf %225, %227 : vector<1x256xf32>
    %229 = arith.addf %224, %228 : vector<1x256xf32>
    %230 = vector.extract_strided_slice %47 {offsets = [0, 127], sizes = [1, 256], strides = [1, 1]} : vector<1x512xf32> to vector<1x256xf32>
    %c23 = arith.constant 23 : index
    %231 = memref.load %arg5[%c23] : memref<98xf32, #tpu.memory_space<smem>>
    %232 = vector.broadcast %231 : f32 to vector<1x256xf32>
    %233 = arith.mulf %230, %232 : vector<1x256xf32>
    %234 = arith.addf %229, %233 : vector<1x256xf32>
    %235 = vector.extract_strided_slice %48 {offsets = [0, 127], sizes = [1, 256], strides = [1, 1]} : vector<1x512xf32> to vector<1x256xf32>
    %c72 = arith.constant 72 : index
    %236 = memref.load %arg5[%c72] : memref<98xf32, #tpu.memory_space<smem>>
    %237 = vector.broadcast %236 : f32 to vector<1x256xf32>
    %238 = arith.mulf %235, %237 : vector<1x256xf32>
    %239 = arith.addf %234, %238 : vector<1x256xf32>
    %240 = vector.extract_strided_slice %47 {offsets = [0, 143], sizes = [1, 256], strides = [1, 1]} : vector<1x512xf32> to vector<1x256xf32>
    %c30 = arith.constant 30 : index
    %241 = memref.load %arg5[%c30] : memref<98xf32, #tpu.memory_space<smem>>
    %242 = vector.broadcast %241 : f32 to vector<1x256xf32>
    %243 = arith.mulf %240, %242 : vector<1x256xf32>
    %244 = arith.addf %239, %243 : vector<1x256xf32>
    %245 = vector.extract_strided_slice %48 {offsets = [0, 143], sizes = [1, 256], strides = [1, 1]} : vector<1x512xf32> to vector<1x256xf32>
    %c79 = arith.constant 79 : index
    %246 = memref.load %arg5[%c79] : memref<98xf32, #tpu.memory_space<smem>>
    %247 = vector.broadcast %246 : f32 to vector<1x256xf32>
    %248 = arith.mulf %245, %247 : vector<1x256xf32>
    %249 = arith.addf %244, %248 : vector<1x256xf32>
    %250 = vector.extract_strided_slice %47 {offsets = [0, 159], sizes = [1, 256], strides = [1, 1]} : vector<1x512xf32> to vector<1x256xf32>
    %c37 = arith.constant 37 : index
    %251 = memref.load %arg5[%c37] : memref<98xf32, #tpu.memory_space<smem>>
    %252 = vector.broadcast %251 : f32 to vector<1x256xf32>
    %253 = arith.mulf %250, %252 : vector<1x256xf32>
    %254 = arith.addf %249, %253 : vector<1x256xf32>
    %255 = vector.extract_strided_slice %48 {offsets = [0, 159], sizes = [1, 256], strides = [1, 1]} : vector<1x512xf32> to vector<1x256xf32>
    %c86 = arith.constant 86 : index
    %256 = memref.load %arg5[%c86] : memref<98xf32, #tpu.memory_space<smem>>
    %257 = vector.broadcast %256 : f32 to vector<1x256xf32>
    %258 = arith.mulf %255, %257 : vector<1x256xf32>
    %259 = arith.addf %254, %258 : vector<1x256xf32>
    %260 = vector.extract_strided_slice %47 {offsets = [0, 175], sizes = [1, 256], strides = [1, 1]} : vector<1x512xf32> to vector<1x256xf32>
    %c44 = arith.constant 44 : index
    %261 = memref.load %arg5[%c44] : memref<98xf32, #tpu.memory_space<smem>>
    %262 = vector.broadcast %261 : f32 to vector<1x256xf32>
    %263 = arith.mulf %260, %262 : vector<1x256xf32>
    %264 = arith.addf %259, %263 : vector<1x256xf32>
    %265 = vector.extract_strided_slice %48 {offsets = [0, 175], sizes = [1, 256], strides = [1, 1]} : vector<1x512xf32> to vector<1x256xf32>
    %c93 = arith.constant 93 : index
    %266 = memref.load %arg5[%c93] : memref<98xf32, #tpu.memory_space<smem>>
    %267 = vector.broadcast %266 : f32 to vector<1x256xf32>
    %268 = arith.mulf %265, %267 : vector<1x256xf32>
    %269 = arith.addf %264, %268 : vector<1x256xf32>
    %270 = vector.extract_strided_slice %49 {offsets = [2, 0], sizes = [1, 256], strides = [1, 1]} : vector<7x256xf32> to vector<1x256xf32>
    %271 = arith.mulf %269, %270 : vector<1x256xf32>
    %272 = arith.addf %198, %271 : vector<1x256xf32>
    %cst_30 = arith.constant 0.000000e+00 : f32
    %273 = vector.broadcast %cst_30 : f32 to vector<1x256xf32>
    %274 = vector.extract_strided_slice %47 {offsets = [0, 80], sizes = [1, 256], strides = [1, 1]} : vector<1x512xf32> to vector<1x256xf32>
    %c3 = arith.constant 3 : index
    %275 = memref.load %arg5[%c3] : memref<98xf32, #tpu.memory_space<smem>>
    %276 = vector.broadcast %275 : f32 to vector<1x256xf32>
    %277 = arith.mulf %274, %276 : vector<1x256xf32>
    %278 = arith.addf %273, %277 : vector<1x256xf32>
    %279 = vector.extract_strided_slice %48 {offsets = [0, 80], sizes = [1, 256], strides = [1, 1]} : vector<1x512xf32> to vector<1x256xf32>
    %c52 = arith.constant 52 : index
    %280 = memref.load %arg5[%c52] : memref<98xf32, #tpu.memory_space<smem>>
    %281 = vector.broadcast %280 : f32 to vector<1x256xf32>
    %282 = arith.mulf %279, %281 : vector<1x256xf32>
    %283 = arith.addf %278, %282 : vector<1x256xf32>
    %284 = vector.extract_strided_slice %47 {offsets = [0, 96], sizes = [1, 256], strides = [1, 1]} : vector<1x512xf32> to vector<1x256xf32>
    %c10 = arith.constant 10 : index
    %285 = memref.load %arg5[%c10] : memref<98xf32, #tpu.memory_space<smem>>
    %286 = vector.broadcast %285 : f32 to vector<1x256xf32>
    %287 = arith.mulf %284, %286 : vector<1x256xf32>
    %288 = arith.addf %283, %287 : vector<1x256xf32>
    %289 = vector.extract_strided_slice %48 {offsets = [0, 96], sizes = [1, 256], strides = [1, 1]} : vector<1x512xf32> to vector<1x256xf32>
    %c59 = arith.constant 59 : index
    %290 = memref.load %arg5[%c59] : memref<98xf32, #tpu.memory_space<smem>>
    %291 = vector.broadcast %290 : f32 to vector<1x256xf32>
    %292 = arith.mulf %289, %291 : vector<1x256xf32>
    %293 = arith.addf %288, %292 : vector<1x256xf32>
    %294 = vector.extract_strided_slice %47 {offsets = [0, 112], sizes = [1, 256], strides = [1, 1]} : vector<1x512xf32> to vector<1x256xf32>
    %c17 = arith.constant 17 : index
    %295 = memref.load %arg5[%c17] : memref<98xf32, #tpu.memory_space<smem>>
    %296 = vector.broadcast %295 : f32 to vector<1x256xf32>
    %297 = arith.mulf %294, %296 : vector<1x256xf32>
    %298 = arith.addf %293, %297 : vector<1x256xf32>
    %299 = vector.extract_strided_slice %48 {offsets = [0, 112], sizes = [1, 256], strides = [1, 1]} : vector<1x512xf32> to vector<1x256xf32>
    %c66 = arith.constant 66 : index
    %300 = memref.load %arg5[%c66] : memref<98xf32, #tpu.memory_space<smem>>
    %301 = vector.broadcast %300 : f32 to vector<1x256xf32>
    %302 = arith.mulf %299, %301 : vector<1x256xf32>
    %303 = arith.addf %298, %302 : vector<1x256xf32>
    %304 = vector.extract_strided_slice %47 {offsets = [0, 128], sizes = [1, 256], strides = [1, 1]} : vector<1x512xf32> to vector<1x256xf32>
    %c24 = arith.constant 24 : index
    %305 = memref.load %arg5[%c24] : memref<98xf32, #tpu.memory_space<smem>>
    %306 = vector.broadcast %305 : f32 to vector<1x256xf32>
    %307 = arith.mulf %304, %306 : vector<1x256xf32>
    %308 = arith.addf %303, %307 : vector<1x256xf32>
    %309 = vector.extract_strided_slice %48 {offsets = [0, 128], sizes = [1, 256], strides = [1, 1]} : vector<1x512xf32> to vector<1x256xf32>
    %c73 = arith.constant 73 : index
    %310 = memref.load %arg5[%c73] : memref<98xf32, #tpu.memory_space<smem>>
    %311 = vector.broadcast %310 : f32 to vector<1x256xf32>
    %312 = arith.mulf %309, %311 : vector<1x256xf32>
    %313 = arith.addf %308, %312 : vector<1x256xf32>
    %314 = vector.extract_strided_slice %47 {offsets = [0, 144], sizes = [1, 256], strides = [1, 1]} : vector<1x512xf32> to vector<1x256xf32>
    %c31 = arith.constant 31 : index
    %315 = memref.load %arg5[%c31] : memref<98xf32, #tpu.memory_space<smem>>
    %316 = vector.broadcast %315 : f32 to vector<1x256xf32>
    %317 = arith.mulf %314, %316 : vector<1x256xf32>
    %318 = arith.addf %313, %317 : vector<1x256xf32>
    %319 = vector.extract_strided_slice %48 {offsets = [0, 144], sizes = [1, 256], strides = [1, 1]} : vector<1x512xf32> to vector<1x256xf32>
    %c80 = arith.constant 80 : index
    %320 = memref.load %arg5[%c80] : memref<98xf32, #tpu.memory_space<smem>>
    %321 = vector.broadcast %320 : f32 to vector<1x256xf32>
    %322 = arith.mulf %319, %321 : vector<1x256xf32>
    %323 = arith.addf %318, %322 : vector<1x256xf32>
    %324 = vector.extract_strided_slice %47 {offsets = [0, 160], sizes = [1, 256], strides = [1, 1]} : vector<1x512xf32> to vector<1x256xf32>
    %c38 = arith.constant 38 : index
    %325 = memref.load %arg5[%c38] : memref<98xf32, #tpu.memory_space<smem>>
    %326 = vector.broadcast %325 : f32 to vector<1x256xf32>
    %327 = arith.mulf %324, %326 : vector<1x256xf32>
    %328 = arith.addf %323, %327 : vector<1x256xf32>
    %329 = vector.extract_strided_slice %48 {offsets = [0, 160], sizes = [1, 256], strides = [1, 1]} : vector<1x512xf32> to vector<1x256xf32>
    %c87 = arith.constant 87 : index
    %330 = memref.load %arg5[%c87] : memref<98xf32, #tpu.memory_space<smem>>
    %331 = vector.broadcast %330 : f32 to vector<1x256xf32>
    %332 = arith.mulf %329, %331 : vector<1x256xf32>
    %333 = arith.addf %328, %332 : vector<1x256xf32>
    %334 = vector.extract_strided_slice %47 {offsets = [0, 176], sizes = [1, 256], strides = [1, 1]} : vector<1x512xf32> to vector<1x256xf32>
    %c45 = arith.constant 45 : index
    %335 = memref.load %arg5[%c45] : memref<98xf32, #tpu.memory_space<smem>>
    %336 = vector.broadcast %335 : f32 to vector<1x256xf32>
    %337 = arith.mulf %334, %336 : vector<1x256xf32>
    %338 = arith.addf %333, %337 : vector<1x256xf32>
    %339 = vector.extract_strided_slice %48 {offsets = [0, 176], sizes = [1, 256], strides = [1, 1]} : vector<1x512xf32> to vector<1x256xf32>
    %c94 = arith.constant 94 : index
    %340 = memref.load %arg5[%c94] : memref<98xf32, #tpu.memory_space<smem>>
    %341 = vector.broadcast %340 : f32 to vector<1x256xf32>
    %342 = arith.mulf %339, %341 : vector<1x256xf32>
    %343 = arith.addf %338, %342 : vector<1x256xf32>
    %344 = vector.extract_strided_slice %49 {offsets = [3, 0], sizes = [1, 256], strides = [1, 1]} : vector<7x256xf32> to vector<1x256xf32>
    %345 = arith.mulf %343, %344 : vector<1x256xf32>
    %346 = arith.addf %272, %345 : vector<1x256xf32>
    %cst_31 = arith.constant 0.000000e+00 : f32
    %347 = vector.broadcast %cst_31 : f32 to vector<1x256xf32>
    %348 = vector.extract_strided_slice %47 {offsets = [0, 81], sizes = [1, 256], strides = [1, 1]} : vector<1x512xf32> to vector<1x256xf32>
    %c4 = arith.constant 4 : index
    %349 = memref.load %arg5[%c4] : memref<98xf32, #tpu.memory_space<smem>>
    %350 = vector.broadcast %349 : f32 to vector<1x256xf32>
    %351 = arith.mulf %348, %350 : vector<1x256xf32>
    %352 = arith.addf %347, %351 : vector<1x256xf32>
    %353 = vector.extract_strided_slice %48 {offsets = [0, 81], sizes = [1, 256], strides = [1, 1]} : vector<1x512xf32> to vector<1x256xf32>
    %c53 = arith.constant 53 : index
    %354 = memref.load %arg5[%c53] : memref<98xf32, #tpu.memory_space<smem>>
    %355 = vector.broadcast %354 : f32 to vector<1x256xf32>
    %356 = arith.mulf %353, %355 : vector<1x256xf32>
    %357 = arith.addf %352, %356 : vector<1x256xf32>
    %358 = vector.extract_strided_slice %47 {offsets = [0, 97], sizes = [1, 256], strides = [1, 1]} : vector<1x512xf32> to vector<1x256xf32>
    %c11 = arith.constant 11 : index
    %359 = memref.load %arg5[%c11] : memref<98xf32, #tpu.memory_space<smem>>
    %360 = vector.broadcast %359 : f32 to vector<1x256xf32>
    %361 = arith.mulf %358, %360 : vector<1x256xf32>
    %362 = arith.addf %357, %361 : vector<1x256xf32>
    %363 = vector.extract_strided_slice %48 {offsets = [0, 97], sizes = [1, 256], strides = [1, 1]} : vector<1x512xf32> to vector<1x256xf32>
    %c60 = arith.constant 60 : index
    %364 = memref.load %arg5[%c60] : memref<98xf32, #tpu.memory_space<smem>>
    %365 = vector.broadcast %364 : f32 to vector<1x256xf32>
    %366 = arith.mulf %363, %365 : vector<1x256xf32>
    %367 = arith.addf %362, %366 : vector<1x256xf32>
    %368 = vector.extract_strided_slice %47 {offsets = [0, 113], sizes = [1, 256], strides = [1, 1]} : vector<1x512xf32> to vector<1x256xf32>
    %c18 = arith.constant 18 : index
    %369 = memref.load %arg5[%c18] : memref<98xf32, #tpu.memory_space<smem>>
    %370 = vector.broadcast %369 : f32 to vector<1x256xf32>
    %371 = arith.mulf %368, %370 : vector<1x256xf32>
    %372 = arith.addf %367, %371 : vector<1x256xf32>
    %373 = vector.extract_strided_slice %48 {offsets = [0, 113], sizes = [1, 256], strides = [1, 1]} : vector<1x512xf32> to vector<1x256xf32>
    %c67 = arith.constant 67 : index
    %374 = memref.load %arg5[%c67] : memref<98xf32, #tpu.memory_space<smem>>
    %375 = vector.broadcast %374 : f32 to vector<1x256xf32>
    %376 = arith.mulf %373, %375 : vector<1x256xf32>
    %377 = arith.addf %372, %376 : vector<1x256xf32>
    %378 = vector.extract_strided_slice %47 {offsets = [0, 129], sizes = [1, 256], strides = [1, 1]} : vector<1x512xf32> to vector<1x256xf32>
    %c25 = arith.constant 25 : index
    %379 = memref.load %arg5[%c25] : memref<98xf32, #tpu.memory_space<smem>>
    %380 = vector.broadcast %379 : f32 to vector<1x256xf32>
    %381 = arith.mulf %378, %380 : vector<1x256xf32>
    %382 = arith.addf %377, %381 : vector<1x256xf32>
    %383 = vector.extract_strided_slice %48 {offsets = [0, 129], sizes = [1, 256], strides = [1, 1]} : vector<1x512xf32> to vector<1x256xf32>
    %c74 = arith.constant 74 : index
    %384 = memref.load %arg5[%c74] : memref<98xf32, #tpu.memory_space<smem>>
    %385 = vector.broadcast %384 : f32 to vector<1x256xf32>
    %386 = arith.mulf %383, %385 : vector<1x256xf32>
    %387 = arith.addf %382, %386 : vector<1x256xf32>
    %388 = vector.extract_strided_slice %47 {offsets = [0, 145], sizes = [1, 256], strides = [1, 1]} : vector<1x512xf32> to vector<1x256xf32>
    %c32 = arith.constant 32 : index
    %389 = memref.load %arg5[%c32] : memref<98xf32, #tpu.memory_space<smem>>
    %390 = vector.broadcast %389 : f32 to vector<1x256xf32>
    %391 = arith.mulf %388, %390 : vector<1x256xf32>
    %392 = arith.addf %387, %391 : vector<1x256xf32>
    %393 = vector.extract_strided_slice %48 {offsets = [0, 145], sizes = [1, 256], strides = [1, 1]} : vector<1x512xf32> to vector<1x256xf32>
    %c81 = arith.constant 81 : index
    %394 = memref.load %arg5[%c81] : memref<98xf32, #tpu.memory_space<smem>>
    %395 = vector.broadcast %394 : f32 to vector<1x256xf32>
    %396 = arith.mulf %393, %395 : vector<1x256xf32>
    %397 = arith.addf %392, %396 : vector<1x256xf32>
    %398 = vector.extract_strided_slice %47 {offsets = [0, 161], sizes = [1, 256], strides = [1, 1]} : vector<1x512xf32> to vector<1x256xf32>
    %c39 = arith.constant 39 : index
    %399 = memref.load %arg5[%c39] : memref<98xf32, #tpu.memory_space<smem>>
    %400 = vector.broadcast %399 : f32 to vector<1x256xf32>
    %401 = arith.mulf %398, %400 : vector<1x256xf32>
    %402 = arith.addf %397, %401 : vector<1x256xf32>
    %403 = vector.extract_strided_slice %48 {offsets = [0, 161], sizes = [1, 256], strides = [1, 1]} : vector<1x512xf32> to vector<1x256xf32>
    %c88 = arith.constant 88 : index
    %404 = memref.load %arg5[%c88] : memref<98xf32, #tpu.memory_space<smem>>
    %405 = vector.broadcast %404 : f32 to vector<1x256xf32>
    %406 = arith.mulf %403, %405 : vector<1x256xf32>
    %407 = arith.addf %402, %406 : vector<1x256xf32>
    %408 = vector.extract_strided_slice %47 {offsets = [0, 177], sizes = [1, 256], strides = [1, 1]} : vector<1x512xf32> to vector<1x256xf32>
    %c46 = arith.constant 46 : index
    %409 = memref.load %arg5[%c46] : memref<98xf32, #tpu.memory_space<smem>>
    %410 = vector.broadcast %409 : f32 to vector<1x256xf32>
    %411 = arith.mulf %408, %410 : vector<1x256xf32>
    %412 = arith.addf %407, %411 : vector<1x256xf32>
    %413 = vector.extract_strided_slice %48 {offsets = [0, 177], sizes = [1, 256], strides = [1, 1]} : vector<1x512xf32> to vector<1x256xf32>
    %c95 = arith.constant 95 : index
    %414 = memref.load %arg5[%c95] : memref<98xf32, #tpu.memory_space<smem>>
    %415 = vector.broadcast %414 : f32 to vector<1x256xf32>
    %416 = arith.mulf %413, %415 : vector<1x256xf32>
    %417 = arith.addf %412, %416 : vector<1x256xf32>
    %418 = vector.extract_strided_slice %49 {offsets = [4, 0], sizes = [1, 256], strides = [1, 1]} : vector<7x256xf32> to vector<1x256xf32>
    %419 = arith.mulf %417, %418 : vector<1x256xf32>
    %420 = arith.addf %346, %419 : vector<1x256xf32>
    %cst_32 = arith.constant 0.000000e+00 : f32
    %421 = vector.broadcast %cst_32 : f32 to vector<1x256xf32>
    %422 = vector.extract_strided_slice %47 {offsets = [0, 82], sizes = [1, 256], strides = [1, 1]} : vector<1x512xf32> to vector<1x256xf32>
    %c5 = arith.constant 5 : index
    %423 = memref.load %arg5[%c5] : memref<98xf32, #tpu.memory_space<smem>>
    %424 = vector.broadcast %423 : f32 to vector<1x256xf32>
    %425 = arith.mulf %422, %424 : vector<1x256xf32>
    %426 = arith.addf %421, %425 : vector<1x256xf32>
    %427 = vector.extract_strided_slice %48 {offsets = [0, 82], sizes = [1, 256], strides = [1, 1]} : vector<1x512xf32> to vector<1x256xf32>
    %c54 = arith.constant 54 : index
    %428 = memref.load %arg5[%c54] : memref<98xf32, #tpu.memory_space<smem>>
    %429 = vector.broadcast %428 : f32 to vector<1x256xf32>
    %430 = arith.mulf %427, %429 : vector<1x256xf32>
    %431 = arith.addf %426, %430 : vector<1x256xf32>
    %432 = vector.extract_strided_slice %47 {offsets = [0, 98], sizes = [1, 256], strides = [1, 1]} : vector<1x512xf32> to vector<1x256xf32>
    %c12 = arith.constant 12 : index
    %433 = memref.load %arg5[%c12] : memref<98xf32, #tpu.memory_space<smem>>
    %434 = vector.broadcast %433 : f32 to vector<1x256xf32>
    %435 = arith.mulf %432, %434 : vector<1x256xf32>
    %436 = arith.addf %431, %435 : vector<1x256xf32>
    %437 = vector.extract_strided_slice %48 {offsets = [0, 98], sizes = [1, 256], strides = [1, 1]} : vector<1x512xf32> to vector<1x256xf32>
    %c61 = arith.constant 61 : index
    %438 = memref.load %arg5[%c61] : memref<98xf32, #tpu.memory_space<smem>>
    %439 = vector.broadcast %438 : f32 to vector<1x256xf32>
    %440 = arith.mulf %437, %439 : vector<1x256xf32>
    %441 = arith.addf %436, %440 : vector<1x256xf32>
    %442 = vector.extract_strided_slice %47 {offsets = [0, 114], sizes = [1, 256], strides = [1, 1]} : vector<1x512xf32> to vector<1x256xf32>
    %c19 = arith.constant 19 : index
    %443 = memref.load %arg5[%c19] : memref<98xf32, #tpu.memory_space<smem>>
    %444 = vector.broadcast %443 : f32 to vector<1x256xf32>
    %445 = arith.mulf %442, %444 : vector<1x256xf32>
    %446 = arith.addf %441, %445 : vector<1x256xf32>
    %447 = vector.extract_strided_slice %48 {offsets = [0, 114], sizes = [1, 256], strides = [1, 1]} : vector<1x512xf32> to vector<1x256xf32>
    %c68 = arith.constant 68 : index
    %448 = memref.load %arg5[%c68] : memref<98xf32, #tpu.memory_space<smem>>
    %449 = vector.broadcast %448 : f32 to vector<1x256xf32>
    %450 = arith.mulf %447, %449 : vector<1x256xf32>
    %451 = arith.addf %446, %450 : vector<1x256xf32>
    %452 = vector.extract_strided_slice %47 {offsets = [0, 130], sizes = [1, 256], strides = [1, 1]} : vector<1x512xf32> to vector<1x256xf32>
    %c26 = arith.constant 26 : index
    %453 = memref.load %arg5[%c26] : memref<98xf32, #tpu.memory_space<smem>>
    %454 = vector.broadcast %453 : f32 to vector<1x256xf32>
    %455 = arith.mulf %452, %454 : vector<1x256xf32>
    %456 = arith.addf %451, %455 : vector<1x256xf32>
    %457 = vector.extract_strided_slice %48 {offsets = [0, 130], sizes = [1, 256], strides = [1, 1]} : vector<1x512xf32> to vector<1x256xf32>
    %c75 = arith.constant 75 : index
    %458 = memref.load %arg5[%c75] : memref<98xf32, #tpu.memory_space<smem>>
    %459 = vector.broadcast %458 : f32 to vector<1x256xf32>
    %460 = arith.mulf %457, %459 : vector<1x256xf32>
    %461 = arith.addf %456, %460 : vector<1x256xf32>
    %462 = vector.extract_strided_slice %47 {offsets = [0, 146], sizes = [1, 256], strides = [1, 1]} : vector<1x512xf32> to vector<1x256xf32>
    %c33 = arith.constant 33 : index
    %463 = memref.load %arg5[%c33] : memref<98xf32, #tpu.memory_space<smem>>
    %464 = vector.broadcast %463 : f32 to vector<1x256xf32>
    %465 = arith.mulf %462, %464 : vector<1x256xf32>
    %466 = arith.addf %461, %465 : vector<1x256xf32>
    %467 = vector.extract_strided_slice %48 {offsets = [0, 146], sizes = [1, 256], strides = [1, 1]} : vector<1x512xf32> to vector<1x256xf32>
    %c82 = arith.constant 82 : index
    %468 = memref.load %arg5[%c82] : memref<98xf32, #tpu.memory_space<smem>>
    %469 = vector.broadcast %468 : f32 to vector<1x256xf32>
    %470 = arith.mulf %467, %469 : vector<1x256xf32>
    %471 = arith.addf %466, %470 : vector<1x256xf32>
    %472 = vector.extract_strided_slice %47 {offsets = [0, 162], sizes = [1, 256], strides = [1, 1]} : vector<1x512xf32> to vector<1x256xf32>
    %c40 = arith.constant 40 : index
    %473 = memref.load %arg5[%c40] : memref<98xf32, #tpu.memory_space<smem>>
    %474 = vector.broadcast %473 : f32 to vector<1x256xf32>
    %475 = arith.mulf %472, %474 : vector<1x256xf32>
    %476 = arith.addf %471, %475 : vector<1x256xf32>
    %477 = vector.extract_strided_slice %48 {offsets = [0, 162], sizes = [1, 256], strides = [1, 1]} : vector<1x512xf32> to vector<1x256xf32>
    %c89 = arith.constant 89 : index
    %478 = memref.load %arg5[%c89] : memref<98xf32, #tpu.memory_space<smem>>
    %479 = vector.broadcast %478 : f32 to vector<1x256xf32>
    %480 = arith.mulf %477, %479 : vector<1x256xf32>
    %481 = arith.addf %476, %480 : vector<1x256xf32>
    %482 = vector.extract_strided_slice %47 {offsets = [0, 178], sizes = [1, 256], strides = [1, 1]} : vector<1x512xf32> to vector<1x256xf32>
    %c47 = arith.constant 47 : index
    %483 = memref.load %arg5[%c47] : memref<98xf32, #tpu.memory_space<smem>>
    %484 = vector.broadcast %483 : f32 to vector<1x256xf32>
    %485 = arith.mulf %482, %484 : vector<1x256xf32>
    %486 = arith.addf %481, %485 : vector<1x256xf32>
    %487 = vector.extract_strided_slice %48 {offsets = [0, 178], sizes = [1, 256], strides = [1, 1]} : vector<1x512xf32> to vector<1x256xf32>
    %c96 = arith.constant 96 : index
    %488 = memref.load %arg5[%c96] : memref<98xf32, #tpu.memory_space<smem>>
    %489 = vector.broadcast %488 : f32 to vector<1x256xf32>
    %490 = arith.mulf %487, %489 : vector<1x256xf32>
    %491 = arith.addf %486, %490 : vector<1x256xf32>
    %492 = vector.extract_strided_slice %49 {offsets = [5, 0], sizes = [1, 256], strides = [1, 1]} : vector<7x256xf32> to vector<1x256xf32>
    %493 = arith.mulf %491, %492 : vector<1x256xf32>
    %494 = arith.addf %420, %493 : vector<1x256xf32>
    %cst_33 = arith.constant 0.000000e+00 : f32
    %495 = vector.broadcast %cst_33 : f32 to vector<1x256xf32>
    %496 = vector.extract_strided_slice %47 {offsets = [0, 83], sizes = [1, 256], strides = [1, 1]} : vector<1x512xf32> to vector<1x256xf32>
    %c6 = arith.constant 6 : index
    %497 = memref.load %arg5[%c6] : memref<98xf32, #tpu.memory_space<smem>>
    %498 = vector.broadcast %497 : f32 to vector<1x256xf32>
    %499 = arith.mulf %496, %498 : vector<1x256xf32>
    %500 = arith.addf %495, %499 : vector<1x256xf32>
    %501 = vector.extract_strided_slice %48 {offsets = [0, 83], sizes = [1, 256], strides = [1, 1]} : vector<1x512xf32> to vector<1x256xf32>
    %c55 = arith.constant 55 : index
    %502 = memref.load %arg5[%c55] : memref<98xf32, #tpu.memory_space<smem>>
    %503 = vector.broadcast %502 : f32 to vector<1x256xf32>
    %504 = arith.mulf %501, %503 : vector<1x256xf32>
    %505 = arith.addf %500, %504 : vector<1x256xf32>
    %506 = vector.extract_strided_slice %47 {offsets = [0, 99], sizes = [1, 256], strides = [1, 1]} : vector<1x512xf32> to vector<1x256xf32>
    %c13 = arith.constant 13 : index
    %507 = memref.load %arg5[%c13] : memref<98xf32, #tpu.memory_space<smem>>
    %508 = vector.broadcast %507 : f32 to vector<1x256xf32>
    %509 = arith.mulf %506, %508 : vector<1x256xf32>
    %510 = arith.addf %505, %509 : vector<1x256xf32>
    %511 = vector.extract_strided_slice %48 {offsets = [0, 99], sizes = [1, 256], strides = [1, 1]} : vector<1x512xf32> to vector<1x256xf32>
    %c62 = arith.constant 62 : index
    %512 = memref.load %arg5[%c62] : memref<98xf32, #tpu.memory_space<smem>>
    %513 = vector.broadcast %512 : f32 to vector<1x256xf32>
    %514 = arith.mulf %511, %513 : vector<1x256xf32>
    %515 = arith.addf %510, %514 : vector<1x256xf32>
    %516 = vector.extract_strided_slice %47 {offsets = [0, 115], sizes = [1, 256], strides = [1, 1]} : vector<1x512xf32> to vector<1x256xf32>
    %c20 = arith.constant 20 : index
    %517 = memref.load %arg5[%c20] : memref<98xf32, #tpu.memory_space<smem>>
    %518 = vector.broadcast %517 : f32 to vector<1x256xf32>
    %519 = arith.mulf %516, %518 : vector<1x256xf32>
    %520 = arith.addf %515, %519 : vector<1x256xf32>
    %521 = vector.extract_strided_slice %48 {offsets = [0, 115], sizes = [1, 256], strides = [1, 1]} : vector<1x512xf32> to vector<1x256xf32>
    %c69 = arith.constant 69 : index
    %522 = memref.load %arg5[%c69] : memref<98xf32, #tpu.memory_space<smem>>
    %523 = vector.broadcast %522 : f32 to vector<1x256xf32>
    %524 = arith.mulf %521, %523 : vector<1x256xf32>
    %525 = arith.addf %520, %524 : vector<1x256xf32>
    %526 = vector.extract_strided_slice %47 {offsets = [0, 131], sizes = [1, 256], strides = [1, 1]} : vector<1x512xf32> to vector<1x256xf32>
    %c27 = arith.constant 27 : index
    %527 = memref.load %arg5[%c27] : memref<98xf32, #tpu.memory_space<smem>>
    %528 = vector.broadcast %527 : f32 to vector<1x256xf32>
    %529 = arith.mulf %526, %528 : vector<1x256xf32>
    %530 = arith.addf %525, %529 : vector<1x256xf32>
    %531 = vector.extract_strided_slice %48 {offsets = [0, 131], sizes = [1, 256], strides = [1, 1]} : vector<1x512xf32> to vector<1x256xf32>
    %c76 = arith.constant 76 : index
    %532 = memref.load %arg5[%c76] : memref<98xf32, #tpu.memory_space<smem>>
    %533 = vector.broadcast %532 : f32 to vector<1x256xf32>
    %534 = arith.mulf %531, %533 : vector<1x256xf32>
    %535 = arith.addf %530, %534 : vector<1x256xf32>
    %536 = vector.extract_strided_slice %47 {offsets = [0, 147], sizes = [1, 256], strides = [1, 1]} : vector<1x512xf32> to vector<1x256xf32>
    %c34 = arith.constant 34 : index
    %537 = memref.load %arg5[%c34] : memref<98xf32, #tpu.memory_space<smem>>
    %538 = vector.broadcast %537 : f32 to vector<1x256xf32>
    %539 = arith.mulf %536, %538 : vector<1x256xf32>
    %540 = arith.addf %535, %539 : vector<1x256xf32>
    %541 = vector.extract_strided_slice %48 {offsets = [0, 147], sizes = [1, 256], strides = [1, 1]} : vector<1x512xf32> to vector<1x256xf32>
    %c83 = arith.constant 83 : index
    %542 = memref.load %arg5[%c83] : memref<98xf32, #tpu.memory_space<smem>>
    %543 = vector.broadcast %542 : f32 to vector<1x256xf32>
    %544 = arith.mulf %541, %543 : vector<1x256xf32>
    %545 = arith.addf %540, %544 : vector<1x256xf32>
    %546 = vector.extract_strided_slice %47 {offsets = [0, 163], sizes = [1, 256], strides = [1, 1]} : vector<1x512xf32> to vector<1x256xf32>
    %c41 = arith.constant 41 : index
    %547 = memref.load %arg5[%c41] : memref<98xf32, #tpu.memory_space<smem>>
    %548 = vector.broadcast %547 : f32 to vector<1x256xf32>
    %549 = arith.mulf %546, %548 : vector<1x256xf32>
    %550 = arith.addf %545, %549 : vector<1x256xf32>
    %551 = vector.extract_strided_slice %48 {offsets = [0, 163], sizes = [1, 256], strides = [1, 1]} : vector<1x512xf32> to vector<1x256xf32>
    %c90 = arith.constant 90 : index
    %552 = memref.load %arg5[%c90] : memref<98xf32, #tpu.memory_space<smem>>
    %553 = vector.broadcast %552 : f32 to vector<1x256xf32>
    %554 = arith.mulf %551, %553 : vector<1x256xf32>
    %555 = arith.addf %550, %554 : vector<1x256xf32>
    %556 = vector.extract_strided_slice %47 {offsets = [0, 179], sizes = [1, 256], strides = [1, 1]} : vector<1x512xf32> to vector<1x256xf32>
    %c48 = arith.constant 48 : index
    %557 = memref.load %arg5[%c48] : memref<98xf32, #tpu.memory_space<smem>>
    %558 = vector.broadcast %557 : f32 to vector<1x256xf32>
    %559 = arith.mulf %556, %558 : vector<1x256xf32>
    %560 = arith.addf %555, %559 : vector<1x256xf32>
    %561 = vector.extract_strided_slice %48 {offsets = [0, 179], sizes = [1, 256], strides = [1, 1]} : vector<1x512xf32> to vector<1x256xf32>
    %c97 = arith.constant 97 : index
    %562 = memref.load %arg5[%c97] : memref<98xf32, #tpu.memory_space<smem>>
    %563 = vector.broadcast %562 : f32 to vector<1x256xf32>
    %564 = arith.mulf %561, %563 : vector<1x256xf32>
    %565 = arith.addf %560, %564 : vector<1x256xf32>
    %566 = vector.extract_strided_slice %49 {offsets = [6, 0], sizes = [1, 256], strides = [1, 1]} : vector<7x256xf32> to vector<1x256xf32>
    %567 = arith.mulf %565, %566 : vector<1x256xf32>
    %568 = arith.addf %494, %567 : vector<1x256xf32>
    %569 = arith.negf %568 : vector<1x256xf32>
    %570 = math.exp %569 : vector<1x256xf32>
    %cst_34 = arith.constant 1.000000e+00 : f32
    %571 = vector.broadcast %cst_34 : f32 to vector<1x256xf32>
    %572 = arith.addf %571, %570 : vector<1x256xf32>
    %573 = arith.divf %571, %572 : vector<1x256xf32>
    %574 = vector.broadcast %573 : vector<1x256xf32> to vector<64x256xf32>
    %575 = arith.mulf %39, %574 : vector<64x256xf32>
    %c0_35 = arith.constant 0 : index
    %c0_36 = arith.constant 0 : index
    %c0_37 = arith.constant 0 : index
    %576 = vector.load %arg6[%c0_35, %c0_36, %c0_37] : memref<1x64x256xf32, #tpu.memory_space<vmem>>, vector<1x64x256xf32>
    %577 = vector.shape_cast %576 : vector<1x64x256xf32> to vector<64x256xf32>
    %578 = vector.shape_cast %575 : vector<64x256xf32> to vector<1x64x256xf32>
    tpu.vector_store %arg6[%c0_35, %c0_36, %c0_37], %578 {strides = array<i32>} : memref<1x64x256xf32, #tpu.memory_space<vmem>>, vector<1x64x256xf32>,
    return
  }
  func.func @transform_0(%arg0: i32) -> (i32, i32, i32) {
    %c0_i32 = arith.constant 0 : i32
    %c0_i32_0 = arith.constant 0 : i32
    %c0_i32_1 = arith.constant 0 : i32
    return %arg0, %c0_i32, %c0_i32_0 : i32, i32, i32
  }
  func.func @transform_1(%arg0: i32) -> (i32, i32) {
    %c0_i32 = arith.constant 0 : i32
    %c0_i32_0 = arith.constant 0 : i32
    %c0_i32_1 = arith.constant 0 : i32
    return %c0_i32, %c0_i32_0 : i32, i32
  }
  func.func @transform_2(%arg0: i32) -> (i32, i32) {
    %c0_i32 = arith.constant 0 : i32
    %c0_i32_0 = arith.constant 0 : i32
    %c0_i32_1 = arith.constant 0 : i32
    return %c0_i32, %c0_i32_0 : i32, i32
  }
  func.func @transform_3(%arg0: i32) -> (i32, i32) {
    %c0_i32 = arith.constant 0 : i32
    %c0_i32_0 = arith.constant 0 : i32
    %c0_i32_1 = arith.constant 0 : i32
    return %c0_i32, %c0_i32_0 : i32, i32
  }
  func.func @transform_4(%arg0: i32) -> i32 {
    %c0_i32 = arith.constant 0 : i32
    %c0_i32_0 = arith.constant 0 : i32
    return %c0_i32 : i32
  }
  func.func @transform_5(%arg0: i32) -> (i32, i32, i32) {
    %c0_i32 = arith.constant 0 : i32
    %c0_i32_0 = arith.constant 0 : i32
    %c0_i32_1 = arith.constant 0 : i32
    return %arg0, %c0_i32, %c0_i32_0 : i32, i32, i32
  }
}

</mosaic_0001>

<llo_original>
// kernel: cbam_forward.1
$region0: #{cbam_forward.1}
  #allocation0 [shape = 'u32[]', space=smem, size = 0x4, offset = 0x4, fixed_abs, tag = 'smem constant byte address 0x4 - core index']
  #allocation1 [shape = 'u32[144,128]{1,0:T(1,128)}', space=vmem, size = 0x12000, scoped, tag = 'internal scratch']
  %s0 = inlined_call_operand.vmem [shape: f32[2,64,256], index: 0, kind: input, shape index: {}]
  %s1 = inlined_call_operand.vmem [shape: f32[64,4], index: 1, kind: input, shape index: {}]
  %s2 = inlined_call_operand.vmem [shape: f32[64,4], index: 2, kind: input, shape index: {}]
  %s3 = inlined_call_operand.vmem [shape: f32[7,256], index: 3, kind: input, shape index: {}]
  %s4 = inlined_call_operand.vmem [shape: f32[98], index: 4, kind: input, shape index: {}]
  %s5 = inlined_call_operand.vmem [shape: f32[2,64,256], index: 5, kind: output, shape index: {}]
  %s6 = sld [smem:[#allocation0]]
  $region57: #{cbam_forward.1} parent=0
    _
  %s8 = ssub.s32 1, %s6
  %s9 = scalar_select 0, %s8, %s6
  $region1: #{cbam_forward.1} parent=0
    #allocation2 [shape = 'u8[512]{0}', space=smem, size = 0x200, scoped, tag = 'input window, operand 4, single buffered']
    #allocation3 [shape = 's32[2]{0}', space=sflag, size = 0x8, scoped, tag = 'scoped memory for cbam_forward.1']
    %10 = vsyncpa [#allocation3], 0
    loop: start=0, step=1, limit=4
    $region2: #{cbam_forward.1} parent=1 // loop_pre_header
      _
    $region3: #{cbam_forward.1} parent=1 // loop_header
      %s12 = sphi 0, %s16
      %p13 = scmp.ge.s32.totalorder %s12, 4
      %s22 = sphi 0, %s24
      %s25 = sphi 0, %s22
      %s26 = sphi 0, %s25
      %s42 = sphi 0, %s26
      %s46 = sphi 0, %s46
      %s48 = sphi 0, %s46
      %s49 = sphi 0, %s48
      %s63 = sphi 0, %s49
      %s67 = sphi 0, %s67
      %s69 = sphi 0, %s67
      %s70 = sphi 0, %s69
      %s84 = sphi 0, %s70
      %s88 = sphi 0, %s88
      %s90 = sphi 0, %s88
      %s91 = sphi 0, %s90
      %s105 = sphi 0, %s91
      %s109 = sphi 0, %s109
      %s111 = sphi 0, %s109
      %s112 = sphi 0, %s111
      %s126 = sphi 0, %s112
      %s132 = sphi 0, %s134
      %s135 = sphi 0, %s132
      %s136 = sphi 0, %s135
      %s152 = sphi 0, %s136
    $region4: #{cbam_forward.1} parent=1 // loop_header_branch
      %15 = sbr.rel (%p13) target = $region8
    $region5: #{cbam_forward.1} parent=1 // loop_body
      %s17 = ssub.s32 %s12, 1
      %s18 = ssub.s32 %s12, 2
      %s19 = sadd.s32 %s12, 1
      %s20 = ssub.s32 %s12, %s19
      %p21 = scmp.eq.s32.totalorder %s20, 0
      %s23 = sadd.s32 %s22, 1
      %s24 = scalar_select %p21, %s22, %s23
      %p27 = pneg %p21
      %p28 = scmp.eq.s32.totalorder %s12, 1
      %p29 = por %p27, %p28
      %p30 = scmp.ne.s32.totalorder %s22, %s25
      %p31 = scmp.eq.s32.totalorder %s12, 0
      %p32 = por %p30, %p31
      %p33 = scmp.ne.s32.totalorder %s22, %s25
      %p34 = scmp.eq.s32.totalorder %s17, 1
      %p35 = por %p33, %p34
      %p36 = scmp.ne.s32.totalorder %s25, %s26
      %p37 = scmp.eq.s32.totalorder %s17, 0
      %p38 = por %p36, %p37
      %p39 = scmp.ne.s32.totalorder %s25, %s26
      %p40 = scmp.eq.s32.totalorder %s18, 1
      %p41 = por %p39, %p40
      %p43 = scmp.ne.s32.totalorder %s26, %s42
      %p44 = scmp.eq.s32.totalorder %s18, 0
      %p45 = por %p43, %p44
      %s47 = sadd.s32 %s46, 1
      %p50 = scmp.eq.s32.totalorder %s12, 1
      %p51 = scmp.ne.s32.totalorder %s46, %s48
      %p52 = scmp.eq.s32.totalorder %s12, 0
      %p53 = por %p51, %p52
      %p54 = scmp.ne.s32.totalorder %s46, %s48
      %p55 = scmp.eq.s32.totalorder %s17, 1
      %p56 = por %p54, %p55
      %p57 = scmp.ne.s32.totalorder %s48, %s49
      %p58 = scmp.eq.s32.totalorder %s17, 0
      %p59 = por %p57, %p58
      %p60 = scmp.ne.s32.totalorder %s48, %s49
      %p61 = scmp.eq.s32.totalorder %s18, 1
      %p62 = por %p60, %p61
      %p64 = scmp.ne.s32.totalorder %s49, %s63
      %p65 = scmp.eq.s32.totalorder %s18, 0
      %p66 = por %p64, %p65
      %s68 = sadd.s32 %s67, 1
      %p71 = scmp.eq.s32.totalorder %s12, 1
      %p72 = scmp.ne.s32.totalorder %s67, %s69
      %p73 = scmp.eq.s32.totalorder %s12, 0
      %p74 = por %p72, %p73
      %p75 = scmp.ne.s32.totalorder %s67, %s69
      %p76 = scmp.eq.s32.totalorder %s17, 1
      %p77 = por %p75, %p76
      %p78 = scmp.ne.s32.totalorder %s69, %s70
      %p79 = scmp.eq.s32.totalorder %s17, 0
      %p80 = por %p78, %p79
      %p81 = scmp.ne.s32.totalorder %s69, %s70
      %p82 = scmp.eq.s32.totalorder %s18, 1
      %p83 = por %p81, %p82
      %p85 = scmp.ne.s32.totalorder %s70, %s84
      %p86 = scmp.eq.s32.totalorder %s18, 0
      %p87 = por %p85, %p86
      %s89 = sadd.s32 %s88, 1
      %p92 = scmp.eq.s32.totalorder %s12, 1
      %p93 = scmp.ne.s32.totalorder %s88, %s90
      %p94 = scmp.eq.s32.totalorder %s12, 0
      %p95 = por %p93, %p94
      %p96 = scmp.ne.s32.totalorder %s88, %s90
      %p97 = scmp.eq.s32.totalorder %s17, 1
      %p98 = por %p96, %p97
      %p99 = scmp.ne.s32.totalorder %s90, %s91
      %p100 = scmp.eq.s32.totalorder %s17, 0
      %p101 = por %p99, %p100
      %p102 = scmp.ne.s32.totalorder %s90, %s91
      %p103 = scmp.eq.s32.totalorder %s18, 1
      %p104 = por %p102, %p103
      %p106 = scmp.ne.s32.totalorder %s91, %s105
      %p107 = scmp.eq.s32.totalorder %s18, 0
      %p108 = por %p106, %p107
      %s110 = sadd.s32 %s109, 1
      %p113 = scmp.eq.s32.totalorder %s12, 1
      %p114 = scmp.ne.s32.totalorder %s109, %s111
      %p115 = scmp.eq.s32.totalorder %s12, 0
      %p116 = por %p114, %p115
      %p117 = scmp.ne.s32.totalorder %s109, %s111
      %p118 = scmp.eq.s32.totalorder %s17, 1
      %p119 = por %p117, %p118
      %p120 = scmp.ne.s32.totalorder %s111, %s112
      %p121 = scmp.eq.s32.totalorder %s17, 0
      %p122 = por %p120, %p121
      %p123 = scmp.ne.s32.totalorder %s111, %s112
      %p124 = scmp.eq.s32.totalorder %s18, 1
      %p125 = por %p123, %p124
      %p127 = scmp.ne.s32.totalorder %s112, %s126
      %p128 = scmp.eq.s32.totalorder %s18, 0
      %p129 = por %p127, %p128
      %s130 = ssub.s32 %s12, %s19
      %p131 = scmp.eq.s32.totalorder %s130, 0
      %s133 = sadd.s32 %s132, 1
      %s134 = scalar_select %p131, %s132, %s133
      %p137 = pneg %p131
      %p138 = scmp.eq.s32.totalorder %s12, 1
      %p139 = por %p137, %p138
      %p140 = scmp.ne.s32.totalorder %s132, %s135
      %p141 = scmp.eq.s32.totalorder %s12, 0
      %p142 = por %p140, %p141
      %p143 = scmp.ne.s32.totalorder %s132, %s135
      %p144 = scmp.eq.s32.totalorder %s17, 1
      %p145 = por %p143, %p144
      %p146 = scmp.ne.s32.totalorder %s135, %s136
      %p147 = scmp.eq.s32.totalorder %s17, 0
      %p148 = por %p146, %p147
      %p149 = scmp.ne.s32.totalorder %s135, %s136
      %p150 = scmp.eq.s32.totalorder %s18, 1
      %p151 = por %p149, %p150
      %p153 = scmp.ne.s32.totalorder %s136, %s152
      %p154 = scmp.eq.s32.totalorder %s18, 0
      %p155 = por %p153, %p154
      %p156 = scmp.le.s32.totalorder 1, %s12
      %p157 = scmp.lt.s32.totalorder %s12, 3
      %p158 = pnand %p156, %p157
      %p159 = pneg %p158
      // Predicated region
      $region9: #{cbam_forward.1} parent=5 // pred_check
        _
      $region10: #{cbam_forward.1} parent=5 // pred_check_branch
        %161 = sbr.rel (%p158) target = $region12
      $region11: #{cbam_forward.1} parent=5 // pred_region
        %s162 = ssub.s32 %s12, 1
        // Predicated region
        $region13: #{cbam_forward.1} parent=11 // pred_check
          %p163 = pneg %p59
        $region14: #{cbam_forward.1} parent=11 // pred_check_branch
          %165 = sbr.rel (%p163) target = $region16
        $region15: #{cbam_forward.1} parent=11 // pred_region
          _
        $region16: #{cbam_forward.1} parent=11 // pred_fallthru
          _
        // Predicated region
        $region17: #{cbam_forward.1} parent=11 // pred_check
          %p166 = pneg %p80
        $region18: #{cbam_forward.1} parent=11 // pred_check_branch
          %168 = sbr.rel (%p166) target = $region20
        $region19: #{cbam_forward.1} parent=11 // pred_region
          _
        $region20: #{cbam_forward.1} parent=11 // pred_fallthru
          _
        // Predicated region
        $region21: #{cbam_forward.1} parent=11 // pred_check
          %p169 = pneg %p101
        $region22: #{cbam_forward.1} parent=11 // pred_check_branch
          %171 = sbr.rel (%p169) target = $region24
        $region23: #{cbam_forward.1} parent=11 // pred_region
          _
        $region24: #{cbam_forward.1} parent=11 // pred_fallthru
          _
        // Predicated region
        $region25: #{cbam_forward.1} parent=11 // pred_check
          %p172 = pneg %p122
        $region26: #{cbam_forward.1} parent=11 // pred_check_branch
          %174 = sbr.rel (%p172) target = $region28
        $region27: #{cbam_forward.1} parent=11 // pred_region
          %s176 = ssub.s32 16, 16
          %177 = vsyncadd [#allocation3], %s176
          %s179 = sshll.u32 %s4, 4
          %s180 = int_to_ptr.vmem [resolvable:$true] %s179
          %182 = dma.vmem_to_smem %s180, 16, [#allocation2], [#allocation3]
        $region28: #{cbam_forward.1} parent=11 // pred_fallthru
          _
      $region12: #{cbam_forward.1} parent=5 // pred_fallthru
        _
      %p183 = scmp.lt.s32.totalorder %s12, 2
      // Predicated region
      $region29: #{cbam_forward.1} parent=5 // pred_check
        %p184 = pneg %p183
      $region30: #{cbam_forward.1} parent=5 // pred_check_branch
        %186 = sbr.rel (%p184) target = $region32
      $region31: #{cbam_forward.1} parent=5 // pred_region
        // Predicated region
        $region33: #{cbam_forward.1} parent=31 // pred_check
          %p187 = pneg %p32
        $region34: #{cbam_forward.1} parent=31 // pred_check_branch
          %189 = sbr.rel (%p187) target = $region36
        $region35: #{cbam_forward.1} parent=31 // pred_region
          %p190 = scmp.lt.s32.totalorder %s12, 1
          %s191 = scalar_select %p190, %s12, 1
          %s192 = smul.addr %s191, 16
          %s193 = smul.addr %s192, 8
          %s194 = scalar_lea.vmem %s0, %s193
        $region36: #{cbam_forward.1} parent=31 // pred_fallthru
          _
      $region32: #{cbam_forward.1} parent=5 // pred_fallthru
        _
      %p195 = scmp.le.s32.totalorder 1, %s12
      %p196 = scmp.lt.s32.totalorder %s12, 3
      %p197 = pnand %p195, %p196
      %p198 = pneg %p197
      // Predicated region
      $region37: #{cbam_forward.1} parent=5 // pred_check
        _
      $region38: #{cbam_forward.1} parent=5 // pred_check_branch
        %200 = sbr.rel (%p197) target = $region40
      $region39: #{cbam_forward.1} parent=5 // pred_region
        %s201 = ssub.s32 %s12, 1
        // Predicated region
        $region41: #{cbam_forward.1} parent=39 // pred_check
          %p202 = pneg %p122
        $region42: #{cbam_forward.1} parent=39 // pred_check_branch
          %204 = sbr.rel (%p202) target = $region44
        $region43: #{cbam_forward.1} parent=39 // pred_region
          %205 = dma.done [#allocation3], 16
        $region44: #{cbam_forward.1} parent=39 // pred_fallthru
          _
        %206 = sfence
        %p207 = scmp.lt.s32.totalorder %s17, 1
        %s208 = scalar_select %p207, %s17, 1
        %s209 = smul.addr %s208, 16
        %s210 = smul.addr %s209, 8
        %s211 = scalar_lea.vmem %s0, %s210
        %p212 = pneg %p38
        %p213 = pneg %p35
        %p214 = pneg %p59
        %p215 = pneg %p56
        %p216 = pneg %p80
        %p217 = pneg %p77
        %p218 = pneg %p101
        %p219 = pneg %p98
        %p220 = pneg %p122
        %p221 = pneg %p119
        %p222 = pneg %p148
        %p223 = pneg %p145
        %p224 = scmp.lt.s32.totalorder %s17, 1
        %s225 = scalar_select %p224, %s17, 1
        %s226 = smul.addr %s225, 16
        %s227 = smul.addr %s226, 8
        %s228 = scalar_lea.vmem %s5, %s227
        %p229 = scmp.lt.s32.totalorder %s17, 1
        %s230 = scalar_select %p229, %s17, 1
        %s231 = smul.addr %s230, 16
        %s232 = smul.addr %s231, 8
        %s233 = scalar_lea.vmem %s0, %s232
        %p234 = scmp.lt.s32.totalorder %s17, 1
        %s235 = scalar_select %p234, %s17, 1
        %s236 = smul.addr %s235, 16
        %s237 = smul.addr %s236, 8
        %s238 = scalar_lea.vmem %s5, %s237
        %v239 = vld [vmem:[%s233] sm:$0xff]
        %v240 = vld [vmem:[%s233 + $0x8] sm:$0xff]
        %v241 = vld [vmem:[%s233 + $0x10] sm:$0xff]
        %v242 = vld [vmem:[%s233 + $0x18] sm:$0xff]
        %v243 = vld [vmem:[%s233 + $0x20] sm:$0xff]
        %v244 = vld [vmem:[%s233 + $0x28] sm:$0xff]
        %v245 = vld [vmem:[%s233 + $0x30] sm:$0xff]
        %v246 = vld [vmem:[%s233 + $0x38] sm:$0xff]
        %v247 = vld [vmem:[%s233 + $0x40] sm:$0xff]
        %v248 = vld [vmem:[%s233 + $0x48] sm:$0xff]
        %v249 = vld [vmem:[%s233 + $0x50] sm:$0xff]
        %v250 = vld [vmem:[%s233 + $0x58] sm:$0xff]
        %v251 = vld [vmem:[%s233 + $0x60] sm:$0xff]
        %v252 = vld [vmem:[%s233 + $0x68] sm:$0xff]
        %v253 = vld [vmem:[%s233 + $0x70] sm:$0xff]
        %v254 = vld [vmem:[%s233 + $0x78] sm:$0xff]
        %v255 = vadd.f32 %v239, %v240
        %256 = vadd.xlane.f32.xlu0 %v255
        %v257 = vpop.xlane.xlu0 %256
        %v258 = vadd.f32 %v241, %v242
        %259 = vadd.xlane.f32.xlu0 %v258
        %v260 = vpop.xlane.xlu0 %259
        %v261 = vadd.f32 %v243, %v244
        %262 = vadd.xlane.f32.xlu0 %v261
        %v263 = vpop.xlane.xlu0 %262
        %v264 = vadd.f32 %v245, %v246
        %265 = vadd.xlane.f32.xlu0 %v264
        %v266 = vpop.xlane.xlu0 %265
        %v267 = vadd.f32 %v247, %v248
        %268 = vadd.xlane.f32.xlu0 %v267
        %v269 = vpop.xlane.xlu0 %268
        %v270 = vadd.f32 %v249, %v250
        %271 = vadd.xlane.f32.xlu0 %v270
        %v272 = vpop.xlane.xlu0 %271
        %v273 = vadd.f32 %v251, %v252
        %274 = vadd.xlane.f32.xlu0 %v273
        %v275 = vpop.xlane.xlu0 %274
        %v276 = vadd.f32 %v253, %v254
        %277 = vadd.xlane.f32.xlu0 %v276
        %v278 = vpop.xlane.xlu0 %277
        %v279 = vmax.f32 %v239, %v240
        %280 = vmax.xlane.f32.xlu0 %v279
        %v281 = vpop.xlane.xlu0 %280
        %v282 = vmax.f32 %v241, %v242
        %283 = vmax.xlane.f32.xlu0 %v282
        %v284 = vpop.xlane.xlu0 %283
        %v285 = vmax.f32 %v243, %v244
        %286 = vmax.xlane.f32.xlu0 %v285
        %v287 = vpop.xlane.xlu0 %286
        %v288 = vmax.f32 %v245, %v246
        %289 = vmax.xlane.f32.xlu0 %v288
        %v290 = vpop.xlane.xlu0 %289
        %v291 = vmax.f32 %v247, %v248
        %292 = vmax.xlane.f32.xlu0 %v291
        %v293 = vpop.xlane.xlu0 %292
        %v294 = vmax.f32 %v249, %v250
        %295 = vmax.xlane.f32.xlu0 %v294
        %v296 = vpop.xlane.xlu0 %295
        %v297 = vmax.f32 %v251, %v252
        %298 = vmax.xlane.f32.xlu0 %v297
        %v299 = vpop.xlane.xlu0 %298
        %v300 = vmax.f32 %v253, %v254
        %301 = vmax.xlane.f32.xlu0 %v300
        %v302 = vpop.xlane.xlu0 %301
        %v303 = vmul.f32 %v257, 0.00390625
        %v304 = vmul.f32 %v260, 0.00390625
        %v305 = vmul.f32 %v263, 0.00390625
        %v306 = vmul.f32 %v266, 0.00390625
        %v307 = vmul.f32 %v269, 0.00390625
        %v308 = vmul.f32 %v272, 0.00390625
        %v309 = vmul.f32 %v275, 0.00390625
        %v310 = vmul.f32 %v278, 0.00390625
        %v311 = vld [vmem:[%s1] sm:$0xff]
        %v312 = vld [vmem:[%s1 + $0x8] sm:$0xff]
        %v313 = vld [vmem:[%s1 + $0x10] sm:$0xff]
        %v314 = vld [vmem:[%s1 + $0x18] sm:$0xff]
        %v315 = vld [vmem:[%s1 + $0x20] sm:$0xff]
        %v316 = vld [vmem:[%s1 + $0x28] sm:$0xff]
        %v317 = vld [vmem:[%s1 + $0x30] sm:$0xff]
        %v318 = vld [vmem:[%s1 + $0x38] sm:$0xff]
        %v319 = vmul.f32 %v311, %v303
        %v320 = vmul.f32 %v312, %v304
        %v321 = vmul.f32 %v313, %v305
        %v322 = vmul.f32 %v314, %v306
        %v323 = vmul.f32 %v315, %v307
        %v324 = vmul.f32 %v316, %v308
        %v325 = vmul.f32 %v317, %v309
        %v326 = vmul.f32 %v318, %v310
        %vm327 = vcmask 31744
        %v328 = vsel %vm327, %v319, 0.0
        %v329 = vsel %vm327, %v320, 0.0
        %v330 = vadd.f32 %v328, %v329
        %v331 = vsel %vm327, %v321, 0.0
        %v332 = vadd.f32 %v330, %v331
        %v333 = vsel %vm327, %v322, 0.0
        %v334 = vadd.f32 %v332, %v333
        %v335 = vsel %vm327, %v323, 0.0
        %v336 = vadd.f32 %v334, %v335
        %v337 = vsel %vm327, %v324, 0.0
        %v338 = vadd.f32 %v336, %v337
        %v339 = vsel %vm327, %v325, 0.0
        %v340 = vadd.f32 %v338, %v339
        %v341 = vsel %vm327, %v326, 0.0
        %v342 = vadd.f32 %v340, %v341
        %v343 = vrot.slane %v342, 4
        %v344 = vadd.f32 %v342, %v343
        %v345 = vrot.slane %v344, 2
        %v346 = vadd.f32 %v344, %v345
        %v347 = vrot.slane %v346, 1
        %v348 = vadd.f32 %v346, %v347
        %v349 = vmax.f32 %v348, 0.0
        %v350 = vld [vmem:[%s2] sm:$0xff]
        %v351 = vld [vmem:[%s2 + $0x8] sm:$0xff]
        %v352 = vld [vmem:[%s2 + $0x10] sm:$0xff]
        %v353 = vld [vmem:[%s2 + $0x18] sm:$0xff]
        %v354 = vld [vmem:[%s2 + $0x20] sm:$0xff]
        %v355 = vld [vmem:[%s2 + $0x28] sm:$0xff]
        %v356 = vld [vmem:[%s2 + $0x30] sm:$0xff]
        %v357 = vld [vmem:[%s2 + $0x38] sm:$0xff]
        %v358 = vmul.f32 %v350, %v349
        %v359 = vmul.f32 %v351, %v349
        %v360 = vmul.f32 %v352, %v349
        %v361 = vmul.f32 %v353, %v349
        %v362 = vmul.f32 %v354, %v349
        %v363 = vmul.f32 %v355, %v349
        %v364 = vmul.f32 %v356, %v349
        %v365 = vmul.f32 %v357, %v349
        %v366 = vsel %vm327, %v358, 0.0
        %367 = vadd.xlane.f32.xlu0 %v366
        %v368 = vpop.xlane.xlu0 %367
        %v369 = vsel %vm327, %v359, 0.0
        %370 = vadd.xlane.f32.xlu0 %v369
        %v371 = vpop.xlane.xlu0 %370
        %v372 = vsel %vm327, %v360, 0.0
        %373 = vadd.xlane.f32.xlu0 %v372
        %v374 = vpop.xlane.xlu0 %373
        %v375 = vsel %vm327, %v361, 0.0
        %376 = vadd.xlane.f32.xlu0 %v375
        %v377 = vpop.xlane.xlu0 %376
        %v378 = vsel %vm327, %v362, 0.0
        %379 = vadd.xlane.f32.xlu0 %v378
        %v380 = vpop.xlane.xlu0 %379
        %v381 = vsel %vm327, %v363, 0.0
        %382 = vadd.xlane.f32.xlu0 %v381
        %v383 = vpop.xlane.xlu0 %382
        %v384 = vsel %vm327, %v364, 0.0
        %385 = vadd.xlane.f32.xlu0 %v384
        %v386 = vpop.xlane.xlu0 %385
        %v387 = vsel %vm327, %v365, 0.0
        %388 = vadd.xlane.f32.xlu0 %v387
        %v389 = vpop.xlane.xlu0 %388
        %v390 = vmul.f32 %v311, %v281
        %v391 = vmul.f32 %v312, %v284
        %v392 = vmul.f32 %v313, %v287
        %v393 = vmul.f32 %v314, %v290
        %v394 = vmul.f32 %v315, %v293
        %v395 = vmul.f32 %v316, %v296
        %v396 = vmul.f32 %v317, %v299
        %v397 = vmul.f32 %v318, %v302
        %v398 = vsel %vm327, %v390, 0.0
        %v399 = vsel %vm327, %v391, 0.0
        %v400 = vadd.f32 %v398, %v399
        %v401 = vsel %vm327, %v392, 0.0
        %v402 = vadd.f32 %v400, %v401
        %v403 = vsel %vm327, %v393, 0.0
        %v404 = vadd.f32 %v402, %v403
        %v405 = vsel %vm327, %v394, 0.0
        %v406 = vadd.f32 %v404, %v405
        %v407 = vsel %vm327, %v395, 0.0
        %v408 = vadd.f32 %v406, %v407
        %v409 = vsel %vm327, %v396, 0.0
        %v410 = vadd.f32 %v408, %v409
        %v411 = vsel %vm327, %v397, 0.0
        %v412 = vadd.f32 %v410, %v411
        %v413 = vrot.slane %v412, 4
        %v414 = vadd.f32 %v412, %v413
        %v415 = vrot.slane %v414, 2
        %v416 = vadd.f32 %v414, %v415
        %v417 = vrot.slane %v416, 1
        %v418 = vadd.f32 %v416, %v417
        %v419 = vmax.f32 %v418, 0.0
        %v420 = vmul.f32 %v350, %v419
        %v421 = vmul.f32 %v351, %v419
        %v422 = vmul.f32 %v352, %v419
        %v423 = vmul.f32 %v353, %v419
        %v424 = vmul.f32 %v354, %v419
        %v425 = vmul.f32 %v355, %v419
        %v426 = vmul.f32 %v356, %v419
        %v427 = vmul.f32 %v357, %v419
        %v428 = vsel %vm327, %v420, 0.0
        %429 = vadd.xlane.f32.xlu0 %v428
        %v430 = vpop.xlane.xlu0 %429
        %v431 = vsel %vm327, %v421, 0.0
        %432 = vadd.xlane.f32.xlu0 %v431
        %v433 = vpop.xlane.xlu0 %432
        %v434 = vsel %vm327, %v422, 0.0
        %435 = vadd.xlane.f32.xlu0 %v434
        %v436 = vpop.xlane.xlu0 %435
        %v437 = vsel %vm327, %v423, 0.0
        %438 = vadd.xlane.f32.xlu0 %v437
        %v439 = vpop.xlane.xlu0 %438
        %v440 = vsel %vm327, %v424, 0.0
        %441 = vadd.xlane.f32.xlu0 %v440
        %v442 = vpop.xlane.xlu0 %441
        %v443 = vsel %vm327, %v425, 0.0
        %444 = vadd.xlane.f32.xlu0 %v443
        %v445 = vpop.xlane.xlu0 %444
        %v446 = vsel %vm327, %v426, 0.0
        %447 = vadd.xlane.f32.xlu0 %v446
        %v448 = vpop.xlane.xlu0 %447
        %v449 = vsel %vm327, %v427, 0.0
        %450 = vadd.xlane.f32.xlu0 %v449
        %v451 = vpop.xlane.xlu0 %450
        %v452 = vadd.f32 %v368, %v430
        %v453 = vadd.f32 %v371, %v433
        %v454 = vadd.f32 %v374, %v436
        %v455 = vadd.f32 %v377, %v439
        %v456 = vadd.f32 %v380, %v442
        %v457 = vadd.f32 %v383, %v445
        %v458 = vadd.f32 %v386, %v448
        %v459 = vadd.f32 %v389, %v451
        %v460 = vxor.u32 %v452, 2147483648
        %v461 = vxor.u32 %v453, 2147483648
        %v462 = vxor.u32 %v454, 2147483648
        %v463 = vxor.u32 %v455, 2147483648
        %v464 = vxor.u32 %v456, 2147483648
        %v465 = vxor.u32 %v457, 2147483648
        %v466 = vxor.u32 %v458, 2147483648
        %v467 = vxor.u32 %v459, 2147483648
        %v468 = vmul.f32 %v460, 1.442695
        %v469 = vpow.pop %v468
        %v470 = vmul.f32 %v461, 1.442695
        %v471 = vpow.pop %v470
        %v472 = vmul.f32 %v462, 1.442695
        %v473 = vpow.pop %v472
        %v474 = vmul.f32 %v463, 1.442695
        %v475 = vpow.pop %v474
        %v476 = vmul.f32 %v464, 1.442695
        %v477 = vpow.pop %v476
        %v478 = vmul.f32 %v465, 1.442695
        %v479 = vpow.pop %v478
        %v480 = vmul.f32 %v466, 1.442695
        %v481 = vpow.pop %v480
        %v482 = vmul.f32 %v467, 1.442695
        %v483 = vpow.pop %v482
        %v484 = vadd.f32 %v469, 1.0
        %v485 = vadd.f32 %v471, 1.0
        %v486 = vadd.f32 %v473, 1.0
        %v487 = vadd.f32 %v475, 1.0
        %v488 = vadd.f32 %v477, 1.0
        %v489 = vadd.f32 %v479, 1.0
        %v490 = vadd.f32 %v481, 1.0
        %v491 = vadd.f32 %v483, 1.0
        %v492 = vrcp.pop %v484
        %v493 = vmul.f32 1.0, %v492
        %v494 = vrcp.pop %v485
        %v495 = vmul.f32 1.0, %v494
        %v496 = vrcp.pop %v486
        %v497 = vmul.f32 1.0, %v496
        %v498 = vrcp.pop %v487
        %v499 = vmul.f32 1.0, %v498
        %v500 = vrcp.pop %v488
        %v501 = vmul.f32 1.0, %v500
        %v502 = vrcp.pop %v489
        %v503 = vmul.f32 1.0, %v502
        %v504 = vrcp.pop %v490
        %v505 = vmul.f32 1.0, %v504
        %v506 = vrcp.pop %v491
        %v507 = vmul.f32 1.0, %v506
        %v508 = vmul.f32 %v239, %v493
        %v509 = vmul.f32 %v240, %v493
        %v510 = vmul.f32 %v241, %v495
        %v511 = vmul.f32 %v242, %v495
        %v512 = vmul.f32 %v243, %v497
        %v513 = vmul.f32 %v244, %v497
        %v514 = vmul.f32 %v245, %v499
        %v515 = vmul.f32 %v246, %v499
        %v516 = vmul.f32 %v247, %v501
        %v517 = vmul.f32 %v248, %v501
        %v518 = vmul.f32 %v249, %v503
        %v519 = vmul.f32 %v250, %v503
        %v520 = vmul.f32 %v251, %v505
        %v521 = vmul.f32 %v252, %v505
        %v522 = vmul.f32 %v253, %v507
        %v523 = vmul.f32 %v254, %v507
        %v524 = vadd.f32 %v508, %v510
        %v525 = vadd.f32 %v524, %v512
        %v526 = vadd.f32 %v525, %v514
        %v527 = vadd.f32 %v526, %v516
        %v528 = vadd.f32 %v527, %v518
        %v529 = vadd.f32 %v528, %v520
        %v530 = vadd.f32 %v529, %v522
        %v531 = vrot.slane %v530, 4
        %v532 = vadd.f32 %v530, %v531
        %v533 = vrot.slane %v532, 2
        %v534 = vadd.f32 %v532, %v533
        %v535 = vrot.slane %v534, 1
        %v536 = vadd.f32 %v534, %v535
        %v537 = vadd.f32 %v509, %v511
        %v538 = vadd.f32 %v537, %v513
        %v539 = vadd.f32 %v538, %v515
        %v540 = vadd.f32 %v539, %v517
        %v541 = vadd.f32 %v540, %v519
        %v542 = vadd.f32 %v541, %v521
        %v543 = vadd.f32 %v542, %v523
        %v544 = vrot.slane %v543, 4
        %v545 = vadd.f32 %v543, %v544
        %v546 = vrot.slane %v545, 2
        %v547 = vadd.f32 %v545, %v546
        %v548 = vrot.slane %v547, 1
        %v549 = vadd.f32 %v547, %v548
        %v550 = vmul.f32 %v536, 0.015625
        %v551 = vmul.f32 %v549, 0.015625
        %v552 = vmax.f32 %v508, %v512
        %v553 = vmax.f32 %v510, %v514
        %v554 = vmax.f32 %v552, %v516
        %v555 = vmax.f32 %v553, %v518
        %v556 = vmax.f32 %v554, %v520
        %v557 = vmax.f32 %v555, %v522
        %v558 = vmax.f32 %v556, %v557
        %v559 = vrot.slane %v558, 4
        %v560 = vmax.f32 %v558, %v559
        %v561 = vrot.slane %v560, 2
        %v562 = vmax.f32 %v560, %v561
        %v563 = vrot.slane %v562, 1
        %v564 = vmax.f32 %v562, %v563
        %v565 = vmax.f32 %v509, %v513
        %v566 = vmax.f32 %v511, %v515
        %v567 = vmax.f32 %v565, %v517
        %v568 = vmax.f32 %v566, %v519
        %v569 = vmax.f32 %v567, %v521
        %v570 = vmax.f32 %v568, %v523
        %v571 = vmax.f32 %v569, %v570
        %v572 = vrot.slane %v571, 4
        %v573 = vmax.f32 %v571, %v572
        %v574 = vrot.slane %v573, 2
        %v575 = vmax.f32 %v573, %v574
        %v576 = vrot.slane %v575, 1
        %v577 = vmax.f32 %v575, %v576
        %v578 = vld [vmem:[%s3] sm:$0x7f]
        %v579 = vld [vmem:[%s3 + $0x8] sm:$0x7f]
        %s580 = sld [smem:[#allocation2]]
        %v581 = vstv %s580
        %v582 = vmul.f32 %v581, 0.0
        %v583 = vmul.f32 %v550, %v581
        %v584 = vmul.f32 %v551, %v581
        %v585 = vadd.f32 %v582, 0.0
        %v586 = vadd.f32 %v583, 0.0
        %v587 = vadd.f32 %v584, 0.0
        %s588 = sld [smem:[#allocation2 + $0x31]]
        %v589 = vstv %s588
        %v590 = vmul.f32 %v589, 0.0
        %v591 = vmul.f32 %v564, %v589
        %v592 = vmul.f32 %v577, %v589
        %v593 = vadd.f32 %v585, %v590
        %v594 = vadd.f32 %v586, %v591
        %v595 = vadd.f32 %v587, %v592
        %s596 = sld [smem:[#allocation2 + $0x7]]
        %v597 = vstv %s596
        %v598 = vmul.f32 %v597, 0.0
        %v599 = vmul.f32 %v550, %v597
        %v600 = vmul.f32 %v551, %v597
        %604 = vrot.lane.b32.xlu0 %v598, 112
        %v605 = vpop.permute.xlu0 %604
        %606 = vrot.lane.b32.xlu0 %v599, 112
        %v607 = vpop.permute.xlu0 %606
        %608 = vrot.lane.b32.xlu0 %v600, 112
        %v609 = vpop.permute.xlu0 %608
        %vm610 = vcmask 916480
        %v611 = vsel %vm610, %v605, %v607
        %v612 = vsel %vm610, %v607, %v609
        %v616 = vadd.f32 %v593, %v611
        %v617 = vadd.f32 %v594, %v612
        %v618 = vadd.f32 %v595, %v609
        %s619 = sld [smem:[#allocation2 + $0x38]]
        %v620 = vstv %s619
        %v621 = vmul.f32 %v620, 0.0
        %v622 = vmul.f32 %v564, %v620
        %v623 = vmul.f32 %v577, %v620
        %627 = vrot.lane.b32.xlu0 %v621, 112
        %v628 = vpop.permute.xlu0 %627
        %629 = vrot.lane.b32.xlu0 %v622, 112
        %v630 = vpop.permute.xlu0 %629
        %631 = vrot.lane.b32.xlu0 %v623, 112
        %v632 = vpop.permute.xlu0 %631
        %v633 = vsel %vm610, %v628, %v630
        %v634 = vsel %vm610, %v630, %v632
        %v638 = vadd.f32 %v616, %v633
        %v639 = vadd.f32 %v617, %v634
        %v640 = vadd.f32 %v618, %v632
        %s641 = sld [smem:[#allocation2 + $0xe]]
        %v642 = vstv %s641
        %v643 = vmul.f32 %v642, 0.0
        %v644 = vmul.f32 %v550, %v642
        %v645 = vmul.f32 %v551, %v642
        %649 = vrot.lane.b32.xlu0 %v643, 96
        %v650 = vpop.permute.xlu0 %649
        %651 = vrot.lane.b32.xlu0 %v644, 96
        %v652 = vpop.permute.xlu0 %651
        %653 = vrot.lane.b32.xlu0 %v645, 96
        %v654 = vpop.permute.xlu0 %653
        %vm655 = vcmask 785408
        %v656 = vsel %vm655, %v650, %v652
        %v657 = vsel %vm655, %v652, %v654
        %v661 = vadd.f32 %v638, %v656
        %v662 = vadd.f32 %v639, %v657
        %v663 = vadd.f32 %v640, %v654
        %s664 = sld [smem:[#allocation2 + $0x3f]]
        %v665 = vstv %s664
        %v666 = vmul.f32 %v665, 0.0
        %v667 = vmul.f32 %v564, %v665
        %v668 = vmul.f32 %v577, %v665
        %672 = vrot.lane.b32.xlu0 %v666, 96
        %v673 = vpop.permute.xlu0 %672
        %674 = vrot.lane.b32.xlu0 %v667, 96
        %v675 = vpop.permute.xlu0 %674
        %676 = vrot.lane.b32.xlu0 %v668, 96
        %v677 = vpop.permute.xlu0 %676
        %v678 = vsel %vm655, %v673, %v675
        %v679 = vsel %vm655, %v675, %v677
        %v683 = vadd.f32 %v661, %v678
        %v684 = vadd.f32 %v662, %v679
        %v685 = vadd.f32 %v663, %v677
        %s686 = sld [smem:[#allocation2 + $0x15]]
        %v687 = vstv %s686
        %v688 = vmul.f32 %v687, 0.0
        %v689 = vmul.f32 %v550, %v687
        %v690 = vmul.f32 %v551, %v687
        %694 = vrot.lane.b32.xlu0 %v688, 80
        %v695 = vpop.permute.xlu0 %694
        %696 = vrot.lane.b32.xlu0 %v689, 80
        %v697 = vpop.permute.xlu0 %696
        %698 = vrot.lane.b32.xlu0 %v690, 80
        %v699 = vpop.permute.xlu0 %698
        %vm700 = vcmask 654336
        %v701 = vsel %vm700, %v695, %v697
        %v702 = vsel %vm700, %v697, %v699
        %v706 = vadd.f32 %v683, %v701
        %v707 = vadd.f32 %v684, %v702
        %v708 = vadd.f32 %v685, %v699
        %s709 = sld [smem:[#allocation2 + $0x46]]
        %v710 = vstv %s709
        %v711 = vmul.f32 %v710, 0.0
        %v712 = vmul.f32 %v564, %v710
        %v713 = vmul.f32 %v577, %v710
        %717 = vrot.lane.b32.xlu0 %v711, 80
        %v718 = vpop.permute.xlu0 %717
        %719 = vrot.lane.b32.xlu0 %v712, 80
        %v720 = vpop.permute.xlu0 %719
        %721 = vrot.lane.b32.xlu0 %v713, 80
        %v722 = vpop.permute.xlu0 %721
        %v723 = vsel %vm700, %v718, %v720
        %v724 = vsel %vm700, %v720, %v722
        %v728 = vadd.f32 %v706, %v723
        %v729 = vadd.f32 %v707, %v724
        %v730 = vadd.f32 %v708, %v722
        %s731 = sld [smem:[#allocation2 + $0x1c]]
        %v732 = vstv %s731
        %v733 = vmul.f32 %v550, %v732
        %v734 = vmul.f32 %v551, %v732
        %v735 = vmul.f32 %v732, 0.0
        %739 = vrot.lane.b32.xlu0 %v733, 64
        %v740 = vpop.permute.xlu0 %739
        %741 = vrot.lane.b32.xlu0 %v734, 64
        %v742 = vpop.permute.xlu0 %741
        %743 = vrot.lane.b32.xlu0 %v735, 64
        %v744 = vpop.permute.xlu0 %743
        %vm745 = vcmask 523264
        %v746 = vsel %vm745, %v740, %v742
        %v747 = vsel %vm745, %v742, %v744
        %v751 = vadd.f32 %v728, %v740
        %v752 = vadd.f32 %v729, %v746
        %v753 = vadd.f32 %v730, %v747
        %s754 = sld [smem:[#allocation2 + $0x4d]]
        %v755 = vstv %s754
        %v756 = vmul.f32 %v564, %v755
        %v757 = vmul.f32 %v577, %v755
        %v758 = vmul.f32 %v755, 0.0
        %762 = vrot.lane.b32.xlu0 %v756, 64
        %v763 = vpop.permute.xlu0 %762
        %764 = vrot.lane.b32.xlu0 %v757, 64
        %v765 = vpop.permute.xlu0 %764
        %766 = vrot.lane.b32.xlu0 %v758, 64
        %v767 = vpop.permute.xlu0 %766
        %v768 = vsel %vm745, %v763, %v765
        %v769 = vsel %vm745, %v765, %v767
        %v773 = vadd.f32 %v751, %v763
        %v774 = vadd.f32 %v752, %v768
        %v775 = vadd.f32 %v753, %v769
        %s776 = sld [smem:[#allocation2 + $0x23]]
        %v777 = vstv %s776
        %v778 = vmul.f32 %v550, %v777
        %v779 = vmul.f32 %v551, %v777
        %v780 = vmul.f32 %v777, 0.0
        %784 = vrot.lane.b32.xlu0 %v778, 48
        %v785 = vpop.permute.xlu0 %784
        %786 = vrot.lane.b32.xlu0 %v779, 48
        %v787 = vpop.permute.xlu0 %786
        %788 = vrot.lane.b32.xlu0 %v780, 48
        %v789 = vpop.permute.xlu0 %788
        %vm790 = vcmask 392192
        %v791 = vsel %vm790, %v785, %v787
        %v792 = vsel %vm790, %v787, %v789
        %v796 = vadd.f32 %v773, %v785
        %v797 = vadd.f32 %v774, %v791
        %v798 = vadd.f32 %v775, %v792
        %s799 = sld [smem:[#allocation2 + $0x54]]
        %v800 = vstv %s799
        %v801 = vmul.f32 %v564, %v800
        %v802 = vmul.f32 %v577, %v800
        %v803 = vmul.f32 %v800, 0.0
        %807 = vrot.lane.b32.xlu0 %v801, 48
        %v808 = vpop.permute.xlu0 %807
        %809 = vrot.lane.b32.xlu0 %v802, 48
        %v810 = vpop.permute.xlu0 %809
        %811 = vrot.lane.b32.xlu0 %v803, 48
        %v812 = vpop.permute.xlu0 %811
        %v813 = vsel %vm790, %v808, %v810
        %v814 = vsel %vm790, %v810, %v812
        %v818 = vadd.f32 %v796, %v808
        %v819 = vadd.f32 %v797, %v813
        %v820 = vadd.f32 %v798, %v814
        %s821 = sld [smem:[#allocation2 + $0x2a]]
        %v822 = vstv %s821
        %v823 = vmul.f32 %v550, %v822
        %v824 = vmul.f32 %v551, %v822
        %v825 = vmul.f32 %v822, 0.0
        %829 = vrot.lane.b32.xlu0 %v823, 32
        %v830 = vpop.permute.xlu0 %829
        %831 = vrot.lane.b32.xlu0 %v824, 32
        %v832 = vpop.permute.xlu0 %831
        %833 = vrot.lane.b32.xlu0 %v825, 32
        %v834 = vpop.permute.xlu0 %833
        %vm835 = vcmask 261120
        %v836 = vsel %vm835, %v830, %v832
        %v837 = vsel %vm835, %v832, %v834
        %v841 = vadd.f32 %v818, %v830
        %v842 = vadd.f32 %v819, %v836
        %v843 = vadd.f32 %v820, %v837
        %s844 = sld [smem:[#allocation2 + $0x5b]]
        %v845 = vstv %s844
        %v846 = vmul.f32 %v564, %v845
        %v847 = vmul.f32 %v577, %v845
        %v848 = vmul.f32 %v845, 0.0
        %852 = vrot.lane.b32.xlu0 %v846, 32
        %v853 = vpop.permute.xlu0 %852
        %854 = vrot.lane.b32.xlu0 %v847, 32
        %v855 = vpop.permute.xlu0 %854
        %856 = vrot.lane.b32.xlu0 %v848, 32
        %v857 = vpop.permute.xlu0 %856
        %v858 = vsel %vm835, %v853, %v855
        %v859 = vsel %vm835, %v855, %v857
        %v863 = vadd.f32 %v841, %v853
        %v864 = vadd.f32 %v842, %v858
        %v865 = vadd.f32 %v843, %v859
        %868 = vrot.lane.b32.xlu0 %v578, 77
        %v869 = vpop.permute.xlu0 %868
        %870 = vrot.lane.b32.xlu0 %v579, 77
        %v871 = vpop.permute.xlu0 %870
        %vm872 = vcmask 629760
        %v873 = vsel %vm872, %v869, %v871
        %v877 = vmul.f32 %v863, %v869
        %v878 = vmul.f32 %v864, %v873
        %v879 = vmul.f32 %v865, %v871
        %v880 = vadd.f32 %v877, 0.0
        %v881 = vadd.f32 %v878, 0.0
        %v882 = vadd.f32 %v879, 0.0
        %s883 = sld [smem:[#allocation2 + $0x1]]
        %v884 = vstv %s883
        %v885 = vmul.f32 %v884, 0.0
        %v886 = vmul.f32 %v550, %v884
        %v887 = vmul.f32 %v551, %v884
        %v888 = vadd.f32 %v885, 0.0
        %v889 = vadd.f32 %v886, 0.0
        %v890 = vadd.f32 %v887, 0.0
        %s891 = sld [smem:[#allocation2 + $0x32]]
        %v892 = vstv %s891
        %v893 = vmul.f32 %v892, 0.0
        %v894 = vmul.f32 %v564, %v892
        %v895 = vmul.f32 %v577, %v892
        %v896 = vadd.f32 %v888, %v893
        %v897 = vadd.f32 %v889, %v894
        %v898 = vadd.f32 %v890, %v895
        %s899 = sld [smem:[#allocation2 + $0x8]]
        %v900 = vstv %s899
        %v901 = vmul.f32 %v900, 0.0
        %v902 = vmul.f32 %v550, %v900
        %v903 = vmul.f32 %v551, %v900
        %907 = vrot.lane.b32.xlu0 %v901, 112
        %v908 = vpop.permute.xlu0 %907
        %909 = vrot.lane.b32.xlu0 %v902, 112
        %v910 = vpop.permute.xlu0 %909
        %911 = vrot.lane.b32.xlu0 %v903, 112
        %v912 = vpop.permute.xlu0 %911
        %v913 = vsel %vm610, %v908, %v910
        %v914 = vsel %vm610, %v910, %v912
        %v918 = vadd.f32 %v896, %v913
        %v919 = vadd.f32 %v897, %v914
        %v920 = vadd.f32 %v898, %v912
        %s921 = sld [smem:[#allocation2 + $0x39]]
        %v922 = vstv %s921
        %v923 = vmul.f32 %v922, 0.0
        %v924 = vmul.f32 %v564, %v922
        %v925 = vmul.f32 %v577, %v922
        %929 = vrot.lane.b32.xlu0 %v923, 112
        %v930 = vpop.permute.xlu0 %929
        %931 = vrot.lane.b32.xlu0 %v924, 112
        %v932 = vpop.permute.xlu0 %931
        %933 = vrot.lane.b32.xlu0 %v925, 112
        %v934 = vpop.permute.xlu0 %933
        %v935 = vsel %vm610, %v930, %v932
        %v936 = vsel %vm610, %v932, %v934
        %v940 = vadd.f32 %v918, %v935
        %v941 = vadd.f32 %v919, %v936
        %v942 = vadd.f32 %v920, %v934
        %s943 = sld [smem:[#allocation2 + $0xf]]
        %v944 = vstv %s943
        %v945 = vmul.f32 %v944, 0.0
        %v946 = vmul.f32 %v550, %v944
        %v947 = vmul.f32 %v551, %v944
        %951 = vrot.lane.b32.xlu0 %v945, 96
        %v952 = vpop.permute.xlu0 %951
        %953 = vrot.lane.b32.xlu0 %v946, 96
        %v954 = vpop.permute.xlu0 %953
        %955 = vrot.lane.b32.xlu0 %v947, 96
        %v956 = vpop.permute.xlu0 %955
        %v957 = vsel %vm655, %v952, %v954
        %v958 = vsel %vm655, %v954, %v956
        %v962 = vadd.f32 %v940, %v957
        %v963 = vadd.f32 %v941, %v958
        %v964 = vadd.f32 %v942, %v956
        %s965 = sld [smem:[#allocation2 + $0x40]]
        %v966 = vstv %s965
        %v967 = vmul.f32 %v966, 0.0
        %v968 = vmul.f32 %v564, %v966
        %v969 = vmul.f32 %v577, %v966
        %973 = vrot.lane.b32.xlu0 %v967, 96
        %v974 = vpop.permute.xlu0 %973
        %975 = vrot.lane.b32.xlu0 %v968, 96
        %v976 = vpop.permute.xlu0 %975
        %977 = vrot.lane.b32.xlu0 %v969, 96
        %v978 = vpop.permute.xlu0 %977
        %v979 = vsel %vm655, %v974, %v976
        %v980 = vsel %vm655, %v976, %v978
        %v984 = vadd.f32 %v962, %v979
        %v985 = vadd.f32 %v963, %v980
        %v986 = vadd.f32 %v964, %v978
        %s987 = sld [smem:[#allocation2 + $0x16]]
        %v988 = vstv %s987
        %v989 = vmul.f32 %v988, 0.0
        %v990 = vmul.f32 %v550, %v988
        %v991 = vmul.f32 %v551, %v988
        %995 = vrot.lane.b32.xlu0 %v989, 80
        %v996 = vpop.permute.xlu0 %995
        %997 = vrot.lane.b32.xlu0 %v990, 80
        %v998 = vpop.permute.xlu0 %997
        %999 = vrot.lane.b32.xlu0 %v991, 80
        %v1000 = vpop.permute.xlu0 %999
        %v1001 = vsel %vm700, %v996, %v998
        %v1002 = vsel %vm700, %v998, %v1000
        %v1006 = vadd.f32 %v984, %v1001
        %v1007 = vadd.f32 %v985, %v1002
        %v1008 = vadd.f32 %v986, %v1000
        %s1009 = sld [smem:[#allocation2 + $0x47]]
        %v1010 = vstv %s1009
        %v1011 = vmul.f32 %v1010, 0.0
        %v1012 = vmul.f32 %v564, %v1010
        %v1013 = vmul.f32 %v577, %v1010
        %1017 = vrot.lane.b32.xlu0 %v1011, 80
        %v1018 = vpop.permute.xlu0 %1017
        %1019 = vrot.lane.b32.xlu0 %v1012, 80
        %v1020 = vpop.permute.xlu0 %1019
        %1021 = vrot.lane.b32.xlu0 %v1013, 80
        %v1022 = vpop.permute.xlu0 %1021
        %v1023 = vsel %vm700, %v1018, %v1020
        %v1024 = vsel %vm700, %v1020, %v1022
        %v1028 = vadd.f32 %v1006, %v1023
        %v1029 = vadd.f32 %v1007, %v1024
        %v1030 = vadd.f32 %v1008, %v1022
        %s1031 = sld [smem:[#allocation2 + $0x1d]]
        %v1032 = vstv %s1031
        %v1033 = vmul.f32 %v550, %v1032
        %v1034 = vmul.f32 %v551, %v1032
        %v1035 = vmul.f32 %v1032, 0.0
        %1039 = vrot.lane.b32.xlu0 %v1033, 64
        %v1040 = vpop.permute.xlu0 %1039
        %1041 = vrot.lane.b32.xlu0 %v1034, 64
        %v1042 = vpop.permute.xlu0 %1041
        %1043 = vrot.lane.b32.xlu0 %v1035, 64
        %v1044 = vpop.permute.xlu0 %1043
        %v1045 = vsel %vm745, %v1040, %v1042
        %v1046 = vsel %vm745, %v1042, %v1044
        %v1050 = vadd.f32 %v1028, %v1040
        %v1051 = vadd.f32 %v1029, %v1045
        %v1052 = vadd.f32 %v1030, %v1046
        %s1053 = sld [smem:[#allocation2 + $0x4e]]
        %v1054 = vstv %s1053
        %v1055 = vmul.f32 %v564, %v1054
        %v1056 = vmul.f32 %v577, %v1054
        %v1057 = vmul.f32 %v1054, 0.0
        %1061 = vrot.lane.b32.xlu0 %v1055, 64
        %v1062 = vpop.permute.xlu0 %1061
        %1063 = vrot.lane.b32.xlu0 %v1056, 64
        %v1064 = vpop.permute.xlu0 %1063
        %1065 = vrot.lane.b32.xlu0 %v1057, 64
        %v1066 = vpop.permute.xlu0 %1065
        %v1067 = vsel %vm745, %v1062, %v1064
        %v1068 = vsel %vm745, %v1064, %v1066
        %v1072 = vadd.f32 %v1050, %v1062
        %v1073 = vadd.f32 %v1051, %v1067
        %v1074 = vadd.f32 %v1052, %v1068
        %s1075 = sld [smem:[#allocation2 + $0x24]]
        %v1076 = vstv %s1075
        %v1077 = vmul.f32 %v550, %v1076
        %v1078 = vmul.f32 %v551, %v1076
        %v1079 = vmul.f32 %v1076, 0.0
        %1083 = vrot.lane.b32.xlu0 %v1077, 48
        %v1084 = vpop.permute.xlu0 %1083
        %1085 = vrot.lane.b32.xlu0 %v1078, 48
        %v1086 = vpop.permute.xlu0 %1085
        %1087 = vrot.lane.b32.xlu0 %v1079, 48
        %v1088 = vpop.permute.xlu0 %1087
        %v1089 = vsel %vm790, %v1084, %v1086
        %v1090 = vsel %vm790, %v1086, %v1088
        %v1094 = vadd.f32 %v1072, %v1084
        %v1095 = vadd.f32 %v1073, %v1089
        %v1096 = vadd.f32 %v1074, %v1090
        %s1097 = sld [smem:[#allocation2 + $0x55]]
        %v1098 = vstv %s1097
        %v1099 = vmul.f32 %v564, %v1098
        %v1100 = vmul.f32 %v577, %v1098
        %v1101 = vmul.f32 %v1098, 0.0
        %1105 = vrot.lane.b32.xlu0 %v1099, 48
        %v1106 = vpop.permute.xlu0 %1105
        %1107 = vrot.lane.b32.xlu0 %v1100, 48
        %v1108 = vpop.permute.xlu0 %1107
        %1109 = vrot.lane.b32.xlu0 %v1101, 48
        %v1110 = vpop.permute.xlu0 %1109
        %v1111 = vsel %vm790, %v1106, %v1108
        %v1112 = vsel %vm790, %v1108, %v1110
        %v1116 = vadd.f32 %v1094, %v1106
        %v1117 = vadd.f32 %v1095, %v1111
        %v1118 = vadd.f32 %v1096, %v1112
        %s1119 = sld [smem:[#allocation2 + $0x2b]]
        %v1120 = vstv %s1119
        %v1121 = vmul.f32 %v550, %v1120
        %v1122 = vmul.f32 %v551, %v1120
        %v1123 = vmul.f32 %v1120, 0.0
        %1127 = vrot.lane.b32.xlu0 %v1121, 32
        %v1128 = vpop.permute.xlu0 %1127
        %1129 = vrot.lane.b32.xlu0 %v1122, 32
        %v1130 = vpop.permute.xlu0 %1129
        %1131 = vrot.lane.b32.xlu0 %v1123, 32
        %v1132 = vpop.permute.xlu0 %1131
        %v1133 = vsel %vm835, %v1128, %v1130
        %v1134 = vsel %vm835, %v1130, %v1132
        %v1138 = vadd.f32 %v1116, %v1128
        %v1139 = vadd.f32 %v1117, %v1133
        %v1140 = vadd.f32 %v1118, %v1134
        %s1141 = sld [smem:[#allocation2 + $0x5c]]
        %v1142 = vstv %s1141
        %v1143 = vmul.f32 %v564, %v1142
        %v1144 = vmul.f32 %v577, %v1142
        %v1145 = vmul.f32 %v1142, 0.0
        %1149 = vrot.lane.b32.xlu0 %v1143, 32
        %v1150 = vpop.permute.xlu0 %1149
        %1151 = vrot.lane.b32.xlu0 %v1144, 32
        %v1152 = vpop.permute.xlu0 %1151
        %1153 = vrot.lane.b32.xlu0 %v1145, 32
        %v1154 = vpop.permute.xlu0 %1153
        %v1155 = vsel %vm835, %v1150, %v1152
        %v1156 = vsel %vm835, %v1152, %v1154
        %v1160 = vadd.f32 %v1138, %v1150
        %v1161 = vadd.f32 %v1139, %v1155
        %v1162 = vadd.f32 %v1140, %v1156
        %v1163 = vrot.slane %v578, 1
        %v1164 = vrot.slane %v579, 1
        %1165 = vrot.lane.b32.xlu0 %v1163, 78
        %v1166 = vpop.permute.xlu0 %1165
        %1167 = vrot.lane.b32.xlu0 %v1164, 78
        %v1168 = vpop.permute.xlu0 %1167
        %vm1169 = vcmask 637952
        %v1170 = vsel %vm1169, %v1166, %v1168
        %v1174 = vmul.f32 %v1160, %v1166
        %v1175 = vmul.f32 %v1161, %v1170
        %v1176 = vmul.f32 %v1162, %v1168
        %1180 = vrot.lane.b32.xlu0 %v1174, 127
        %v1181 = vpop.permute.xlu0 %1180
        %1182 = vrot.lane.b32.xlu0 %v1175, 127
        %v1183 = vpop.permute.xlu0 %1182
        %1184 = vrot.lane.b32.xlu0 %v1176, 127
        %v1185 = vpop.permute.xlu0 %1184
        %vm1186 = vcmask 1039360
        %v1187 = vsel %vm1186, %v1181, %v1183
        %v1188 = vsel %vm1186, %v1183, %v1185
        %v1192 = vadd.f32 %v880, %v1187
        %v1193 = vadd.f32 %v881, %v1188
        %v1194 = vadd.f32 %v882, %v1185
        %s1195 = sld [smem:[#allocation2 + $0x2]]
        %v1196 = vstv %s1195
        %v1197 = vmul.f32 %v1196, 0.0
        %v1198 = vmul.f32 %v550, %v1196
        %v1199 = vmul.f32 %v551, %v1196
        %v1200 = vadd.f32 %v1197, 0.0
        %v1201 = vadd.f32 %v1198, 0.0
        %v1202 = vadd.f32 %v1199, 0.0
        %s1203 = sld [smem:[#allocation2 + $0x33]]
        %v1204 = vstv %s1203
        %v1205 = vmul.f32 %v1204, 0.0
        %v1206 = vmul.f32 %v564, %v1204
        %v1207 = vmul.f32 %v577, %v1204
        %v1208 = vadd.f32 %v1200, %v1205
        %v1209 = vadd.f32 %v1201, %v1206
        %v1210 = vadd.f32 %v1202, %v1207
        %s1211 = sld [smem:[#allocation2 + $0x9]]
        %v1212 = vstv %s1211
        %v1213 = vmul.f32 %v1212, 0.0
        %v1214 = vmul.f32 %v550, %v1212
        %v1215 = vmul.f32 %v551, %v1212
        %1219 = vrot.lane.b32.xlu0 %v1213, 112
        %v1220 = vpop.permute.xlu0 %1219
        %1221 = vrot.lane.b32.xlu0 %v1214, 112
        %v1222 = vpop.permute.xlu0 %1221
        %1223 = vrot.lane.b32.xlu0 %v1215, 112
        %v1224 = vpop.permute.xlu0 %1223
        %v1225 = vsel %vm610, %v1220, %v1222
        %v1226 = vsel %vm610, %v1222, %v1224
        %v1230 = vadd.f32 %v1208, %v1225
        %v1231 = vadd.f32 %v1209, %v1226
        %v1232 = vadd.f32 %v1210, %v1224
        %s1233 = sld [smem:[#allocation2 + $0x3a]]
        %v1234 = vstv %s1233
        %v1235 = vmul.f32 %v1234, 0.0
        %v1236 = vmul.f32 %v564, %v1234
        %v1237 = vmul.f32 %v577, %v1234
        %1241 = vrot.lane.b32.xlu0 %v1235, 112
        %v1242 = vpop.permute.xlu0 %1241
        %1243 = vrot.lane.b32.xlu0 %v1236, 112
        %v1244 = vpop.permute.xlu0 %1243
        %1245 = vrot.lane.b32.xlu0 %v1237, 112
        %v1246 = vpop.permute.xlu0 %1245
        %v1247 = vsel %vm610, %v1242, %v1244
        %v1248 = vsel %vm610, %v1244, %v1246
        %v1252 = vadd.f32 %v1230, %v1247
        %v1253 = vadd.f32 %v1231, %v1248
        %v1254 = vadd.f32 %v1232, %v1246
        %s1255 = sld [smem:[#allocation2 + $0x10]]
        %v1256 = vstv %s1255
        %v1257 = vmul.f32 %v1256, 0.0
        %v1258 = vmul.f32 %v550, %v1256
        %v1259 = vmul.f32 %v551, %v1256
        %1263 = vrot.lane.b32.xlu0 %v1257, 96
        %v1264 = vpop.permute.xlu0 %1263
        %1265 = vrot.lane.b32.xlu0 %v1258, 96
        %v1266 = vpop.permute.xlu0 %1265
        %1267 = vrot.lane.b32.xlu0 %v1259, 96
        %v1268 = vpop.permute.xlu0 %1267
        %v1269 = vsel %vm655, %v1264, %v1266
        %v1270 = vsel %vm655, %v1266, %v1268
        %v1274 = vadd.f32 %v1252, %v1269
        %v1275 = vadd.f32 %v1253, %v1270
        %v1276 = vadd.f32 %v1254, %v1268
        %s1277 = sld [smem:[#allocation2 + $0x41]]
        %v1278 = vstv %s1277
        %v1279 = vmul.f32 %v1278, 0.0
        %v1280 = vmul.f32 %v564, %v1278
        %v1281 = vmul.f32 %v577, %v1278
        %1285 = vrot.lane.b32.xlu0 %v1279, 96
        %v1286 = vpop.permute.xlu0 %1285
        %1287 = vrot.lane.b32.xlu0 %v1280, 96
        %v1288 = vpop.permute.xlu0 %1287
        %1289 = vrot.lane.b32.xlu0 %v1281, 96
        %v1290 = vpop.permute.xlu0 %1289
        %v1291 = vsel %vm655, %v1286, %v1288
        %v1292 = vsel %vm655, %v1288, %v1290
        %v1296 = vadd.f32 %v1274, %v1291
        %v1297 = vadd.f32 %v1275, %v1292
        %v1298 = vadd.f32 %v1276, %v1290
        %s1299 = sld [smem:[#allocation2 + $0x17]]
        %v1300 = vstv %s1299
        %v1301 = vmul.f32 %v1300, 0.0
        %v1302 = vmul.f32 %v550, %v1300
        %v1303 = vmul.f32 %v551, %v1300
        %1307 = vrot.lane.b32.xlu0 %v1301, 80
        %v1308 = vpop.permute.xlu0 %1307
        %1309 = vrot.lane.b32.xlu0 %v1302, 80
        %v1310 = vpop.permute.xlu0 %1309
        %1311 = vrot.lane.b32.xlu0 %v1303, 80
        %v1312 = vpop.permute.xlu0 %1311
        %v1313 = vsel %vm700, %v1308, %v1310
        %v1314 = vsel %vm700, %v1310, %v1312
        %v1318 = vadd.f32 %v1296, %v1313
        %v1319 = vadd.f32 %v1297, %v1314
        %v1320 = vadd.f32 %v1298, %v1312
        %s1321 = sld [smem:[#allocation2 + $0x48]]
        %v1322 = vstv %s1321
        %v1323 = vmul.f32 %v1322, 0.0
        %v1324 = vmul.f32 %v564, %v1322
        %v1325 = vmul.f32 %v577, %v1322
        %1329 = vrot.lane.b32.xlu0 %v1323, 80
        %v1330 = vpop.permute.xlu0 %1329
        %1331 = vrot.lane.b32.xlu0 %v1324, 80
        %v1332 = vpop.permute.xlu0 %1331
        %1333 = vrot.lane.b32.xlu0 %v1325, 80
        %v1334 = vpop.permute.xlu0 %1333
        %v1335 = vsel %vm700, %v1330, %v1332
        %v1336 = vsel %vm700, %v1332, %v1334
        %v1340 = vadd.f32 %v1318, %v1335
        %v1341 = vadd.f32 %v1319, %v1336
        %v1342 = vadd.f32 %v1320, %v1334
        %s1343 = sld [smem:[#allocation2 + $0x1e]]
        %v1344 = vstv %s1343
        %v1345 = vmul.f32 %v550, %v1344
        %v1346 = vmul.f32 %v551, %v1344
        %v1347 = vmul.f32 %v1344, 0.0
        %1351 = vrot.lane.b32.xlu0 %v1345, 64
        %v1352 = vpop.permute.xlu0 %1351
        %1353 = vrot.lane.b32.xlu0 %v1346, 64
        %v1354 = vpop.permute.xlu0 %1353
        %1355 = vrot.lane.b32.xlu0 %v1347, 64
        %v1356 = vpop.permute.xlu0 %1355
        %v1357 = vsel %vm745, %v1352, %v1354
        %v1358 = vsel %vm745, %v1354, %v1356
        %v1362 = vadd.f32 %v1340, %v1352
        %v1363 = vadd.f32 %v1341, %v1357
        %v1364 = vadd.f32 %v1342, %v1358
        %s1365 = sld [smem:[#allocation2 + $0x4f]]
        %v1366 = vstv %s1365
        %v1367 = vmul.f32 %v564, %v1366
        %v1368 = vmul.f32 %v577, %v1366
        %v1369 = vmul.f32 %v1366, 0.0
        %1373 = vrot.lane.b32.xlu0 %v1367, 64
        %v1374 = vpop.permute.xlu0 %1373
        %1375 = vrot.lane.b32.xlu0 %v1368, 64
        %v1376 = vpop.permute.xlu0 %1375
        %1377 = vrot.lane.b32.xlu0 %v1369, 64
        %v1378 = vpop.permute.xlu0 %1377
        %v1379 = vsel %vm745, %v1374, %v1376
        %v1380 = vsel %vm745, %v1376, %v1378
        %v1384 = vadd.f32 %v1362, %v1374
        %v1385 = vadd.f32 %v1363, %v1379
        %v1386 = vadd.f32 %v1364, %v1380
        %s1387 = sld [smem:[#allocation2 + $0x25]]
        %v1388 = vstv %s1387
        %v1389 = vmul.f32 %v550, %v1388
        %v1390 = vmul.f32 %v551, %v1388
        %v1391 = vmul.f32 %v1388, 0.0
        %1395 = vrot.lane.b32.xlu0 %v1389, 48
        %v1396 = vpop.permute.xlu0 %1395
        %1397 = vrot.lane.b32.xlu0 %v1390, 48
        %v1398 = vpop.permute.xlu0 %1397
        %1399 = vrot.lane.b32.xlu0 %v1391, 48
        %v1400 = vpop.permute.xlu0 %1399
        %v1401 = vsel %vm790, %v1396, %v1398
        %v1402 = vsel %vm790, %v1398, %v1400
        %v1406 = vadd.f32 %v1384, %v1396
        %v1407 = vadd.f32 %v1385, %v1401
        %v1408 = vadd.f32 %v1386, %v1402
        %s1409 = sld [smem:[#allocation2 + $0x56]]
        %v1410 = vstv %s1409
        %v1411 = vmul.f32 %v564, %v1410
        %v1412 = vmul.f32 %v577, %v1410
        %v1413 = vmul.f32 %v1410, 0.0
        %1417 = vrot.lane.b32.xlu0 %v1411, 48
        %v1418 = vpop.permute.xlu0 %1417
        %1419 = vrot.lane.b32.xlu0 %v1412, 48
        %v1420 = vpop.permute.xlu0 %1419
        %1421 = vrot.lane.b32.xlu0 %v1413, 48
        %v1422 = vpop.permute.xlu0 %1421
        %v1423 = vsel %vm790, %v1418, %v1420
        %v1424 = vsel %vm790, %v1420, %v1422
        %v1428 = vadd.f32 %v1406, %v1418
        %v1429 = vadd.f32 %v1407, %v1423
        %v1430 = vadd.f32 %v1408, %v1424
        %s1431 = sld [smem:[#allocation2 + $0x2c]]
        %v1432 = vstv %s1431
        %v1433 = vmul.f32 %v550, %v1432
        %v1434 = vmul.f32 %v551, %v1432
        %v1435 = vmul.f32 %v1432, 0.0
        %1439 = vrot.lane.b32.xlu0 %v1433, 32
        %v1440 = vpop.permute.xlu0 %1439
        %1441 = vrot.lane.b32.xlu0 %v1434, 32
        %v1442 = vpop.permute.xlu0 %1441
        %1443 = vrot.lane.b32.xlu0 %v1435, 32
        %v1444 = vpop.permute.xlu0 %1443
        %v1445 = vsel %vm835, %v1440, %v1442
        %v1446 = vsel %vm835, %v1442, %v1444
        %v1450 = vadd.f32 %v1428, %v1440
        %v1451 = vadd.f32 %v1429, %v1445
        %v1452 = vadd.f32 %v1430, %v1446
        %s1453 = sld [smem:[#allocation2 + $0x5d]]
        %v1454 = vstv %s1453
        %v1455 = vmul.f32 %v564, %v1454
        %v1456 = vmul.f32 %v577, %v1454
        %v1457 = vmul.f32 %v1454, 0.0
        %1461 = vrot.lane.b32.xlu0 %v1455, 32
        %v1462 = vpop.permute.xlu0 %1461
        %1463 = vrot.lane.b32.xlu0 %v1456, 32
        %v1464 = vpop.permute.xlu0 %1463
        %1465 = vrot.lane.b32.xlu0 %v1457, 32
        %v1466 = vpop.permute.xlu0 %1465
        %v1467 = vsel %vm835, %v1462, %v1464
        %v1468 = vsel %vm835, %v1464, %v1466
        %v1472 = vadd.f32 %v1450, %v1462
        %v1473 = vadd.f32 %v1451, %v1467
        %v1474 = vadd.f32 %v1452, %v1468
        %v1475 = vrot.slane %v578, 2
        %v1476 = vrot.slane %v579, 2
        %1477 = vrot.lane.b32.xlu0 %v1475, 79
        %v1478 = vpop.permute.xlu0 %1477
        %1479 = vrot.lane.b32.xlu0 %v1476, 79
        %v1480 = vpop.permute.xlu0 %1479
        %vm1481 = vcmask 646144
        %v1482 = vsel %vm1481, %v1478, %v1480
        %v1486 = vmul.f32 %v1472, %v1478
        %v1487 = vmul.f32 %v1473, %v1482
        %v1488 = vmul.f32 %v1474, %v1480
        %1492 = vrot.lane.b32.xlu0 %v1486, 126
        %v1493 = vpop.permute.xlu0 %1492
        %1494 = vrot.lane.b32.xlu0 %v1487, 126
        %v1495 = vpop.permute.xlu0 %1494
        %1496 = vrot.lane.b32.xlu0 %v1488, 126
        %v1497 = vpop.permute.xlu0 %1496
        %vm1498 = vcmask 1031168
        %v1499 = vsel %vm1498, %v1493, %v1495
        %v1500 = vsel %vm1498, %v1495, %v1497
        %v1504 = vadd.f32 %v1192, %v1499
        %v1505 = vadd.f32 %v1193, %v1500
        %v1506 = vadd.f32 %v1194, %v1497
        %s1507 = sld [smem:[#allocation2 + $0x3]]
        %v1508 = vstv %s1507
        %v1509 = vmul.f32 %v1508, 0.0
        %v1510 = vmul.f32 %v550, %v1508
        %v1511 = vmul.f32 %v551, %v1508
        %v1512 = vadd.f32 %v1509, 0.0
        %v1513 = vadd.f32 %v1510, 0.0
        %v1514 = vadd.f32 %v1511, 0.0
        %s1515 = sld [smem:[#allocation2 + $0x34]]
        %v1516 = vstv %s1515
        %v1517 = vmul.f32 %v1516, 0.0
        %v1518 = vmul.f32 %v564, %v1516
        %v1519 = vmul.f32 %v577, %v1516
        %v1520 = vadd.f32 %v1512, %v1517
        %v1521 = vadd.f32 %v1513, %v1518
        %v1522 = vadd.f32 %v1514, %v1519
        %s1523 = sld [smem:[#allocation2 + $0xa]]
        %v1524 = vstv %s1523
        %v1525 = vmul.f32 %v1524, 0.0
        %v1526 = vmul.f32 %v550, %v1524
        %v1527 = vmul.f32 %v551, %v1524
        %1531 = vrot.lane.b32.xlu0 %v1525, 112
        %v1532 = vpop.permute.xlu0 %1531
        %1533 = vrot.lane.b32.xlu0 %v1526, 112
        %v1534 = vpop.permute.xlu0 %1533
        %1535 = vrot.lane.b32.xlu0 %v1527, 112
        %v1536 = vpop.permute.xlu0 %1535
        %v1537 = vsel %vm610, %v1532, %v1534
        %v1538 = vsel %vm610, %v1534, %v1536
        %v1542 = vadd.f32 %v1520, %v1537
        %v1543 = vadd.f32 %v1521, %v1538
        %v1544 = vadd.f32 %v1522, %v1536
        %s1545 = sld [smem:[#allocation2 + $0x3b]]
        %v1546 = vstv %s1545
        %v1547 = vmul.f32 %v1546, 0.0
        %v1548 = vmul.f32 %v564, %v1546
        %v1549 = vmul.f32 %v577, %v1546
        %1553 = vrot.lane.b32.xlu0 %v1547, 112
        %v1554 = vpop.permute.xlu0 %1553
        %1555 = vrot.lane.b32.xlu0 %v1548, 112
        %v1556 = vpop.permute.xlu0 %1555
        %1557 = vrot.lane.b32.xlu0 %v1549, 112
        %v1558 = vpop.permute.xlu0 %1557
        %v1559 = vsel %vm610, %v1554, %v1556
        %v1560 = vsel %vm610, %v1556, %v1558
        %v1564 = vadd.f32 %v1542, %v1559
        %v1565 = vadd.f32 %v1543, %v1560
        %v1566 = vadd.f32 %v1544, %v1558
        %s1567 = sld [smem:[#allocation2 + $0x11]]
        %v1568 = vstv %s1567
        %v1569 = vmul.f32 %v1568, 0.0
        %v1570 = vmul.f32 %v550, %v1568
        %v1571 = vmul.f32 %v551, %v1568
        %1575 = vrot.lane.b32.xlu0 %v1569, 96
        %v1576 = vpop.permute.xlu0 %1575
        %1577 = vrot.lane.b32.xlu0 %v1570, 96
        %v1578 = vpop.permute.xlu0 %1577
        %1579 = vrot.lane.b32.xlu0 %v1571, 96
        %v1580 = vpop.permute.xlu0 %1579
        %v1581 = vsel %vm655, %v1576, %v1578
        %v1582 = vsel %vm655, %v1578, %v1580
        %v1586 = vadd.f32 %v1564, %v1581
        %v1587 = vadd.f32 %v1565, %v1582
        %v1588 = vadd.f32 %v1566, %v1580
        %s1589 = sld [smem:[#allocation2 + $0x42]]
        %v1590 = vstv %s1589
        %v1591 = vmul.f32 %v1590, 0.0
        %v1592 = vmul.f32 %v564, %v1590
        %v1593 = vmul.f32 %v577, %v1590
        %1597 = vrot.lane.b32.xlu0 %v1591, 96
        %v1598 = vpop.permute.xlu0 %1597
        %1599 = vrot.lane.b32.xlu0 %v1592, 96
        %v1600 = vpop.permute.xlu0 %1599
        %1601 = vrot.lane.b32.xlu0 %v1593, 96
        %v1602 = vpop.permute.xlu0 %1601
        %v1603 = vsel %vm655, %v1598, %v1600
        %v1604 = vsel %vm655, %v1600, %v1602
        %v1608 = vadd.f32 %v1586, %v1603
        %v1609 = vadd.f32 %v1587, %v1604
        %v1610 = vadd.f32 %v1588, %v1602
        %s1611 = sld [smem:[#allocation2 + $0x18]]
        %v1612 = vstv %s1611
        %v1613 = vmul.f32 %v550, %v1612
        %v1614 = vmul.f32 %v551, %v1612
        %1617 = vrot.lane.b32.xlu0 %v1613, 80
        %v1618 = vpop.permute.xlu0 %1617
        %1619 = vrot.lane.b32.xlu0 %v1614, 80
        %v1620 = vpop.permute.xlu0 %1619
        %v1621 = vsel %vm700, %v1618, %v1620
        %v1625 = vadd.f32 %v1608, %v1618
        %v1626 = vadd.f32 %v1609, %v1621
        %v1627 = vadd.f32 %v1610, %v1620
        %s1628 = sld [smem:[#allocation2 + $0x49]]
        %v1629 = vstv %s1628
        %v1630 = vmul.f32 %v564, %v1629
        %v1631 = vmul.f32 %v577, %v1629
        %1634 = vrot.lane.b32.xlu0 %v1630, 80
        %v1635 = vpop.permute.xlu0 %1634
        %1636 = vrot.lane.b32.xlu0 %v1631, 80
        %v1637 = vpop.permute.xlu0 %1636
        %v1638 = vsel %vm700, %v1635, %v1637
        %v1642 = vadd.f32 %v1625, %v1635
        %v1643 = vadd.f32 %v1626, %v1638
        %v1644 = vadd.f32 %v1627, %v1637
        %s1645 = sld [smem:[#allocation2 + $0x1f]]
        %v1646 = vstv %s1645
        %v1647 = vmul.f32 %v550, %v1646
        %v1648 = vmul.f32 %v551, %v1646
        %v1649 = vmul.f32 %v1646, 0.0
        %1653 = vrot.lane.b32.xlu0 %v1647, 64
        %v1654 = vpop.permute.xlu0 %1653
        %1655 = vrot.lane.b32.xlu0 %v1648, 64
        %v1656 = vpop.permute.xlu0 %1655
        %1657 = vrot.lane.b32.xlu0 %v1649, 64
        %v1658 = vpop.permute.xlu0 %1657
        %v1659 = vsel %vm745, %v1654, %v1656
        %v1660 = vsel %vm745, %v1656, %v1658
        %v1664 = vadd.f32 %v1642, %v1654
        %v1665 = vadd.f32 %v1643, %v1659
        %v1666 = vadd.f32 %v1644, %v1660
        %s1667 = sld [smem:[#allocation2 + $0x50]]
        %v1668 = vstv %s1667
        %v1669 = vmul.f32 %v564, %v1668
        %v1670 = vmul.f32 %v577, %v1668
        %v1671 = vmul.f32 %v1668, 0.0
        %1675 = vrot.lane.b32.xlu0 %v1669, 64
        %v1676 = vpop.permute.xlu0 %1675
        %1677 = vrot.lane.b32.xlu0 %v1670, 64
        %v1678 = vpop.permute.xlu0 %1677
        %1679 = vrot.lane.b32.xlu0 %v1671, 64
        %v1680 = vpop.permute.xlu0 %1679
        %v1681 = vsel %vm745, %v1676, %v1678
        %v1682 = vsel %vm745, %v1678, %v1680
        %v1686 = vadd.f32 %v1664, %v1676
        %v1687 = vadd.f32 %v1665, %v1681
        %v1688 = vadd.f32 %v1666, %v1682
        %s1689 = sld [smem:[#allocation2 + $0x26]]
        %v1690 = vstv %s1689
        %v1691 = vmul.f32 %v550, %v1690
        %v1692 = vmul.f32 %v551, %v1690
        %v1693 = vmul.f32 %v1690, 0.0
        %1697 = vrot.lane.b32.xlu0 %v1691, 48
        %v1698 = vpop.permute.xlu0 %1697
        %1699 = vrot.lane.b32.xlu0 %v1692, 48
        %v1700 = vpop.permute.xlu0 %1699
        %1701 = vrot.lane.b32.xlu0 %v1693, 48
        %v1702 = vpop.permute.xlu0 %1701
        %v1703 = vsel %vm790, %v1698, %v1700
        %v1704 = vsel %vm790, %v1700, %v1702
        %v1708 = vadd.f32 %v1686, %v1698
        %v1709 = vadd.f32 %v1687, %v1703
        %v1710 = vadd.f32 %v1688, %v1704
        %s1711 = sld [smem:[#allocation2 + $0x57]]
        %v1712 = vstv %s1711
        %v1713 = vmul.f32 %v564, %v1712
        %v1714 = vmul.f32 %v577, %v1712
        %v1715 = vmul.f32 %v1712, 0.0
        %1719 = vrot.lane.b32.xlu0 %v1713, 48
        %v1720 = vpop.permute.xlu0 %1719
        %1721 = vrot.lane.b32.xlu0 %v1714, 48
        %v1722 = vpop.permute.xlu0 %1721
        %1723 = vrot.lane.b32.xlu0 %v1715, 48
        %v1724 = vpop.permute.xlu0 %1723
        %v1725 = vsel %vm790, %v1720, %v1722
        %v1726 = vsel %vm790, %v1722, %v1724
        %v1730 = vadd.f32 %v1708, %v1720
        %v1731 = vadd.f32 %v1709, %v1725
        %v1732 = vadd.f32 %v1710, %v1726
        %s1733 = sld [smem:[#allocation2 + $0x2d]]
        %v1734 = vstv %s1733
        %v1735 = vmul.f32 %v550, %v1734
        %v1736 = vmul.f32 %v551, %v1734
        %v1737 = vmul.f32 %v1734, 0.0
        %1741 = vrot.lane.b32.xlu0 %v1735, 32
        %v1742 = vpop.permute.xlu0 %1741
        %1743 = vrot.lane.b32.xlu0 %v1736, 32
        %v1744 = vpop.permute.xlu0 %1743
        %1745 = vrot.lane.b32.xlu0 %v1737, 32
        %v1746 = vpop.permute.xlu0 %1745
        %v1747 = vsel %vm835, %v1742, %v1744
        %v1748 = vsel %vm835, %v1744, %v1746
        %v1752 = vadd.f32 %v1730, %v1742
        %v1753 = vadd.f32 %v1731, %v1747
        %v1754 = vadd.f32 %v1732, %v1748
        %s1755 = sld [smem:[#allocation2 + $0x5e]]
        %v1756 = vstv %s1755
        %v1757 = vmul.f32 %v564, %v1756
        %v1758 = vmul.f32 %v577, %v1756
        %v1759 = vmul.f32 %v1756, 0.0
        %1763 = vrot.lane.b32.xlu0 %v1757, 32
        %v1764 = vpop.permute.xlu0 %1763
        %1765 = vrot.lane.b32.xlu0 %v1758, 32
        %v1766 = vpop.permute.xlu0 %1765
        %1767 = vrot.lane.b32.xlu0 %v1759, 32
        %v1768 = vpop.permute.xlu0 %1767
        %v1769 = vsel %vm835, %v1764, %v1766
        %v1770 = vsel %vm835, %v1766, %v1768
        %v1774 = vadd.f32 %v1752, %v1764
        %v1775 = vadd.f32 %v1753, %v1769
        %v1776 = vadd.f32 %v1754, %v1770
        %v1777 = vrot.slane %v578, 3
        %v1778 = vrot.slane %v579, 3
        %1779 = vrot.lane.b32.xlu0 %v1777, 80
        %v1780 = vpop.permute.xlu0 %1779
        %1781 = vrot.lane.b32.xlu0 %v1778, 80
        %v1782 = vpop.permute.xlu0 %1781
        %v1783 = vsel %vm700, %v1780, %v1782
        %v1787 = vmul.f32 %v1774, %v1780
        %v1788 = vmul.f32 %v1775, %v1783
        %v1789 = vmul.f32 %v1776, %v1782
        %1793 = vrot.lane.b32.xlu0 %v1787, 125
        %v1794 = vpop.permute.xlu0 %1793
        %1795 = vrot.lane.b32.xlu0 %v1788, 125
        %v1796 = vpop.permute.xlu0 %1795
        %1797 = vrot.lane.b32.xlu0 %v1789, 125
        %v1798 = vpop.permute.xlu0 %1797
        %vm1799 = vcmask 1022976
        %v1800 = vsel %vm1799, %v1794, %v1796
        %v1801 = vsel %vm1799, %v1796, %v1798
        %v1805 = vadd.f32 %v1504, %v1800
        %v1806 = vadd.f32 %v1505, %v1801
        %v1807 = vadd.f32 %v1506, %v1798
        %s1808 = sld [smem:[#allocation2 + $0x4]]
        %v1809 = vstv %s1808
        %v1810 = vmul.f32 %v1809, 0.0
        %v1811 = vmul.f32 %v550, %v1809
        %v1812 = vmul.f32 %v551, %v1809
        %v1813 = vadd.f32 %v1810, 0.0
        %v1814 = vadd.f32 %v1811, 0.0
        %v1815 = vadd.f32 %v1812, 0.0
        %s1816 = sld [smem:[#allocation2 + $0x35]]
        %v1817 = vstv %s1816
        %v1818 = vmul.f32 %v1817, 0.0
        %v1819 = vmul.f32 %v564, %v1817
        %v1820 = vmul.f32 %v577, %v1817
        %v1821 = vadd.f32 %v1813, %v1818
        %v1822 = vadd.f32 %v1814, %v1819
        %v1823 = vadd.f32 %v1815, %v1820
        %s1824 = sld [smem:[#allocation2 + $0xb]]
        %v1825 = vstv %s1824
        %v1826 = vmul.f32 %v1825, 0.0
        %v1827 = vmul.f32 %v550, %v1825
        %v1828 = vmul.f32 %v551, %v1825
        %1832 = vrot.lane.b32.xlu0 %v1826, 112
        %v1833 = vpop.permute.xlu0 %1832
        %1834 = vrot.lane.b32.xlu0 %v1827, 112
        %v1835 = vpop.permute.xlu0 %1834
        %1836 = vrot.lane.b32.xlu0 %v1828, 112
        %v1837 = vpop.permute.xlu0 %1836
        %v1838 = vsel %vm610, %v1833, %v1835
        %v1839 = vsel %vm610, %v1835, %v1837
        %v1843 = vadd.f32 %v1821, %v1838
        %v1844 = vadd.f32 %v1822, %v1839
        %v1845 = vadd.f32 %v1823, %v1837
        %s1846 = sld [smem:[#allocation2 + $0x3c]]
        %v1847 = vstv %s1846
        %v1848 = vmul.f32 %v1847, 0.0
        %v1849 = vmul.f32 %v564, %v1847
        %v1850 = vmul.f32 %v577, %v1847
        %1854 = vrot.lane.b32.xlu0 %v1848, 112
        %v1855 = vpop.permute.xlu0 %1854
        %1856 = vrot.lane.b32.xlu0 %v1849, 112
        %v1857 = vpop.permute.xlu0 %1856
        %1858 = vrot.lane.b32.xlu0 %v1850, 112
        %v1859 = vpop.permute.xlu0 %1858
        %v1860 = vsel %vm610, %v1855, %v1857
        %v1861 = vsel %vm610, %v1857, %v1859
        %v1865 = vadd.f32 %v1843, %v1860
        %v1866 = vadd.f32 %v1844, %v1861
        %v1867 = vadd.f32 %v1845, %v1859
        %s1868 = sld [smem:[#allocation2 + $0x12]]
        %v1869 = vstv %s1868
        %v1870 = vmul.f32 %v1869, 0.0
        %v1871 = vmul.f32 %v550, %v1869
        %v1872 = vmul.f32 %v551, %v1869
        %1876 = vrot.lane.b32.xlu0 %v1870, 96
        %v1877 = vpop.permute.xlu0 %1876
        %1878 = vrot.lane.b32.xlu0 %v1871, 96
        %v1879 = vpop.permute.xlu0 %1878
        %1880 = vrot.lane.b32.xlu0 %v1872, 96
        %v1881 = vpop.permute.xlu0 %1880
        %v1882 = vsel %vm655, %v1877, %v1879
        %v1883 = vsel %vm655, %v1879, %v1881
        %v1887 = vadd.f32 %v1865, %v1882
        %v1888 = vadd.f32 %v1866, %v1883
        %v1889 = vadd.f32 %v1867, %v1881
        %s1890 = sld [smem:[#allocation2 + $0x43]]
        %v1891 = vstv %s1890
        %v1892 = vmul.f32 %v1891, 0.0
        %v1893 = vmul.f32 %v564, %v1891
        %v1894 = vmul.f32 %v577, %v1891
        %1898 = vrot.lane.b32.xlu0 %v1892, 96
        %v1899 = vpop.permute.xlu0 %1898
        %1900 = vrot.lane.b32.xlu0 %v1893, 96
        %v1901 = vpop.permute.xlu0 %1900
        %1902 = vrot.lane.b32.xlu0 %v1894, 96
        %v1903 = vpop.permute.xlu0 %1902
        %v1904 = vsel %vm655, %v1899, %v1901
        %v1905 = vsel %vm655, %v1901, %v1903
        %v1909 = vadd.f32 %v1887, %v1904
        %v1910 = vadd.f32 %v1888, %v1905
        %v1911 = vadd.f32 %v1889, %v1903
        %s1912 = sld [smem:[#allocation2 + $0x19]]
        %v1913 = vstv %s1912
        %v1914 = vmul.f32 %v550, %v1913
        %v1915 = vmul.f32 %v551, %v1913
        %v1916 = vmul.f32 %v1913, 0.0
        %1920 = vrot.lane.b32.xlu0 %v1914, 80
        %v1921 = vpop.permute.xlu0 %1920
        %1922 = vrot.lane.b32.xlu0 %v1915, 80
        %v1923 = vpop.permute.xlu0 %1922
        %1924 = vrot.lane.b32.xlu0 %v1916, 80
        %v1925 = vpop.permute.xlu0 %1924
        %v1926 = vsel %vm700, %v1921, %v1923
        %v1927 = vsel %vm700, %v1923, %v1925
        %v1931 = vadd.f32 %v1909, %v1921
        %v1932 = vadd.f32 %v1910, %v1926
        %v1933 = vadd.f32 %v1911, %v1927
        %s1934 = sld [smem:[#allocation2 + $0x4a]]
        %v1935 = vstv %s1934
        %v1936 = vmul.f32 %v564, %v1935
        %v1937 = vmul.f32 %v577, %v1935
        %v1938 = vmul.f32 %v1935, 0.0
        %1942 = vrot.lane.b32.xlu0 %v1936, 80
        %v1943 = vpop.permute.xlu0 %1942
        %1944 = vrot.lane.b32.xlu0 %v1937, 80
        %v1945 = vpop.permute.xlu0 %1944
        %1946 = vrot.lane.b32.xlu0 %v1938, 80
        %v1947 = vpop.permute.xlu0 %1946
        %v1948 = vsel %vm700, %v1943, %v1945
        %v1949 = vsel %vm700, %v1945, %v1947
        %v1953 = vadd.f32 %v1931, %v1943
        %v1954 = vadd.f32 %v1932, %v1948
        %v1955 = vadd.f32 %v1933, %v1949
        %s1956 = sld [smem:[#allocation2 + $0x20]]
        %v1957 = vstv %s1956
        %v1958 = vmul.f32 %v550, %v1957
        %v1959 = vmul.f32 %v551, %v1957
        %v1960 = vmul.f32 %v1957, 0.0
        %1964 = vrot.lane.b32.xlu0 %v1958, 64
        %v1965 = vpop.permute.xlu0 %1964
        %1966 = vrot.lane.b32.xlu0 %v1959, 64
        %v1967 = vpop.permute.xlu0 %1966
        %1968 = vrot.lane.b32.xlu0 %v1960, 64
        %v1969 = vpop.permute.xlu0 %1968
        %v1970 = vsel %vm745, %v1965, %v1967
        %v1971 = vsel %vm745, %v1967, %v1969
        %v1975 = vadd.f32 %v1953, %v1965
        %v1976 = vadd.f32 %v1954, %v1970
        %v1977 = vadd.f32 %v1955, %v1971
        %s1978 = sld [smem:[#allocation2 + $0x51]]
        %v1979 = vstv %s1978
        %v1980 = vmul.f32 %v564, %v1979
        %v1981 = vmul.f32 %v577, %v1979
        %v1982 = vmul.f32 %v1979, 0.0
        %1986 = vrot.lane.b32.xlu0 %v1980, 64
        %v1987 = vpop.permute.xlu0 %1986
        %1988 = vrot.lane.b32.xlu0 %v1981, 64
        %v1989 = vpop.permute.xlu0 %1988
        %1990 = vrot.lane.b32.xlu0 %v1982, 64
        %v1991 = vpop.permute.xlu0 %1990
        %v1992 = vsel %vm745, %v1987, %v1989
        %v1993 = vsel %vm745, %v1989, %v1991
        %v1997 = vadd.f32 %v1975, %v1987
        %v1998 = vadd.f32 %v1976, %v1992
        %v1999 = vadd.f32 %v1977, %v1993
        %s2000 = sld [smem:[#allocation2 + $0x27]]
        %v2001 = vstv %s2000
        %v2002 = vmul.f32 %v550, %v2001
        %v2003 = vmul.f32 %v551, %v2001
        %v2004 = vmul.f32 %v2001, 0.0
        %2008 = vrot.lane.b32.xlu0 %v2002, 48
        %v2009 = vpop.permute.xlu0 %2008
        %2010 = vrot.lane.b32.xlu0 %v2003, 48
        %v2011 = vpop.permute.xlu0 %2010
        %2012 = vrot.lane.b32.xlu0 %v2004, 48
        %v2013 = vpop.permute.xlu0 %2012
        %v2014 = vsel %vm790, %v2009, %v2011
        %v2015 = vsel %vm790, %v2011, %v2013
        %v2019 = vadd.f32 %v1997, %v2009
        %v2020 = vadd.f32 %v1998, %v2014
        %v2021 = vadd.f32 %v1999, %v2015
        %s2022 = sld [smem:[#allocation2 + $0x58]]
        %v2023 = vstv %s2022
        %v2024 = vmul.f32 %v564, %v2023
        %v2025 = vmul.f32 %v577, %v2023
        %v2026 = vmul.f32 %v2023, 0.0
        %2030 = vrot.lane.b32.xlu0 %v2024, 48
        %v2031 = vpop.permute.xlu0 %2030
        %2032 = vrot.lane.b32.xlu0 %v2025, 48
        %v2033 = vpop.permute.xlu0 %2032
        %2034 = vrot.lane.b32.xlu0 %v2026, 48
        %v2035 = vpop.permute.xlu0 %2034
        %v2036 = vsel %vm790, %v2031, %v2033
        %v2037 = vsel %vm790, %v2033, %v2035
        %v2041 = vadd.f32 %v2019, %v2031
        %v2042 = vadd.f32 %v2020, %v2036
        %v2043 = vadd.f32 %v2021, %v2037
        %s2044 = sld [smem:[#allocation2 + $0x2e]]
        %v2045 = vstv %s2044
        %v2046 = vmul.f32 %v550, %v2045
        %v2047 = vmul.f32 %v551, %v2045
        %v2048 = vmul.f32 %v2045, 0.0
        %2052 = vrot.lane.b32.xlu0 %v2046, 32
        %v2053 = vpop.permute.xlu0 %2052
        %2054 = vrot.lane.b32.xlu0 %v2047, 32
        %v2055 = vpop.permute.xlu0 %2054
        %2056 = vrot.lane.b32.xlu0 %v2048, 32
        %v2057 = vpop.permute.xlu0 %2056
        %v2058 = vsel %vm835, %v2053, %v2055
        %v2059 = vsel %vm835, %v2055, %v2057
        %v2063 = vadd.f32 %v2041, %v2053
        %v2064 = vadd.f32 %v2042, %v2058
        %v2065 = vadd.f32 %v2043, %v2059
        %s2066 = sld [smem:[#allocation2 + $0x5f]]
        %v2067 = vstv %s2066
        %v2068 = vmul.f32 %v564, %v2067
        %v2069 = vmul.f32 %v577, %v2067
        %v2070 = vmul.f32 %v2067, 0.0
        %2074 = vrot.lane.b32.xlu0 %v2068, 32
        %v2075 = vpop.permute.xlu0 %2074
        %2076 = vrot.lane.b32.xlu0 %v2069, 32
        %v2077 = vpop.permute.xlu0 %2076
        %2078 = vrot.lane.b32.xlu0 %v2070, 32
        %v2079 = vpop.permute.xlu0 %2078
        %v2080 = vsel %vm835, %v2075, %v2077
        %v2081 = vsel %vm835, %v2077, %v2079
        %v2085 = vadd.f32 %v2063, %v2075
        %v2086 = vadd.f32 %v2064, %v2080
        %v2087 = vadd.f32 %v2065, %v2081
        %v2088 = vrot.slane %v578, 4
        %v2089 = vrot.slane %v579, 4
        %2090 = vrot.lane.b32.xlu0 %v2088, 81
        %v2091 = vpop.permute.xlu0 %2090
        %2092 = vrot.lane.b32.xlu0 %v2089, 81
        %v2093 = vpop.permute.xlu0 %2092
        %vm2094 = vcmask 662528
        %v2095 = vsel %vm2094, %v2091, %v2093
        %v2099 = vmul.f32 %v2085, %v2091
        %v2100 = vmul.f32 %v2086, %v2095
        %v2101 = vmul.f32 %v2087, %v2093
        %2105 = vrot.lane.b32.xlu0 %v2099, 124
        %v2106 = vpop.permute.xlu0 %2105
        %2107 = vrot.lane.b32.xlu0 %v2100, 124
        %v2108 = vpop.permute.xlu0 %2107
        %2109 = vrot.lane.b32.xlu0 %v2101, 124
        %v2110 = vpop.permute.xlu0 %2109
        %vm2111 = vcmask 1014784
        %v2112 = vsel %vm2111, %v2106, %v2108
        %v2113 = vsel %vm2111, %v2108, %v2110
        %v2117 = vadd.f32 %v1805, %v2112
        %v2118 = vadd.f32 %v1806, %v2113
        %v2119 = vadd.f32 %v1807, %v2110
        %s2120 = sld [smem:[#allocation2 + $0x5]]
        %v2121 = vstv %s2120
        %v2122 = vmul.f32 %v2121, 0.0
        %v2123 = vmul.f32 %v550, %v2121
        %v2124 = vmul.f32 %v551, %v2121
        %v2125 = vadd.f32 %v2122, 0.0
        %v2126 = vadd.f32 %v2123, 0.0
        %v2127 = vadd.f32 %v2124, 0.0
        %s2128 = sld [smem:[#allocation2 + $0x36]]
        %v2129 = vstv %s2128
        %v2130 = vmul.f32 %v2129, 0.0
        %v2131 = vmul.f32 %v564, %v2129
        %v2132 = vmul.f32 %v577, %v2129
        %v2133 = vadd.f32 %v2125, %v2130
        %v2134 = vadd.f32 %v2126, %v2131
        %v2135 = vadd.f32 %v2127, %v2132
        %s2136 = sld [smem:[#allocation2 + $0xc]]
        %v2137 = vstv %s2136
        %v2138 = vmul.f32 %v2137, 0.0
        %v2139 = vmul.f32 %v550, %v2137
        %v2140 = vmul.f32 %v551, %v2137
        %2144 = vrot.lane.b32.xlu0 %v2138, 112
        %v2145 = vpop.permute.xlu0 %2144
        %2146 = vrot.lane.b32.xlu0 %v2139, 112
        %v2147 = vpop.permute.xlu0 %2146
        %2148 = vrot.lane.b32.xlu0 %v2140, 112
        %v2149 = vpop.permute.xlu0 %2148
        %v2150 = vsel %vm610, %v2145, %v2147
        %v2151 = vsel %vm610, %v2147, %v2149
        %v2155 = vadd.f32 %v2133, %v2150
        %v2156 = vadd.f32 %v2134, %v2151
        %v2157 = vadd.f32 %v2135, %v2149
        %s2158 = sld [smem:[#allocation2 + $0x3d]]
        %v2159 = vstv %s2158
        %v2160 = vmul.f32 %v2159, 0.0
        %v2161 = vmul.f32 %v564, %v2159
        %v2162 = vmul.f32 %v577, %v2159
        %2166 = vrot.lane.b32.xlu0 %v2160, 112
        %v2167 = vpop.permute.xlu0 %2166
        %2168 = vrot.lane.b32.xlu0 %v2161, 112
        %v2169 = vpop.permute.xlu0 %2168
        %2170 = vrot.lane.b32.xlu0 %v2162, 112
        %v2171 = vpop.permute.xlu0 %2170
        %v2172 = vsel %vm610, %v2167, %v2169
        %v2173 = vsel %vm610, %v2169, %v2171
        %v2177 = vadd.f32 %v2155, %v2172
        %v2178 = vadd.f32 %v2156, %v2173
        %v2179 = vadd.f32 %v2157, %v2171
        %s2180 = sld [smem:[#allocation2 + $0x13]]
        %v2181 = vstv %s2180
        %v2182 = vmul.f32 %v2181, 0.0
        %v2183 = vmul.f32 %v550, %v2181
        %v2184 = vmul.f32 %v551, %v2181
        %2188 = vrot.lane.b32.xlu0 %v2182, 96
        %v2189 = vpop.permute.xlu0 %2188
        %2190 = vrot.lane.b32.xlu0 %v2183, 96
        %v2191 = vpop.permute.xlu0 %2190
        %2192 = vrot.lane.b32.xlu0 %v2184, 96
        %v2193 = vpop.permute.xlu0 %2192
        %v2194 = vsel %vm655, %v2189, %v2191
        %v2195 = vsel %vm655, %v2191, %v2193
        %v2199 = vadd.f32 %v2177, %v2194
        %v2200 = vadd.f32 %v2178, %v2195
        %v2201 = vadd.f32 %v2179, %v2193
        %s2202 = sld [smem:[#allocation2 + $0x44]]
        %v2203 = vstv %s2202
        %v2204 = vmul.f32 %v2203, 0.0
        %v2205 = vmul.f32 %v564, %v2203
        %v2206 = vmul.f32 %v577, %v2203
        %2210 = vrot.lane.b32.xlu0 %v2204, 96
        %v2211 = vpop.permute.xlu0 %2210
        %2212 = vrot.lane.b32.xlu0 %v2205, 96
        %v2213 = vpop.permute.xlu0 %2212
        %2214 = vrot.lane.b32.xlu0 %v2206, 96
        %v2215 = vpop.permute.xlu0 %2214
        %v2216 = vsel %vm655, %v2211, %v2213
        %v2217 = vsel %vm655, %v2213, %v2215
        %v2221 = vadd.f32 %v2199, %v2216
        %v2222 = vadd.f32 %v2200, %v2217
        %v2223 = vadd.f32 %v2201, %v2215
        %s2224 = sld [smem:[#allocation2 + $0x1a]]
        %v2225 = vstv %s2224
        %v2226 = vmul.f32 %v550, %v2225
        %v2227 = vmul.f32 %v551, %v2225
        %v2228 = vmul.f32 %v2225, 0.0
        %2232 = vrot.lane.b32.xlu0 %v2226, 80
        %v2233 = vpop.permute.xlu0 %2232
        %2234 = vrot.lane.b32.xlu0 %v2227, 80
        %v2235 = vpop.permute.xlu0 %2234
        %2236 = vrot.lane.b32.xlu0 %v2228, 80
        %v2237 = vpop.permute.xlu0 %2236
        %v2238 = vsel %vm700, %v2233, %v2235
        %v2239 = vsel %vm700, %v2235, %v2237
        %v2243 = vadd.f32 %v2221, %v2233
        %v2244 = vadd.f32 %v2222, %v2238
        %v2245 = vadd.f32 %v2223, %v2239
        %s2246 = sld [smem:[#allocation2 + $0x4b]]
        %v2247 = vstv %s2246
        %v2248 = vmul.f32 %v564, %v2247
        %v2249 = vmul.f32 %v577, %v2247
        %v2250 = vmul.f32 %v2247, 0.0
        %2254 = vrot.lane.b32.xlu0 %v2248, 80
        %v2255 = vpop.permute.xlu0 %2254
        %2256 = vrot.lane.b32.xlu0 %v2249, 80
        %v2257 = vpop.permute.xlu0 %2256
        %2258 = vrot.lane.b32.xlu0 %v2250, 80
        %v2259 = vpop.permute.xlu0 %2258
        %v2260 = vsel %vm700, %v2255, %v2257
        %v2261 = vsel %vm700, %v2257, %v2259
        %v2265 = vadd.f32 %v2243, %v2255
        %v2266 = vadd.f32 %v2244, %v2260
        %v2267 = vadd.f32 %v2245, %v2261
        %s2268 = sld [smem:[#allocation2 + $0x21]]
        %v2269 = vstv %s2268
        %v2270 = vmul.f32 %v550, %v2269
        %v2271 = vmul.f32 %v551, %v2269
        %v2272 = vmul.f32 %v2269, 0.0
        %2276 = vrot.lane.b32.xlu0 %v2270, 64
        %v2277 = vpop.permute.xlu0 %2276
        %2278 = vrot.lane.b32.xlu0 %v2271, 64
        %v2279 = vpop.permute.xlu0 %2278
        %2280 = vrot.lane.b32.xlu0 %v2272, 64
        %v2281 = vpop.permute.xlu0 %2280
        %v2282 = vsel %vm745, %v2277, %v2279
        %v2283 = vsel %vm745, %v2279, %v2281
        %v2287 = vadd.f32 %v2265, %v2277
        %v2288 = vadd.f32 %v2266, %v2282
        %v2289 = vadd.f32 %v2267, %v2283
        %s2290 = sld [smem:[#allocation2 + $0x52]]
        %v2291 = vstv %s2290
        %v2292 = vmul.f32 %v564, %v2291
        %v2293 = vmul.f32 %v577, %v2291
        %v2294 = vmul.f32 %v2291, 0.0
        %2298 = vrot.lane.b32.xlu0 %v2292, 64
        %v2299 = vpop.permute.xlu0 %2298
        %2300 = vrot.lane.b32.xlu0 %v2293, 64
        %v2301 = vpop.permute.xlu0 %2300
        %2302 = vrot.lane.b32.xlu0 %v2294, 64
        %v2303 = vpop.permute.xlu0 %2302
        %v2304 = vsel %vm745, %v2299, %v2301
        %v2305 = vsel %vm745, %v2301, %v2303
        %v2309 = vadd.f32 %v2287, %v2299
        %v2310 = vadd.f32 %v2288, %v2304
        %v2311 = vadd.f32 %v2289, %v2305
        %s2312 = sld [smem:[#allocation2 + $0x28]]
        %v2313 = vstv %s2312
        %v2314 = vmul.f32 %v550, %v2313
        %v2315 = vmul.f32 %v551, %v2313
        %v2316 = vmul.f32 %v2313, 0.0
        %2320 = vrot.lane.b32.xlu0 %v2314, 48
        %v2321 = vpop.permute.xlu0 %2320
        %2322 = vrot.lane.b32.xlu0 %v2315, 48
        %v2323 = vpop.permute.xlu0 %2322
        %2324 = vrot.lane.b32.xlu0 %v2316, 48
        %v2325 = vpop.permute.xlu0 %2324
        %v2326 = vsel %vm790, %v2321, %v2323
        %v2327 = vsel %vm790, %v2323, %v2325
        %v2331 = vadd.f32 %v2309, %v2321
        %v2332 = vadd.f32 %v2310, %v2326
        %v2333 = vadd.f32 %v2311, %v2327
        %s2334 = sld [smem:[#allocation2 + $0x59]]
        %v2335 = vstv %s2334
        %v2336 = vmul.f32 %v564, %v2335
        %v2337 = vmul.f32 %v577, %v2335
        %v2338 = vmul.f32 %v2335, 0.0
        %2342 = vrot.lane.b32.xlu0 %v2336, 48
        %v2343 = vpop.permute.xlu0 %2342
        %2344 = vrot.lane.b32.xlu0 %v2337, 48
        %v2345 = vpop.permute.xlu0 %2344
        %2346 = vrot.lane.b32.xlu0 %v2338, 48
        %v2347 = vpop.permute.xlu0 %2346
        %v2348 = vsel %vm790, %v2343, %v2345
        %v2349 = vsel %vm790, %v2345, %v2347
        %v2353 = vadd.f32 %v2331, %v2343
        %v2354 = vadd.f32 %v2332, %v2348
        %v2355 = vadd.f32 %v2333, %v2349
        %s2356 = sld [smem:[#allocation2 + $0x2f]]
        %v2357 = vstv %s2356
        %v2358 = vmul.f32 %v550, %v2357
        %v2359 = vmul.f32 %v551, %v2357
        %v2360 = vmul.f32 %v2357, 0.0
        %2364 = vrot.lane.b32.xlu0 %v2358, 32
        %v2365 = vpop.permute.xlu0 %2364
        %2366 = vrot.lane.b32.xlu0 %v2359, 32
        %v2367 = vpop.permute.xlu0 %2366
        %2368 = vrot.lane.b32.xlu0 %v2360, 32
        %v2369 = vpop.permute.xlu0 %2368
        %v2370 = vsel %vm835, %v2365, %v2367
        %v2371 = vsel %vm835, %v2367, %v2369
        %v2375 = vadd.f32 %v2353, %v2365
        %v2376 = vadd.f32 %v2354, %v2370
        %v2377 = vadd.f32 %v2355, %v2371
        %s2378 = sld [smem:[#allocation2 + $0x60]]
        %v2379 = vstv %s2378
        %v2380 = vmul.f32 %v564, %v2379
        %v2381 = vmul.f32 %v577, %v2379
        %v2382 = vmul.f32 %v2379, 0.0
        %2386 = vrot.lane.b32.xlu0 %v2380, 32
        %v2387 = vpop.permute.xlu0 %2386
        %2388 = vrot.lane.b32.xlu0 %v2381, 32
        %v2389 = vpop.permute.xlu0 %2388
        %2390 = vrot.lane.b32.xlu0 %v2382, 32
        %v2391 = vpop.permute.xlu0 %2390
        %v2392 = vsel %vm835, %v2387, %v2389
        %v2393 = vsel %vm835, %v2389, %v2391
        %v2397 = vadd.f32 %v2375, %v2387
        %v2398 = vadd.f32 %v2376, %v2392
        %v2399 = vadd.f32 %v2377, %v2393
        %v2400 = vrot.slane %v578, 5
        %v2401 = vrot.slane %v579, 5
        %2402 = vrot.lane.b32.xlu0 %v2400, 82
        %v2403 = vpop.permute.xlu0 %2402
        %2404 = vrot.lane.b32.xlu0 %v2401, 82
        %v2405 = vpop.permute.xlu0 %2404
        %vm2406 = vcmask 670720
        %v2407 = vsel %vm2406, %v2403, %v2405
        %v2411 = vmul.f32 %v2397, %v2403
        %v2412 = vmul.f32 %v2398, %v2407
        %v2413 = vmul.f32 %v2399, %v2405
        %2417 = vrot.lane.b32.xlu0 %v2411, 123
        %v2418 = vpop.permute.xlu0 %2417
        %2419 = vrot.lane.b32.xlu0 %v2412, 123
        %v2420 = vpop.permute.xlu0 %2419
        %2421 = vrot.lane.b32.xlu0 %v2413, 123
        %v2422 = vpop.permute.xlu0 %2421
        %vm2423 = vcmask 1006592
        %v2424 = vsel %vm2423, %v2418, %v2420
        %v2425 = vsel %vm2423, %v2420, %v2422
        %v2429 = vadd.f32 %v2117, %v2424
        %v2430 = vadd.f32 %v2118, %v2425
        %v2431 = vadd.f32 %v2119, %v2422
        %s2432 = sld [smem:[#allocation2 + $0x6]]
        %v2433 = vstv %s2432
        %v2434 = vmul.f32 %v2433, 0.0
        %v2435 = vmul.f32 %v550, %v2433
        %v2436 = vmul.f32 %v551, %v2433
        %v2437 = vadd.f32 %v2434, 0.0
        %v2438 = vadd.f32 %v2435, 0.0
        %v2439 = vadd.f32 %v2436, 0.0
        %s2440 = sld [smem:[#allocation2 + $0x37]]
        %v2441 = vstv %s2440
        %v2442 = vmul.f32 %v2441, 0.0
        %v2443 = vmul.f32 %v564, %v2441
        %v2444 = vmul.f32 %v577, %v2441
        %v2445 = vadd.f32 %v2437, %v2442
        %v2446 = vadd.f32 %v2438, %v2443
        %v2447 = vadd.f32 %v2439, %v2444
        %s2448 = sld [smem:[#allocation2 + $0xd]]
        %v2449 = vstv %s2448
        %v2450 = vmul.f32 %v2449, 0.0
        %v2451 = vmul.f32 %v550, %v2449
        %v2452 = vmul.f32 %v551, %v2449
        %2456 = vrot.lane.b32.xlu0 %v2450, 112
        %v2457 = vpop.permute.xlu0 %2456
        %2458 = vrot.lane.b32.xlu0 %v2451, 112
        %v2459 = vpop.permute.xlu0 %2458
        %2460 = vrot.lane.b32.xlu0 %v2452, 112
        %v2461 = vpop.permute.xlu0 %2460
        %v2462 = vsel %vm610, %v2457, %v2459
        %v2463 = vsel %vm610, %v2459, %v2461
        %v2467 = vadd.f32 %v2445, %v2462
        %v2468 = vadd.f32 %v2446, %v2463
        %v2469 = vadd.f32 %v2447, %v2461
        %s2470 = sld [smem:[#allocation2 + $0x3e]]
        %v2471 = vstv %s2470
        %v2472 = vmul.f32 %v2471, 0.0
        %v2473 = vmul.f32 %v564, %v2471
        %v2474 = vmul.f32 %v577, %v2471
        %2478 = vrot.lane.b32.xlu0 %v2472, 112
        %v2479 = vpop.permute.xlu0 %2478
        %2480 = vrot.lane.b32.xlu0 %v2473, 112
        %v2481 = vpop.permute.xlu0 %2480
        %2482 = vrot.lane.b32.xlu0 %v2474, 112
        %v2483 = vpop.permute.xlu0 %2482
        %v2484 = vsel %vm610, %v2479, %v2481
        %v2485 = vsel %vm610, %v2481, %v2483
        %v2489 = vadd.f32 %v2467, %v2484
        %v2490 = vadd.f32 %v2468, %v2485
        %v2491 = vadd.f32 %v2469, %v2483
        %s2492 = sld [smem:[#allocation2 + $0x14]]
        %v2493 = vstv %s2492
        %v2494 = vmul.f32 %v2493, 0.0
        %v2495 = vmul.f32 %v550, %v2493
        %v2496 = vmul.f32 %v551, %v2493
        %2500 = vrot.lane.b32.xlu0 %v2494, 96
        %v2501 = vpop.permute.xlu0 %2500
        %2502 = vrot.lane.b32.xlu0 %v2495, 96
        %v2503 = vpop.permute.xlu0 %2502
        %2504 = vrot.lane.b32.xlu0 %v2496, 96
        %v2505 = vpop.permute.xlu0 %2504
        %v2506 = vsel %vm655, %v2501, %v2503
        %v2507 = vsel %vm655, %v2503, %v2505
        %v2511 = vadd.f32 %v2489, %v2506
        %v2512 = vadd.f32 %v2490, %v2507
        %v2513 = vadd.f32 %v2491, %v2505
        %s2514 = sld [smem:[#allocation2 + $0x45]]
        %v2515 = vstv %s2514
        %v2516 = vmul.f32 %v2515, 0.0
        %v2517 = vmul.f32 %v564, %v2515
        %v2518 = vmul.f32 %v577, %v2515
        %2522 = vrot.lane.b32.xlu0 %v2516, 96
        %v2523 = vpop.permute.xlu0 %2522
        %2524 = vrot.lane.b32.xlu0 %v2517, 96
        %v2525 = vpop.permute.xlu0 %2524
        %2526 = vrot.lane.b32.xlu0 %v2518, 96
        %v2527 = vpop.permute.xlu0 %2526
        %v2528 = vsel %vm655, %v2523, %v2525
        %v2529 = vsel %vm655, %v2525, %v2527
        %v2533 = vadd.f32 %v2511, %v2528
        %v2534 = vadd.f32 %v2512, %v2529
        %v2535 = vadd.f32 %v2513, %v2527
        %s2536 = sld [smem:[#allocation2 + $0x1b]]
        %v2537 = vstv %s2536
        %v2538 = vmul.f32 %v550, %v2537
        %v2539 = vmul.f32 %v551, %v2537
        %v2540 = vmul.f32 %v2537, 0.0
        %2544 = vrot.lane.b32.xlu0 %v2538, 80
        %v2545 = vpop.permute.xlu0 %2544
        %2546 = vrot.lane.b32.xlu0 %v2539, 80
        %v2547 = vpop.permute.xlu0 %2546
        %2548 = vrot.lane.b32.xlu0 %v2540, 80
        %v2549 = vpop.permute.xlu0 %2548
        %v2550 = vsel %vm700, %v2545, %v2547
        %v2551 = vsel %vm700, %v2547, %v2549
        %v2555 = vadd.f32 %v2533, %v2545
        %v2556 = vadd.f32 %v2534, %v2550
        %v2557 = vadd.f32 %v2535, %v2551
        %s2558 = sld [smem:[#allocation2 + $0x4c]]
        %v2559 = vstv %s2558
        %v2560 = vmul.f32 %v564, %v2559
        %v2561 = vmul.f32 %v577, %v2559
        %v2562 = vmul.f32 %v2559, 0.0
        %2566 = vrot.lane.b32.xlu0 %v2560, 80
        %v2567 = vpop.permute.xlu0 %2566
        %2568 = vrot.lane.b32.xlu0 %v2561, 80
        %v2569 = vpop.permute.xlu0 %2568
        %2570 = vrot.lane.b32.xlu0 %v2562, 80
        %v2571 = vpop.permute.xlu0 %2570
        %v2572 = vsel %vm700, %v2567, %v2569
        %v2573 = vsel %vm700, %v2569, %v2571
        %v2577 = vadd.f32 %v2555, %v2567
        %v2578 = vadd.f32 %v2556, %v2572
        %v2579 = vadd.f32 %v2557, %v2573
        %s2580 = sld [smem:[#allocation2 + $0x22]]
        %v2581 = vstv %s2580
        %v2582 = vmul.f32 %v550, %v2581
        %v2583 = vmul.f32 %v551, %v2581
        %v2584 = vmul.f32 %v2581, 0.0
        %2588 = vrot.lane.b32.xlu0 %v2582, 64
        %v2589 = vpop.permute.xlu0 %2588
        %2590 = vrot.lane.b32.xlu0 %v2583, 64
        %v2591 = vpop.permute.xlu0 %2590
        %2592 = vrot.lane.b32.xlu0 %v2584, 64
        %v2593 = vpop.permute.xlu0 %2592
        %v2594 = vsel %vm745, %v2589, %v2591
        %v2595 = vsel %vm745, %v2591, %v2593
        %v2599 = vadd.f32 %v2577, %v2589
        %v2600 = vadd.f32 %v2578, %v2594
        %v2601 = vadd.f32 %v2579, %v2595
        %s2602 = sld [smem:[#allocation2 + $0x53]]
        %v2603 = vstv %s2602
        %v2604 = vmul.f32 %v564, %v2603
        %v2605 = vmul.f32 %v577, %v2603
        %v2606 = vmul.f32 %v2603, 0.0
        %2610 = vrot.lane.b32.xlu0 %v2604, 64
        %v2611 = vpop.permute.xlu0 %2610
        %2612 = vrot.lane.b32.xlu0 %v2605, 64
        %v2613 = vpop.permute.xlu0 %2612
        %2614 = vrot.lane.b32.xlu0 %v2606, 64
        %v2615 = vpop.permute.xlu0 %2614
        %v2616 = vsel %vm745, %v2611, %v2613
        %v2617 = vsel %vm745, %v2613, %v2615
        %v2621 = vadd.f32 %v2599, %v2611
        %v2622 = vadd.f32 %v2600, %v2616
        %v2623 = vadd.f32 %v2601, %v2617
        %s2624 = sld [smem:[#allocation2 + $0x29]]
        %v2625 = vstv %s2624
        %v2626 = vmul.f32 %v550, %v2625
        %v2627 = vmul.f32 %v551, %v2625
        %v2628 = vmul.f32 %v2625, 0.0
        %2632 = vrot.lane.b32.xlu0 %v2626, 48
        %v2633 = vpop.permute.xlu0 %2632
        %2634 = vrot.lane.b32.xlu0 %v2627, 48
        %v2635 = vpop.permute.xlu0 %2634
        %2636 = vrot.lane.b32.xlu0 %v2628, 48
        %v2637 = vpop.permute.xlu0 %2636
        %v2638 = vsel %vm790, %v2633, %v2635
        %v2639 = vsel %vm790, %v2635, %v2637
        %v2643 = vadd.f32 %v2621, %v2633
        %v2644 = vadd.f32 %v2622, %v2638
        %v2645 = vadd.f32 %v2623, %v2639
        %s2646 = sld [smem:[#allocation2 + $0x5a]]
        %v2647 = vstv %s2646
        %v2648 = vmul.f32 %v564, %v2647
        %v2649 = vmul.f32 %v577, %v2647
        %v2650 = vmul.f32 %v2647, 0.0
        %2654 = vrot.lane.b32.xlu0 %v2648, 48
        %v2655 = vpop.permute.xlu0 %2654
        %2656 = vrot.lane.b32.xlu0 %v2649, 48
        %v2657 = vpop.permute.xlu0 %2656
        %2658 = vrot.lane.b32.xlu0 %v2650, 48
        %v2659 = vpop.permute.xlu0 %2658
        %v2660 = vsel %vm790, %v2655, %v2657
        %v2661 = vsel %vm790, %v2657, %v2659
        %v2665 = vadd.f32 %v2643, %v2655
        %v2666 = vadd.f32 %v2644, %v2660
        %v2667 = vadd.f32 %v2645, %v2661
        %s2668 = sld [smem:[#allocation2 + $0x30]]
        %v2669 = vstv %s2668
        %v2670 = vmul.f32 %v550, %v2669
        %v2671 = vmul.f32 %v551, %v2669
        %v2672 = vmul.f32 %v2669, 0.0
        %2676 = vrot.lane.b32.xlu0 %v2670, 32
        %v2677 = vpop.permute.xlu0 %2676
        %2678 = vrot.lane.b32.xlu0 %v2671, 32
        %v2679 = vpop.permute.xlu0 %2678
        %2680 = vrot.lane.b32.xlu0 %v2672, 32
        %v2681 = vpop.permute.xlu0 %2680
        %v2682 = vsel %vm835, %v2677, %v2679
        %v2683 = vsel %vm835, %v2679, %v2681
        %v2687 = vadd.f32 %v2665, %v2677
        %v2688 = vadd.f32 %v2666, %v2682
        %v2689 = vadd.f32 %v2667, %v2683
        %s2690 = sld [smem:[#allocation2 + $0x61]]
        %v2691 = vstv %s2690
        %v2692 = vmul.f32 %v564, %v2691
        %v2693 = vmul.f32 %v577, %v2691
        %v2694 = vmul.f32 %v2691, 0.0
        %2698 = vrot.lane.b32.xlu0 %v2692, 32
        %v2699 = vpop.permute.xlu0 %2698
        %2700 = vrot.lane.b32.xlu0 %v2693, 32
        %v2701 = vpop.permute.xlu0 %2700
        %2702 = vrot.lane.b32.xlu0 %v2694, 32
        %v2703 = vpop.permute.xlu0 %2702
        %v2704 = vsel %vm835, %v2699, %v2701
        %v2705 = vsel %vm835, %v2701, %v2703
        %v2709 = vadd.f32 %v2687, %v2699
        %v2710 = vadd.f32 %v2688, %v2704
        %v2711 = vadd.f32 %v2689, %v2705
        %v2712 = vrot.slane %v578, 6
        %v2713 = vrot.slane %v579, 6
        %2714 = vrot.lane.b32.xlu0 %v2712, 83
        %v2715 = vpop.permute.xlu0 %2714
        %2716 = vrot.lane.b32.xlu0 %v2713, 83
        %v2717 = vpop.permute.xlu0 %2716
        %vm2718 = vcmask 678912
        %v2719 = vsel %vm2718, %v2715, %v2717
        %v2723 = vmul.f32 %v2709, %v2715
        %v2724 = vmul.f32 %v2710, %v2719
        %v2725 = vmul.f32 %v2711, %v2717
        %2729 = vrot.lane.b32.xlu0 %v2723, 122
        %v2730 = vpop.permute.xlu0 %2729
        %2731 = vrot.lane.b32.xlu0 %v2724, 122
        %v2732 = vpop.permute.xlu0 %2731
        %2733 = vrot.lane.b32.xlu0 %v2725, 122
        %v2734 = vpop.permute.xlu0 %2733
        %vm2735 = vcmask 998400
        %v2736 = vsel %vm2735, %v2730, %v2732
        %v2737 = vsel %vm2735, %v2732, %v2734
        %v2741 = vadd.f32 %v2429, %v2736
        %v2742 = vadd.f32 %v2430, %v2737
        %v2743 = vadd.f32 %v2431, %v2734
        %v2744 = vxor.u32 %v2741, 2147483648
        %v2745 = vxor.u32 %v2742, 2147483648
        %v2746 = vxor.u32 %v2743, 2147483648
        %v2747 = vmul.f32 %v2744, 1.442695
        %v2748 = vpow.pop %v2747
        %v2749 = vmul.f32 %v2745, 1.442695
        %v2750 = vpow.pop %v2749
        %v2751 = vmul.f32 %v2746, 1.442695
        %v2752 = vpow.pop %v2751
        %v2753 = vadd.f32 %v2748, 1.0
        %v2754 = vadd.f32 %v2750, 1.0
        %v2755 = vadd.f32 %v2752, 1.0
        %v2756 = vrcp.pop %v2753
        %v2757 = vmul.f32 1.0, %v2756
        %v2758 = vrcp.pop %v2754
        %v2759 = vmul.f32 1.0, %v2758
        %v2760 = vrcp.pop %v2755
        %v2761 = vmul.f32 1.0, %v2760
        %v2762 = vlaneseq
        %v2763 = vshrl.u32 %v2762, 7
        %v2764 = vsub.s32 0, %v2763
        %v2765 = vrot.slane %v2757, %v2764
        %v2766 = vlaneseq
        %v2767 = vshrl.u32 %v2766, 7
        %v2768 = vsub.s32 0, %v2767
        %v2769 = vrot.slane %v2759, %v2768
        %v2770 = vlaneseq
        %v2771 = vshrl.u32 %v2770, 7
        %v2772 = vsub.s32 0, %v2771
        %v2773 = vrot.slane %v2761, %v2772
        %2777 = vrot.lane.b32.xlu0 %v2765, 51
        %v2778 = vpop.permute.xlu0 %2777
        %2779 = vrot.lane.b32.xlu0 %v2769, 51
        %v2780 = vpop.permute.xlu0 %2779
        %2781 = vrot.lane.b32.xlu0 %v2773, 51
        %v2782 = vpop.permute.xlu0 %2781
        %vm2783 = vcmask 416768
        %v2784 = vsel %vm2783, %v2778, %v2780
        %v2785 = vsel %vm2783, %v2780, %v2782
        %v2788 = vmul.f32 %v508, %v2784
        %v2789 = vmul.f32 %v509, %v2785
        %v2790 = vmul.f32 %v510, %v2784
        %v2791 = vmul.f32 %v511, %v2785
        %v2792 = vmul.f32 %v512, %v2784
        %v2793 = vmul.f32 %v513, %v2785
        %v2794 = vmul.f32 %v514, %v2784
        %v2795 = vmul.f32 %v515, %v2785
        %v2796 = vmul.f32 %v516, %v2784
        %v2797 = vmul.f32 %v517, %v2785
        %v2798 = vmul.f32 %v518, %v2784
        %v2799 = vmul.f32 %v519, %v2785
        %v2800 = vmul.f32 %v520, %v2784
        %v2801 = vmul.f32 %v521, %v2785
        %v2802 = vmul.f32 %v522, %v2784
        %v2803 = vmul.f32 %v523, %v2785
        %2804 = vst [vmem:[%s238] sm:$0xff] %v2788
        %2805 = vst [vmem:[%s238 + $0x8] sm:$0xff] %v2789
        %2806 = vst [vmem:[%s238 + $0x10] sm:$0xff] %v2790
        %2807 = vst [vmem:[%s238 + $0x18] sm:$0xff] %v2791
        %2808 = vst [vmem:[%s238 + $0x20] sm:$0xff] %v2792
        %2809 = vst [vmem:[%s238 + $0x28] sm:$0xff] %v2793
        %2810 = vst [vmem:[%s238 + $0x30] sm:$0xff] %v2794
        %2811 = vst [vmem:[%s238 + $0x38] sm:$0xff] %v2795
        %2812 = vst [vmem:[%s238 + $0x40] sm:$0xff] %v2796
        %2813 = vst [vmem:[%s238 + $0x48] sm:$0xff] %v2797
        %2814 = vst [vmem:[%s238 + $0x50] sm:$0xff] %v2798
        %2815 = vst [vmem:[%s238 + $0x58] sm:$0xff] %v2799
        %2816 = vst [vmem:[%s238 + $0x60] sm:$0xff] %v2800
        %2817 = vst [vmem:[%s238 + $0x68] sm:$0xff] %v2801
        %2818 = vst [vmem:[%s238 + $0x70] sm:$0xff] %v2802
        %2819 = vst [vmem:[%s238 + $0x78] sm:$0xff] %v2803
        %p2820 = scmp.lt.s32.totalorder %s17, 1
        %s2821 = scalar_select %p2820, %s17, 1
        %s2822 = smul.addr %s2821, 16
        %s2823 = smul.addr %s2822, 8
        %s2824 = scalar_lea.vmem %s5, %s2823
        // Predicated region
        $region45: #{cbam_forward.1} parent=39 // pred_check
          %p2825 = pneg %p145
        $region46: #{cbam_forward.1} parent=39 // pred_check_branch
          %2827 = sbr.rel (%p2825) target = $region48
        $region47: #{cbam_forward.1} parent=39 // pred_region
          _
        $region48: #{cbam_forward.1} parent=39 // pred_fallthru
          _
      $region40: #{cbam_forward.1} parent=5 // pred_fallthru
        _
      %p2828 = scmp.le.s32.totalorder 2, %s12
      // Predicated region
      $region49: #{cbam_forward.1} parent=5 // pred_check
        %p2829 = pneg %p2828
      $region50: #{cbam_forward.1} parent=5 // pred_check_branch
        %2831 = sbr.rel (%p2829) target = $region52
      $region51: #{cbam_forward.1} parent=5 // pred_region
        %s2832 = ssub.s32 %s12, 2
        // Predicated region
        $region53: #{cbam_forward.1} parent=51 // pred_check
          %p2833 = pneg %p151
        $region54: #{cbam_forward.1} parent=51 // pred_check_branch
          %2835 = sbr.rel (%p2833) target = $region56
        $region55: #{cbam_forward.1} parent=51 // pred_region
          %p2836 = scmp.lt.s32.totalorder %s18, 1
          %s2837 = scalar_select %p2836, %s18, 1
          %s2838 = smul.addr %s2837, 16
          %s2839 = smul.addr %s2838, 8
          %s2840 = scalar_lea.vmem %s5, %s2839
        $region56: #{cbam_forward.1} parent=51 // pred_fallthru
          _
      $region52: #{cbam_forward.1} parent=5 // pred_fallthru
        _
    $region6: #{cbam_forward.1} parent=1 // loop_footer
      %s16 = sadd.s32 1, %s12
    $region7: #{cbam_forward.1} parent=1 // loop_footer_branch
      %11 = sbr.rel target = $region3
    $region8: #{cbam_forward.1} parent=1 // loop_exit
      _
    %2841 = vsyncpa [#allocation3], 1
    %s2842 = scalar_lea.sflag [#allocation3], 1
    %2843 = vsyncpa %s2842, 1

</llo_original>
